<compile_context>
chip_gen: v7x
topology: tpu7x:2x2x1
jax: 0.10.0
libtpu: 0.0.40
codegen_flags: <defaults>
</compile_context>

<pallas_src>
import functools

import jax
import jax.numpy as jnp
from jax import lax
from jax.experimental import pallas as pl
from jax.experimental.pallas import tpu as pltpu

LANE = 128     # f32 vreg lane width
SUBLANE = 8    # f32 vreg sublane count


def _round_up(x, m):
    return (x + m - 1) // m * m


def _lstm_kernel(x_ref, wih_ref, whh_ref, b_ref, h_out_ref, c_out_ref,
                 xg_scr, h_scr, c_scr, *, hidden_pad, chunk, seq_len, unroll):
    """Streams `chunk` timesteps per grid iteration; h/c carried in VMEM scratch.

    x_ref   : (TC, Bp, E)   time-major embedded inputs (this chunk)
    wih_ref : (E, 4*Hp)     input->gate weights, gate-blocked & lane-padded
    whh_ref : (Hp, 4*Hp)    hidden->gate weights, gate-blocked & lane-padded
    b_ref   : (1, 4*Hp)     b_ih + b_hh, gate-blocked & lane-padded
    outputs : h_out_ref / c_out_ref (Bp, Hp), written on the last grid step
    Gate order follows PyTorch: [i, f, g, o].
    """
    Hp = hidden_pad
    TC, Bp, E = x_ref.shape
    s = pl.program_id(0)

    @pl.when(s == 0)
    def _init():
        h_scr[...] = jnp.zeros_like(h_scr)
        c_scr[...] = jnp.zeros_like(c_scr)

    # Hoisted input projection (+ bias) for the whole chunk: one well-shaped
    # matmul instead of TC tiny (Bp, E) matmuls on the serial critical path.
    xg = jnp.dot(x_ref[...].reshape(TC * Bp, E), wih_ref[...],
                 preferred_element_type=jnp.float32) + b_ref[...]
    xg_scr[...] = xg.reshape(TC, Bp, 4 * Hp)

    def step(t, carry):
        gates = xg_scr[t] + jnp.dot(h_scr[...], whh_ref[...],
                                    preferred_element_type=jnp.float32)
        # Lane-aligned static slices: each gate owns its own Hp(=128) block.
        i_g = jax.nn.sigmoid(gates[:, 0 * Hp:1 * Hp])
        f_g = jax.nn.sigmoid(gates[:, 1 * Hp:2 * Hp])
        g_g = jnp.tanh(gates[:, 2 * Hp:3 * Hp])
        o_g = jax.nn.sigmoid(gates[:, 3 * Hp:4 * Hp])
        c_new = f_g * c_scr[...] + i_g * g_g
        h_new = o_g * jnp.tanh(c_new)

        if seq_len % chunk == 0:
            c_scr[...] = c_new
            h_scr[...] = h_new
        else:
            # Sequence was padded up to a multiple of the chunk: skip pad steps.
            @pl.when(s * chunk + t < seq_len)
            def _update():
                c_scr[...] = c_new
                h_scr[...] = h_new
        return carry

    lax.fori_loop(0, TC, step, 0, unroll=unroll)

    @pl.when(s == pl.num_programs(0) - 1)
    def _finalize():
        h_out_ref[...] = h_scr[...]
        c_out_ref[...] = c_scr[...]


def _pad_gate_blocks(w, H, Hp):
    """(rows, 4H) -> (rows, 4*Hp): each PyTorch gate [i,f,g,o] gets its own
    lane-aligned Hp-wide block; columns H..Hp of each block are zero."""
    rows = w.shape[0]
    out = jnp.zeros((rows, 4 * Hp), w.dtype)
    for g in range(4):
        out = out.at[:, g * Hp:g * Hp + H].set(w[:, g * H:(g + 1) * H])
    return out


def init_encoder_params(key, vocab_size, embed_size, hidden_size):
    """Deterministic init matching the parameter shapes of the PyTorch module."""
    k_emb, k_wih, k_whh, k_bih, k_bhh = jax.random.split(key, 5)
    k = 1.0 / jnp.sqrt(hidden_size)
    return {
        "embedding": jax.random.normal(k_emb, (vocab_size, embed_size), jnp.float32),
        "w_ih": jax.random.uniform(k_wih, (4 * hidden_size, embed_size), jnp.float32, -k, k),
        "w_hh": jax.random.uniform(k_whh, (4 * hidden_size, hidden_size), jnp.float32, -k, k),
        "b_ih": jax.random.uniform(k_bih, (4 * hidden_size,), jnp.float32, -k, k),
        "b_hh": jax.random.uniform(k_bhh, (4 * hidden_size,), jnp.float32, -k, k),
    }


def encoder_forward(token_ids, params, hidden_size, *, time_chunk=None):
    B, S = token_ids.shape
    E = params["embedding"].shape[1]
    H = hidden_size
    Hp = _round_up(H, LANE)       # lane-aligned per-gate block
    Bp = _round_up(B, SUBLANE)    # sublane-aligned batch

    TC = time_chunk if time_chunk is not None else max(1, min(S, 64))
    Sp = _round_up(S, TC)
    grid = (Sp // TC,)
    unroll = TC if TC <= 16 else 8

    # Embedding gather (glue) directly in time-major order: (S, B, E).
    x_tm = jnp.take(params["embedding"].astype(jnp.float32), token_ids.T, axis=0)
    x_tm = jnp.pad(x_tm, ((0, Sp - S), (0, Bp - B), (0, 0)))

    # Gate-blocked, lane-padded weights / bias (f32 to hold 1e-4 tolerance).
    wih_p = _pad_gate_blocks(jnp.transpose(params["w_ih"]).astype(jnp.float32), H, Hp)  # (E, 4Hp)
    whh_p = _pad_gate_blocks(jnp.transpose(params["w_hh"]).astype(jnp.float32), H, Hp)  # (H, 4Hp)
    whh_p = jnp.pad(whh_p, ((0, Hp - H), (0, 0)))                                        # (Hp, 4Hp)
    bias_p = _pad_gate_blocks(
        (params["b_ih"] + params["b_hh"]).astype(jnp.float32).reshape(1, 4 * H), H, Hp)  # (1, 4Hp)

    kernel = functools.partial(_lstm_kernel, hidden_pad=Hp, chunk=TC,
                               seq_len=S, unroll=unroll)

    # Explicit VMEM budget: weights + double-buffered x chunk + scratch + outs.
    vmem_bytes = 4 * (2 * TC * Bp * E
                      + E * 4 * Hp + Hp * 4 * Hp + 4 * Hp
                      + TC * Bp * 4 * Hp
                      + 2 * Bp * Hp
                      + 2 * 2 * Bp * Hp)
    vmem_limit = int(min(max(2 * vmem_bytes, 32 << 20), 64 << 20))

    cost = pl.CostEstimate(
        flops=2 * Sp * Bp * (E + Hp) * 4 * Hp,
        transcendentals=5 * Sp * Bp * Hp,
        bytes_accessed=4 * (Sp * Bp * E + E * 4 * Hp + Hp * 4 * Hp + 4 * Hp
                            + 2 * Bp * Hp),
    )

    h_pad, c_pad = pl.pallas_call(
        kernel,
        out_shape=(
            jax.ShapeDtypeStruct((Bp, Hp), jnp.float32),
            jax.ShapeDtypeStruct((Bp, Hp), jnp.float32),
        ),
        grid_spec=pltpu.PrefetchScalarGridSpec(
            num_scalar_prefetch=0,
            grid=grid,
            in_specs=[
                pl.BlockSpec((TC, Bp, E), lambda s: (s, 0, 0)),    # streamed x chunk
                pl.BlockSpec((E, 4 * Hp), lambda s: (0, 0)),        # W_ih (resident)
                pl.BlockSpec((Hp, 4 * Hp), lambda s: (0, 0)),       # W_hh (resident)
                pl.BlockSpec((1, 4 * Hp), lambda s: (0, 0)),        # bias  (resident)
            ],
            out_specs=(
                pl.BlockSpec((Bp, Hp), lambda s: (0, 0)),           # lane-dense h
                pl.BlockSpec((Bp, Hp), lambda s: (0, 0)),           # lane-dense c
            ),
            scratch_shapes=[
                pltpu.VMEM((TC, Bp, 4 * Hp), jnp.float32),  # per-chunk input projection
                pltpu.VMEM((Bp, Hp), jnp.float32),          # h state (carried)
                pltpu.VMEM((Bp, Hp), jnp.float32),          # c state (carried)
            ],
        ),
        compiler_params=pltpu.CompilerParams(
            dimension_semantics=("arbitrary",),   # serial recurrence over time
            vmem_limit_bytes=vmem_limit,
        ),
        cost_estimate=cost,
    )(x_tm, wih_p, whh_p, bias_p)

    # PyTorch LSTM returns (num_layers * num_directions, B, H) = (1, B, H)
    return h_pad[None, :B, :H], c_pad[None, :B, :H]


def _reference_forward(token_ids, params, hidden_size):
    """Pure-JAX reference (same math) for a correctness check."""
    H = hidden_size
    x_emb = jnp.take(params["embedding"], token_ids, axis=0)  # (B, S, E)
    B = x_emb.shape[0]
    wih_t = params["w_ih"].T
    whh_t = params["w_hh"].T
    bias = params["b_ih"] + params["b_hh"]

    def step(carry, x_t):
        h, c = carry
        gates = x_t @ wih_t + h @ whh_t + bias
        i_g = jax.nn.sigmoid(gates[:, 0 * H:1 * H])
        f_g = jax.nn.sigmoid(gates[:, 1 * H:2 * H])
        g_g = jnp.tanh(gates[:, 2 * H:3 * H])
        o_g = jax.nn.sigmoid(gates[:, 3 * H:4 * H])
        c_new = f_g * c + i_g * g_g
        h_new = o_g * jnp.tanh(c_new)
        return (h_new, c_new), None

    h0 = jnp.zeros((B, H), jnp.float32)
    c0 = jnp.zeros((B, H), jnp.float32)
    (h, c), _ = lax.scan(step, (h0, c0), jnp.transpose(x_emb, (1, 0, 2)))
    return h[None], c[None]


if __name__ == "__main__":
    VOCAB, EMBED, HIDDEN = 50, 32, 32
    BATCH, SEQ = 2, 8

    key = jax.random.PRNGKey(0)
    k_params, k_tokens = jax.random.split(key)
    params = init_encoder_params(k_params, VOCAB, EMBED, HIDDEN)
    token_ids = jax.random.randint(k_tokens, (BATCH, SEQ), 0, VOCAB, dtype=jnp.int32)

    ref_h, ref_c = _reference_forward(token_ids, params, HIDDEN)

    # Default: single time chunk covering the whole (small) sequence.
    hidden, cell = encoder_forward(token_ids, params, HIDDEN)
    hidden, cell = jax.block_until_ready(hidden), jax.block_until_ready(cell)
    assert hidden.shape == (1, BATCH, HIDDEN) and cell.shape == (1, BATCH, HIDDEN)
    assert jnp.allclose(hidden, ref_h, rtol=1e-4, atol=1e-4)
    assert jnp.allclose(cell, ref_c, rtol=1e-4, atol=1e-4)

    # Streamed time axis (grid of 2 chunks) — exercises the pipelined path.
    h2, c2 = encoder_forward(token_ids, params, HIDDEN, time_chunk=4)
    h2, c2 = jax.block_until_ready(h2), jax.block_until_ready(c2)
    assert jnp.allclose(h2, ref_h, rtol=1e-4, atol=1e-4)
    assert jnp.allclose(c2, ref_c, rtol=1e-4, atol=1e-4)

    # Ragged chunking (SEQ not divisible by chunk) — exercises the pad-step mask.
    h3, c3 = encoder_forward(token_ids, params, HIDDEN, time_chunk=3)
    h3, c3 = jax.block_until_ready(h3), jax.block_until_ready(c3)
    assert jnp.allclose(h3, ref_h, rtol=1e-4, atol=1e-4)
    assert jnp.allclose(c3, ref_c, rtol=1e-4, atol=1e-4)

    print("KERNEL_OK")
</pallas_src>

<mosaic_0001>
module attributes {stable_mosaic.version = 11 : i64} {
  func.func @_lstm_kernel(%arg0: i32, %arg1: memref<8x8x32xf32, #tpu.memory_space<vmem>>, %arg2: memref<32x512xf32, #tpu.memory_space<vmem>>, %arg3: memref<128x512xf32, #tpu.memory_space<vmem>>, %arg4: memref<1x512xf32, #tpu.memory_space<vmem>>, %arg5: memref<8x128xf32, #tpu.memory_space<vmem>>, %arg6: memref<8x128xf32, #tpu.memory_space<vmem>>, %arg7: memref<8x8x512xf32, #tpu.memory_space<vmem>>, %arg8: memref<8x128xf32, #tpu.memory_space<vmem>>, %arg9: memref<8x128xf32, #tpu.memory_space<vmem>>) attributes {dimension_semantics = [#tpu.dimension_semantics<arbitrary>], iteration_bounds = array<i64: 1>, scalar_prefetch = 0 : i64, scratch_operands = 3 : i64, tpu.core_type = #tpu.core_type<tc>, window_params = [{transform_indices = @transform_0, window_bounds = array<i64: 8, 8, 32>}, {pipeline_mode = #tpu.pipeline_mode<synchronous>, transform_indices = @transform_1, window_bounds = array<i64: 32, 512>}, {pipeline_mode = #tpu.pipeline_mode<synchronous>, transform_indices = @transform_2, window_bounds = array<i64: 128, 512>}, {pipeline_mode = #tpu.pipeline_mode<synchronous>, transform_indices = @transform_3, window_bounds = array<i64: 1, 512>}, {pipeline_mode = #tpu.pipeline_mode<synchronous>, transform_indices = @transform_4, window_bounds = array<i64: 8, 128>}, {pipeline_mode = #tpu.pipeline_mode<synchronous>, transform_indices = @transform_5, window_bounds = array<i64: 8, 128>}]} {
    %c0_i32 = arith.constant 0 : i32
    %0 = arith.cmpi eq, %arg0, %c0_i32 : i32
    %1 = arith.extui %0 : i1 to i32
    %c0_i32_0 = arith.constant 0 : i32
    %2 = arith.cmpi ne, %1, %c0_i32_0 : i32
    scf.if %2 {
      %cst_141 = arith.constant 0.000000e+00 : f32
      %295 = vector.broadcast %cst_141 : f32 to vector<8x128xf32>
      %c0_142 = arith.constant 0 : index
      %c0_143 = arith.constant 0 : index
      %296 = vector.load %arg8[%c0_142, %c0_143] : memref<8x128xf32, #tpu.memory_space<vmem>>, vector<8x128xf32>
      tpu.vector_store %arg8[%c0_142, %c0_143], %295 {strides = array<i32>} : memref<8x128xf32, #tpu.memory_space<vmem>>, vector<8x128xf32>,
      %cst_144 = arith.constant 0.000000e+00 : f32
      %297 = vector.broadcast %cst_144 : f32 to vector<8x128xf32>
      %c0_145 = arith.constant 0 : index
      %c0_146 = arith.constant 0 : index
      %298 = vector.load %arg9[%c0_145, %c0_146] : memref<8x128xf32, #tpu.memory_space<vmem>>, vector<8x128xf32>
      tpu.vector_store %arg9[%c0_145, %c0_146], %297 {strides = array<i32>} : memref<8x128xf32, #tpu.memory_space<vmem>>, vector<8x128xf32>,
    } else {
    }
    %c0 = arith.constant 0 : index
    %c0_1 = arith.constant 0 : index
    %c0_2 = arith.constant 0 : index
    %3 = vector.load %arg1[%c0, %c0_1, %c0_2] : memref<8x8x32xf32, #tpu.memory_space<vmem>>, vector<8x8x32xf32>
    %4 = vector.shape_cast %3 : vector<8x8x32xf32> to vector<64x32xf32>
    %c0_3 = arith.constant 0 : index
    %c0_4 = arith.constant 0 : index
    %5 = vector.load %arg2[%c0_3, %c0_4] : memref<32x512xf32, #tpu.memory_space<vmem>>, vector<32x512xf32>
    %cst = arith.constant dense<0.000000e+00> : vector<64x512xf32>
    %6 = tpu.matmul %4, %5, %cst {dimension_numbers = #tpu.dot_dimension_numbers<[1], [0], [0], [1], [0, 0, 1, 1], [], []>} : vector<64x32xf32>, vector<32x512xf32>, vector<64x512xf32> -> vector<64x512xf32>
    %c0_5 = arith.constant 0 : index
    %c0_6 = arith.constant 0 : index
    %7 = vector.load %arg4[%c0_5, %c0_6] : memref<1x512xf32, #tpu.memory_space<vmem>>, vector<1x512xf32>
    %8 = vector.broadcast %7 : vector<1x512xf32> to vector<64x512xf32>
    %9 = arith.addf %6, %8 : vector<64x512xf32>
    %10 = vector.shape_cast %9 : vector<64x512xf32> to vector<8x8x512xf32>
    %c0_7 = arith.constant 0 : index
    %c0_8 = arith.constant 0 : index
    %c0_9 = arith.constant 0 : index
    %11 = vector.load %arg7[%c0_7, %c0_8, %c0_9] : memref<8x8x512xf32, #tpu.memory_space<vmem>>, vector<8x8x512xf32>
    tpu.vector_store %arg7[%c0_7, %c0_8, %c0_9], %10 {strides = array<i32>} : memref<8x8x512xf32, #tpu.memory_space<vmem>>, vector<8x8x512xf32>,
    %c0_i32_10 = arith.constant 0 : i32
    %12 = arith.index_cast %c0_i32_10 : i32 to index
    %c0_11 = arith.constant 0 : index
    %c0_12 = arith.constant 0 : index
    %13 = vector.load %arg7[%12, %c0_11, %c0_12] : memref<8x8x512xf32, #tpu.memory_space<vmem>>, vector<1x8x512xf32>
    %14 = vector.shape_cast %13 : vector<1x8x512xf32> to vector<8x512xf32>
    %c0_13 = arith.constant 0 : index
    %c0_14 = arith.constant 0 : index
    %15 = vector.load %arg8[%c0_13, %c0_14] : memref<8x128xf32, #tpu.memory_space<vmem>>, vector<8x128xf32>
    %c0_15 = arith.constant 0 : index
    %c0_16 = arith.constant 0 : index
    %16 = vector.load %arg3[%c0_15, %c0_16] : memref<128x512xf32, #tpu.memory_space<vmem>>, vector<128x512xf32>
    %cst_17 = arith.constant dense<0.000000e+00> : vector<8x512xf32>
    %17 = tpu.matmul %15, %16, %cst_17 {dimension_numbers = #tpu.dot_dimension_numbers<[1], [0], [0], [1], [0, 0, 1, 1], [], []>} : vector<8x128xf32>, vector<128x512xf32>, vector<8x512xf32> -> vector<8x512xf32>
    %18 = arith.addf %14, %17 : vector<8x512xf32>
    %19 = vector.extract_strided_slice %18 {offsets = [0, 0], sizes = [8, 128], strides = [1, 1]} : vector<8x512xf32> to vector<8x128xf32>
    %20 = arith.negf %19 : vector<8x128xf32>
    %21 = math.exp %20 : vector<8x128xf32>
    %cst_18 = arith.constant 1.000000e+00 : f32
    %22 = vector.broadcast %cst_18 : f32 to vector<8x128xf32>
    %23 = arith.addf %22, %21 : vector<8x128xf32>
    %24 = arith.divf %22, %23 : vector<8x128xf32>
    %25 = vector.extract_strided_slice %18 {offsets = [0, 128], sizes = [8, 128], strides = [1, 1]} : vector<8x512xf32> to vector<8x128xf32>
    %26 = arith.negf %25 : vector<8x128xf32>
    %27 = math.exp %26 : vector<8x128xf32>
    %cst_19 = arith.constant 1.000000e+00 : f32
    %28 = vector.broadcast %cst_19 : f32 to vector<8x128xf32>
    %29 = arith.addf %28, %27 : vector<8x128xf32>
    %30 = arith.divf %28, %29 : vector<8x128xf32>
    %31 = vector.extract_strided_slice %18 {offsets = [0, 256], sizes = [8, 128], strides = [1, 1]} : vector<8x512xf32> to vector<8x128xf32>
    %32 = math.tanh %31 : vector<8x128xf32>
    %33 = vector.extract_strided_slice %18 {offsets = [0, 384], sizes = [8, 128], strides = [1, 1]} : vector<8x512xf32> to vector<8x128xf32>
    %34 = arith.negf %33 : vector<8x128xf32>
    %35 = math.exp %34 : vector<8x128xf32>
    %cst_20 = arith.constant 1.000000e+00 : f32
    %36 = vector.broadcast %cst_20 : f32 to vector<8x128xf32>
    %37 = arith.addf %36, %35 : vector<8x128xf32>
    %38 = arith.divf %36, %37 : vector<8x128xf32>
    %c0_21 = arith.constant 0 : index
    %c0_22 = arith.constant 0 : index
    %39 = vector.load %arg9[%c0_21, %c0_22] : memref<8x128xf32, #tpu.memory_space<vmem>>, vector<8x128xf32>
    %40 = arith.mulf %30, %39 : vector<8x128xf32>
    %41 = arith.mulf %24, %32 : vector<8x128xf32>
    %42 = arith.addf %40, %41 : vector<8x128xf32>
    %43 = math.tanh %42 : vector<8x128xf32>
    %44 = arith.mulf %38, %43 : vector<8x128xf32>
    %c0_23 = arith.constant 0 : index
    %c0_24 = arith.constant 0 : index
    %45 = vector.load %arg9[%c0_23, %c0_24] : memref<8x128xf32, #tpu.memory_space<vmem>>, vector<8x128xf32>
    tpu.vector_store %arg9[%c0_23, %c0_24], %42 {strides = array<i32>} : memref<8x128xf32, #tpu.memory_space<vmem>>, vector<8x128xf32>,
    %c0_25 = arith.constant 0 : index
    %c0_26 = arith.constant 0 : index
    %46 = vector.load %arg8[%c0_25, %c0_26] : memref<8x128xf32, #tpu.memory_space<vmem>>, vector<8x128xf32>
    tpu.vector_store %arg8[%c0_25, %c0_26], %44 {strides = array<i32>} : memref<8x128xf32, #tpu.memory_space<vmem>>, vector<8x128xf32>,
    %c1_i32 = arith.constant 1 : i32
    %47 = arith.index_cast %c1_i32 : i32 to index
    %c0_27 = arith.constant 0 : index
    %c0_28 = arith.constant 0 : index
    %48 = vector.load %arg7[%47, %c0_27, %c0_28] : memref<8x8x512xf32, #tpu.memory_space<vmem>>, vector<1x8x512xf32>
    %49 = vector.shape_cast %48 : vector<1x8x512xf32> to vector<8x512xf32>
    %c0_29 = arith.constant 0 : index
    %c0_30 = arith.constant 0 : index
    %50 = vector.load %arg8[%c0_29, %c0_30] : memref<8x128xf32, #tpu.memory_space<vmem>>, vector<8x128xf32>
    %c0_31 = arith.constant 0 : index
    %c0_32 = arith.constant 0 : index
    %51 = vector.load %arg3[%c0_31, %c0_32] : memref<128x512xf32, #tpu.memory_space<vmem>>, vector<128x512xf32>
    %cst_33 = arith.constant dense<0.000000e+00> : vector<8x512xf32>
    %52 = tpu.matmul %50, %51, %cst_33 {dimension_numbers = #tpu.dot_dimension_numbers<[1], [0], [0], [1], [0, 0, 1, 1], [], []>} : vector<8x128xf32>, vector<128x512xf32>, vector<8x512xf32> -> vector<8x512xf32>
    %53 = arith.addf %49, %52 : vector<8x512xf32>
    %54 = vector.extract_strided_slice %53 {offsets = [0, 0], sizes = [8, 128], strides = [1, 1]} : vector<8x512xf32> to vector<8x128xf32>
    %55 = arith.negf %54 : vector<8x128xf32>
    %56 = math.exp %55 : vector<8x128xf32>
    %cst_34 = arith.constant 1.000000e+00 : f32
    %57 = vector.broadcast %cst_34 : f32 to vector<8x128xf32>
    %58 = arith.addf %57, %56 : vector<8x128xf32>
    %59 = arith.divf %57, %58 : vector<8x128xf32>
    %60 = vector.extract_strided_slice %53 {offsets = [0, 128], sizes = [8, 128], strides = [1, 1]} : vector<8x512xf32> to vector<8x128xf32>
    %61 = arith.negf %60 : vector<8x128xf32>
    %62 = math.exp %61 : vector<8x128xf32>
    %cst_35 = arith.constant 1.000000e+00 : f32
    %63 = vector.broadcast %cst_35 : f32 to vector<8x128xf32>
    %64 = arith.addf %63, %62 : vector<8x128xf32>
    %65 = arith.divf %63, %64 : vector<8x128xf32>
    %66 = vector.extract_strided_slice %53 {offsets = [0, 256], sizes = [8, 128], strides = [1, 1]} : vector<8x512xf32> to vector<8x128xf32>
    %67 = math.tanh %66 : vector<8x128xf32>
    %68 = vector.extract_strided_slice %53 {offsets = [0, 384], sizes = [8, 128], strides = [1, 1]} : vector<8x512xf32> to vector<8x128xf32>
    %69 = arith.negf %68 : vector<8x128xf32>
    %70 = math.exp %69 : vector<8x128xf32>
    %cst_36 = arith.constant 1.000000e+00 : f32
    %71 = vector.broadcast %cst_36 : f32 to vector<8x128xf32>
    %72 = arith.addf %71, %70 : vector<8x128xf32>
    %73 = arith.divf %71, %72 : vector<8x128xf32>
    %c0_37 = arith.constant 0 : index
    %c0_38 = arith.constant 0 : index
    %74 = vector.load %arg9[%c0_37, %c0_38] : memref<8x128xf32, #tpu.memory_space<vmem>>, vector<8x128xf32>
    %75 = arith.mulf %65, %74 : vector<8x128xf32>
    %76 = arith.mulf %59, %67 : vector<8x128xf32>
    %77 = arith.addf %75, %76 : vector<8x128xf32>
    %78 = math.tanh %77 : vector<8x128xf32>
    %79 = arith.mulf %73, %78 : vector<8x128xf32>
    %c0_39 = arith.constant 0 : index
    %c0_40 = arith.constant 0 : index
    %80 = vector.load %arg9[%c0_39, %c0_40] : memref<8x128xf32, #tpu.memory_space<vmem>>, vector<8x128xf32>
    tpu.vector_store %arg9[%c0_39, %c0_40], %77 {strides = array<i32>} : memref<8x128xf32, #tpu.memory_space<vmem>>, vector<8x128xf32>,
    %c0_41 = arith.constant 0 : index
    %c0_42 = arith.constant 0 : index
    %81 = vector.load %arg8[%c0_41, %c0_42] : memref<8x128xf32, #tpu.memory_space<vmem>>, vector<8x128xf32>
    tpu.vector_store %arg8[%c0_41, %c0_42], %79 {strides = array<i32>} : memref<8x128xf32, #tpu.memory_space<vmem>>, vector<8x128xf32>,
    %c2_i32 = arith.constant 2 : i32
    %82 = arith.index_cast %c2_i32 : i32 to index
    %c0_43 = arith.constant 0 : index
    %c0_44 = arith.constant 0 : index
    %83 = vector.load %arg7[%82, %c0_43, %c0_44] : memref<8x8x512xf32, #tpu.memory_space<vmem>>, vector<1x8x512xf32>
    %84 = vector.shape_cast %83 : vector<1x8x512xf32> to vector<8x512xf32>
    %c0_45 = arith.constant 0 : index
    %c0_46 = arith.constant 0 : index
    %85 = vector.load %arg8[%c0_45, %c0_46] : memref<8x128xf32, #tpu.memory_space<vmem>>, vector<8x128xf32>
    %c0_47 = arith.constant 0 : index
    %c0_48 = arith.constant 0 : index
    %86 = vector.load %arg3[%c0_47, %c0_48] : memref<128x512xf32, #tpu.memory_space<vmem>>, vector<128x512xf32>
    %cst_49 = arith.constant dense<0.000000e+00> : vector<8x512xf32>
    %87 = tpu.matmul %85, %86, %cst_49 {dimension_numbers = #tpu.dot_dimension_numbers<[1], [0], [0], [1], [0, 0, 1, 1], [], []>} : vector<8x128xf32>, vector<128x512xf32>, vector<8x512xf32> -> vector<8x512xf32>
    %88 = arith.addf %84, %87 : vector<8x512xf32>
    %89 = vector.extract_strided_slice %88 {offsets = [0, 0], sizes = [8, 128], strides = [1, 1]} : vector<8x512xf32> to vector<8x128xf32>
    %90 = arith.negf %89 : vector<8x128xf32>
    %91 = math.exp %90 : vector<8x128xf32>
    %cst_50 = arith.constant 1.000000e+00 : f32
    %92 = vector.broadcast %cst_50 : f32 to vector<8x128xf32>
    %93 = arith.addf %92, %91 : vector<8x128xf32>
    %94 = arith.divf %92, %93 : vector<8x128xf32>
    %95 = vector.extract_strided_slice %88 {offsets = [0, 128], sizes = [8, 128], strides = [1, 1]} : vector<8x512xf32> to vector<8x128xf32>
    %96 = arith.negf %95 : vector<8x128xf32>
    %97 = math.exp %96 : vector<8x128xf32>
    %cst_51 = arith.constant 1.000000e+00 : f32
    %98 = vector.broadcast %cst_51 : f32 to vector<8x128xf32>
    %99 = arith.addf %98, %97 : vector<8x128xf32>
    %100 = arith.divf %98, %99 : vector<8x128xf32>
    %101 = vector.extract_strided_slice %88 {offsets = [0, 256], sizes = [8, 128], strides = [1, 1]} : vector<8x512xf32> to vector<8x128xf32>
    %102 = math.tanh %101 : vector<8x128xf32>
    %103 = vector.extract_strided_slice %88 {offsets = [0, 384], sizes = [8, 128], strides = [1, 1]} : vector<8x512xf32> to vector<8x128xf32>
    %104 = arith.negf %103 : vector<8x128xf32>
    %105 = math.exp %104 : vector<8x128xf32>
    %cst_52 = arith.constant 1.000000e+00 : f32
    %106 = vector.broadcast %cst_52 : f32 to vector<8x128xf32>
    %107 = arith.addf %106, %105 : vector<8x128xf32>
    %108 = arith.divf %106, %107 : vector<8x128xf32>
    %c0_53 = arith.constant 0 : index
    %c0_54 = arith.constant 0 : index
    %109 = vector.load %arg9[%c0_53, %c0_54] : memref<8x128xf32, #tpu.memory_space<vmem>>, vector<8x128xf32>
    %110 = arith.mulf %100, %109 : vector<8x128xf32>
    %111 = arith.mulf %94, %102 : vector<8x128xf32>
    %112 = arith.addf %110, %111 : vector<8x128xf32>
    %113 = math.tanh %112 : vector<8x128xf32>
    %114 = arith.mulf %108, %113 : vector<8x128xf32>
    %c0_55 = arith.constant 0 : index
    %c0_56 = arith.constant 0 : index
    %115 = vector.load %arg9[%c0_55, %c0_56] : memref<8x128xf32, #tpu.memory_space<vmem>>, vector<8x128xf32>
    tpu.vector_store %arg9[%c0_55, %c0_56], %112 {strides = array<i32>} : memref<8x128xf32, #tpu.memory_space<vmem>>, vector<8x128xf32>,
    %c0_57 = arith.constant 0 : index
    %c0_58 = arith.constant 0 : index
    %116 = vector.load %arg8[%c0_57, %c0_58] : memref<8x128xf32, #tpu.memory_space<vmem>>, vector<8x128xf32>
    tpu.vector_store %arg8[%c0_57, %c0_58], %114 {strides = array<i32>} : memref<8x128xf32, #tpu.memory_space<vmem>>, vector<8x128xf32>,
    %c3_i32 = arith.constant 3 : i32
    %117 = arith.index_cast %c3_i32 : i32 to index
    %c0_59 = arith.constant 0 : index
    %c0_60 = arith.constant 0 : index
    %118 = vector.load %arg7[%117, %c0_59, %c0_60] : memref<8x8x512xf32, #tpu.memory_space<vmem>>, vector<1x8x512xf32>
    %119 = vector.shape_cast %118 : vector<1x8x512xf32> to vector<8x512xf32>
    %c0_61 = arith.constant 0 : index
    %c0_62 = arith.constant 0 : index
    %120 = vector.load %arg8[%c0_61, %c0_62] : memref<8x128xf32, #tpu.memory_space<vmem>>, vector<8x128xf32>
    %c0_63 = arith.constant 0 : index
    %c0_64 = arith.constant 0 : index
    %121 = vector.load %arg3[%c0_63, %c0_64] : memref<128x512xf32, #tpu.memory_space<vmem>>, vector<128x512xf32>
    %cst_65 = arith.constant dense<0.000000e+00> : vector<8x512xf32>
    %122 = tpu.matmul %120, %121, %cst_65 {dimension_numbers = #tpu.dot_dimension_numbers<[1], [0], [0], [1], [0, 0, 1, 1], [], []>} : vector<8x128xf32>, vector<128x512xf32>, vector<8x512xf32> -> vector<8x512xf32>
    %123 = arith.addf %119, %122 : vector<8x512xf32>
    %124 = vector.extract_strided_slice %123 {offsets = [0, 0], sizes = [8, 128], strides = [1, 1]} : vector<8x512xf32> to vector<8x128xf32>
    %125 = arith.negf %124 : vector<8x128xf32>
    %126 = math.exp %125 : vector<8x128xf32>
    %cst_66 = arith.constant 1.000000e+00 : f32
    %127 = vector.broadcast %cst_66 : f32 to vector<8x128xf32>
    %128 = arith.addf %127, %126 : vector<8x128xf32>
    %129 = arith.divf %127, %128 : vector<8x128xf32>
    %130 = vector.extract_strided_slice %123 {offsets = [0, 128], sizes = [8, 128], strides = [1, 1]} : vector<8x512xf32> to vector<8x128xf32>
    %131 = arith.negf %130 : vector<8x128xf32>
    %132 = math.exp %131 : vector<8x128xf32>
    %cst_67 = arith.constant 1.000000e+00 : f32
    %133 = vector.broadcast %cst_67 : f32 to vector<8x128xf32>
    %134 = arith.addf %133, %132 : vector<8x128xf32>
    %135 = arith.divf %133, %134 : vector<8x128xf32>
    %136 = vector.extract_strided_slice %123 {offsets = [0, 256], sizes = [8, 128], strides = [1, 1]} : vector<8x512xf32> to vector<8x128xf32>
    %137 = math.tanh %136 : vector<8x128xf32>
    %138 = vector.extract_strided_slice %123 {offsets = [0, 384], sizes = [8, 128], strides = [1, 1]} : vector<8x512xf32> to vector<8x128xf32>
    %139 = arith.negf %138 : vector<8x128xf32>
    %140 = math.exp %139 : vector<8x128xf32>
    %cst_68 = arith.constant 1.000000e+00 : f32
    %141 = vector.broadcast %cst_68 : f32 to vector<8x128xf32>
    %142 = arith.addf %141, %140 : vector<8x128xf32>
    %143 = arith.divf %141, %142 : vector<8x128xf32>
    %c0_69 = arith.constant 0 : index
    %c0_70 = arith.constant 0 : index
    %144 = vector.load %arg9[%c0_69, %c0_70] : memref<8x128xf32, #tpu.memory_space<vmem>>, vector<8x128xf32>
    %145 = arith.mulf %135, %144 : vector<8x128xf32>
    %146 = arith.mulf %129, %137 : vector<8x128xf32>
    %147 = arith.addf %145, %146 : vector<8x128xf32>
    %148 = math.tanh %147 : vector<8x128xf32>
    %149 = arith.mulf %143, %148 : vector<8x128xf32>
    %c0_71 = arith.constant 0 : index
    %c0_72 = arith.constant 0 : index
    %150 = vector.load %arg9[%c0_71, %c0_72] : memref<8x128xf32, #tpu.memory_space<vmem>>, vector<8x128xf32>
    tpu.vector_store %arg9[%c0_71, %c0_72], %147 {strides = array<i32>} : memref<8x128xf32, #tpu.memory_space<vmem>>, vector<8x128xf32>,
    %c0_73 = arith.constant 0 : index
    %c0_74 = arith.constant 0 : index
    %151 = vector.load %arg8[%c0_73, %c0_74] : memref<8x128xf32, #tpu.memory_space<vmem>>, vector<8x128xf32>
    tpu.vector_store %arg8[%c0_73, %c0_74], %149 {strides = array<i32>} : memref<8x128xf32, #tpu.memory_space<vmem>>, vector<8x128xf32>,
    %c4_i32 = arith.constant 4 : i32
    %152 = arith.index_cast %c4_i32 : i32 to index
    %c0_75 = arith.constant 0 : index
    %c0_76 = arith.constant 0 : index
    %153 = vector.load %arg7[%152, %c0_75, %c0_76] : memref<8x8x512xf32, #tpu.memory_space<vmem>>, vector<1x8x512xf32>
    %154 = vector.shape_cast %153 : vector<1x8x512xf32> to vector<8x512xf32>
    %c0_77 = arith.constant 0 : index
    %c0_78 = arith.constant 0 : index
    %155 = vector.load %arg8[%c0_77, %c0_78] : memref<8x128xf32, #tpu.memory_space<vmem>>, vector<8x128xf32>
    %c0_79 = arith.constant 0 : index
    %c0_80 = arith.constant 0 : index
    %156 = vector.load %arg3[%c0_79, %c0_80] : memref<128x512xf32, #tpu.memory_space<vmem>>, vector<128x512xf32>
    %cst_81 = arith.constant dense<0.000000e+00> : vector<8x512xf32>
    %157 = tpu.matmul %155, %156, %cst_81 {dimension_numbers = #tpu.dot_dimension_numbers<[1], [0], [0], [1], [0, 0, 1, 1], [], []>} : vector<8x128xf32>, vector<128x512xf32>, vector<8x512xf32> -> vector<8x512xf32>
    %158 = arith.addf %154, %157 : vector<8x512xf32>
    %159 = vector.extract_strided_slice %158 {offsets = [0, 0], sizes = [8, 128], strides = [1, 1]} : vector<8x512xf32> to vector<8x128xf32>
    %160 = arith.negf %159 : vector<8x128xf32>
    %161 = math.exp %160 : vector<8x128xf32>
    %cst_82 = arith.constant 1.000000e+00 : f32
    %162 = vector.broadcast %cst_82 : f32 to vector<8x128xf32>
    %163 = arith.addf %162, %161 : vector<8x128xf32>
    %164 = arith.divf %162, %163 : vector<8x128xf32>
    %165 = vector.extract_strided_slice %158 {offsets = [0, 128], sizes = [8, 128], strides = [1, 1]} : vector<8x512xf32> to vector<8x128xf32>
    %166 = arith.negf %165 : vector<8x128xf32>
    %167 = math.exp %166 : vector<8x128xf32>
    %cst_83 = arith.constant 1.000000e+00 : f32
    %168 = vector.broadcast %cst_83 : f32 to vector<8x128xf32>
    %169 = arith.addf %168, %167 : vector<8x128xf32>
    %170 = arith.divf %168, %169 : vector<8x128xf32>
    %171 = vector.extract_strided_slice %158 {offsets = [0, 256], sizes = [8, 128], strides = [1, 1]} : vector<8x512xf32> to vector<8x128xf32>
    %172 = math.tanh %171 : vector<8x128xf32>
    %173 = vector.extract_strided_slice %158 {offsets = [0, 384], sizes = [8, 128], strides = [1, 1]} : vector<8x512xf32> to vector<8x128xf32>
    %174 = arith.negf %173 : vector<8x128xf32>
    %175 = math.exp %174 : vector<8x128xf32>
    %cst_84 = arith.constant 1.000000e+00 : f32
    %176 = vector.broadcast %cst_84 : f32 to vector<8x128xf32>
    %177 = arith.addf %176, %175 : vector<8x128xf32>
    %178 = arith.divf %176, %177 : vector<8x128xf32>
    %c0_85 = arith.constant 0 : index
    %c0_86 = arith.constant 0 : index
    %179 = vector.load %arg9[%c0_85, %c0_86] : memref<8x128xf32, #tpu.memory_space<vmem>>, vector<8x128xf32>
    %180 = arith.mulf %170, %179 : vector<8x128xf32>
    %181 = arith.mulf %164, %172 : vector<8x128xf32>
    %182 = arith.addf %180, %181 : vector<8x128xf32>
    %183 = math.tanh %182 : vector<8x128xf32>
    %184 = arith.mulf %178, %183 : vector<8x128xf32>
    %c0_87 = arith.constant 0 : index
    %c0_88 = arith.constant 0 : index
    %185 = vector.load %arg9[%c0_87, %c0_88] : memref<8x128xf32, #tpu.memory_space<vmem>>, vector<8x128xf32>
    tpu.vector_store %arg9[%c0_87, %c0_88], %182 {strides = array<i32>} : memref<8x128xf32, #tpu.memory_space<vmem>>, vector<8x128xf32>,
    %c0_89 = arith.constant 0 : index
    %c0_90 = arith.constant 0 : index
    %186 = vector.load %arg8[%c0_89, %c0_90] : memref<8x128xf32, #tpu.memory_space<vmem>>, vector<8x128xf32>
    tpu.vector_store %arg8[%c0_89, %c0_90], %184 {strides = array<i32>} : memref<8x128xf32, #tpu.memory_space<vmem>>, vector<8x128xf32>,
    %c5_i32 = arith.constant 5 : i32
    %187 = arith.index_cast %c5_i32 : i32 to index
    %c0_91 = arith.constant 0 : index
    %c0_92 = arith.constant 0 : index
    %188 = vector.load %arg7[%187, %c0_91, %c0_92] : memref<8x8x512xf32, #tpu.memory_space<vmem>>, vector<1x8x512xf32>
    %189 = vector.shape_cast %188 : vector<1x8x512xf32> to vector<8x512xf32>
    %c0_93 = arith.constant 0 : index
    %c0_94 = arith.constant 0 : index
    %190 = vector.load %arg8[%c0_93, %c0_94] : memref<8x128xf32, #tpu.memory_space<vmem>>, vector<8x128xf32>
    %c0_95 = arith.constant 0 : index
    %c0_96 = arith.constant 0 : index
    %191 = vector.load %arg3[%c0_95, %c0_96] : memref<128x512xf32, #tpu.memory_space<vmem>>, vector<128x512xf32>
    %cst_97 = arith.constant dense<0.000000e+00> : vector<8x512xf32>
    %192 = tpu.matmul %190, %191, %cst_97 {dimension_numbers = #tpu.dot_dimension_numbers<[1], [0], [0], [1], [0, 0, 1, 1], [], []>} : vector<8x128xf32>, vector<128x512xf32>, vector<8x512xf32> -> vector<8x512xf32>
    %193 = arith.addf %189, %192 : vector<8x512xf32>
    %194 = vector.extract_strided_slice %193 {offsets = [0, 0], sizes = [8, 128], strides = [1, 1]} : vector<8x512xf32> to vector<8x128xf32>
    %195 = arith.negf %194 : vector<8x128xf32>
    %196 = math.exp %195 : vector<8x128xf32>
    %cst_98 = arith.constant 1.000000e+00 : f32
    %197 = vector.broadcast %cst_98 : f32 to vector<8x128xf32>
    %198 = arith.addf %197, %196 : vector<8x128xf32>
    %199 = arith.divf %197, %198 : vector<8x128xf32>
    %200 = vector.extract_strided_slice %193 {offsets = [0, 128], sizes = [8, 128], strides = [1, 1]} : vector<8x512xf32> to vector<8x128xf32>
    %201 = arith.negf %200 : vector<8x128xf32>
    %202 = math.exp %201 : vector<8x128xf32>
    %cst_99 = arith.constant 1.000000e+00 : f32
    %203 = vector.broadcast %cst_99 : f32 to vector<8x128xf32>
    %204 = arith.addf %203, %202 : vector<8x128xf32>
    %205 = arith.divf %203, %204 : vector<8x128xf32>
    %206 = vector.extract_strided_slice %193 {offsets = [0, 256], sizes = [8, 128], strides = [1, 1]} : vector<8x512xf32> to vector<8x128xf32>
    %207 = math.tanh %206 : vector<8x128xf32>
    %208 = vector.extract_strided_slice %193 {offsets = [0, 384], sizes = [8, 128], strides = [1, 1]} : vector<8x512xf32> to vector<8x128xf32>
    %209 = arith.negf %208 : vector<8x128xf32>
    %210 = math.exp %209 : vector<8x128xf32>
    %cst_100 = arith.constant 1.000000e+00 : f32
    %211 = vector.broadcast %cst_100 : f32 to vector<8x128xf32>
    %212 = arith.addf %211, %210 : vector<8x128xf32>
    %213 = arith.divf %211, %212 : vector<8x128xf32>
    %c0_101 = arith.constant 0 : index
    %c0_102 = arith.constant 0 : index
    %214 = vector.load %arg9[%c0_101, %c0_102] : memref<8x128xf32, #tpu.memory_space<vmem>>, vector<8x128xf32>
    %215 = arith.mulf %205, %214 : vector<8x128xf32>
    %216 = arith.mulf %199, %207 : vector<8x128xf32>
    %217 = arith.addf %215, %216 : vector<8x128xf32>
    %218 = math.tanh %217 : vector<8x128xf32>
    %219 = arith.mulf %213, %218 : vector<8x128xf32>
    %c0_103 = arith.constant 0 : index
    %c0_104 = arith.constant 0 : index
    %220 = vector.load %arg9[%c0_103, %c0_104] : memref<8x128xf32, #tpu.memory_space<vmem>>, vector<8x128xf32>
    tpu.vector_store %arg9[%c0_103, %c0_104], %217 {strides = array<i32>} : memref<8x128xf32, #tpu.memory_space<vmem>>, vector<8x128xf32>,
    %c0_105 = arith.constant 0 : index
    %c0_106 = arith.constant 0 : index
    %221 = vector.load %arg8[%c0_105, %c0_106] : memref<8x128xf32, #tpu.memory_space<vmem>>, vector<8x128xf32>
    tpu.vector_store %arg8[%c0_105, %c0_106], %219 {strides = array<i32>} : memref<8x128xf32, #tpu.memory_space<vmem>>, vector<8x128xf32>,
    %c6_i32 = arith.constant 6 : i32
    %222 = arith.index_cast %c6_i32 : i32 to index
    %c0_107 = arith.constant 0 : index
    %c0_108 = arith.constant 0 : index
    %223 = vector.load %arg7[%222, %c0_107, %c0_108] : memref<8x8x512xf32, #tpu.memory_space<vmem>>, vector<1x8x512xf32>
    %224 = vector.shape_cast %223 : vector<1x8x512xf32> to vector<8x512xf32>
    %c0_109 = arith.constant 0 : index
    %c0_110 = arith.constant 0 : index
    %225 = vector.load %arg8[%c0_109, %c0_110] : memref<8x128xf32, #tpu.memory_space<vmem>>, vector<8x128xf32>
    %c0_111 = arith.constant 0 : index
    %c0_112 = arith.constant 0 : index
    %226 = vector.load %arg3[%c0_111, %c0_112] : memref<128x512xf32, #tpu.memory_space<vmem>>, vector<128x512xf32>
    %cst_113 = arith.constant dense<0.000000e+00> : vector<8x512xf32>
    %227 = tpu.matmul %225, %226, %cst_113 {dimension_numbers = #tpu.dot_dimension_numbers<[1], [0], [0], [1], [0, 0, 1, 1], [], []>} : vector<8x128xf32>, vector<128x512xf32>, vector<8x512xf32> -> vector<8x512xf32>
    %228 = arith.addf %224, %227 : vector<8x512xf32>
    %229 = vector.extract_strided_slice %228 {offsets = [0, 0], sizes = [8, 128], strides = [1, 1]} : vector<8x512xf32> to vector<8x128xf32>
    %230 = arith.negf %229 : vector<8x128xf32>
    %231 = math.exp %230 : vector<8x128xf32>
    %cst_114 = arith.constant 1.000000e+00 : f32
    %232 = vector.broadcast %cst_114 : f32 to vector<8x128xf32>
    %233 = arith.addf %232, %231 : vector<8x128xf32>
    %234 = arith.divf %232, %233 : vector<8x128xf32>
    %235 = vector.extract_strided_slice %228 {offsets = [0, 128], sizes = [8, 128], strides = [1, 1]} : vector<8x512xf32> to vector<8x128xf32>
    %236 = arith.negf %235 : vector<8x128xf32>
    %237 = math.exp %236 : vector<8x128xf32>
    %cst_115 = arith.constant 1.000000e+00 : f32
    %238 = vector.broadcast %cst_115 : f32 to vector<8x128xf32>
    %239 = arith.addf %238, %237 : vector<8x128xf32>
    %240 = arith.divf %238, %239 : vector<8x128xf32>
    %241 = vector.extract_strided_slice %228 {offsets = [0, 256], sizes = [8, 128], strides = [1, 1]} : vector<8x512xf32> to vector<8x128xf32>
    %242 = math.tanh %241 : vector<8x128xf32>
    %243 = vector.extract_strided_slice %228 {offsets = [0, 384], sizes = [8, 128], strides = [1, 1]} : vector<8x512xf32> to vector<8x128xf32>
    %244 = arith.negf %243 : vector<8x128xf32>
    %245 = math.exp %244 : vector<8x128xf32>
    %cst_116 = arith.constant 1.000000e+00 : f32
    %246 = vector.broadcast %cst_116 : f32 to vector<8x128xf32>
    %247 = arith.addf %246, %245 : vector<8x128xf32>
    %248 = arith.divf %246, %247 : vector<8x128xf32>
    %c0_117 = arith.constant 0 : index
    %c0_118 = arith.constant 0 : index
    %249 = vector.load %arg9[%c0_117, %c0_118] : memref<8x128xf32, #tpu.memory_space<vmem>>, vector<8x128xf32>
    %250 = arith.mulf %240, %249 : vector<8x128xf32>
    %251 = arith.mulf %234, %242 : vector<8x128xf32>
    %252 = arith.addf %250, %251 : vector<8x128xf32>
    %253 = math.tanh %252 : vector<8x128xf32>
    %254 = arith.mulf %248, %253 : vector<8x128xf32>
    %c0_119 = arith.constant 0 : index
    %c0_120 = arith.constant 0 : index
    %255 = vector.load %arg9[%c0_119, %c0_120] : memref<8x128xf32, #tpu.memory_space<vmem>>, vector<8x128xf32>
    tpu.vector_store %arg9[%c0_119, %c0_120], %252 {strides = array<i32>} : memref<8x128xf32, #tpu.memory_space<vmem>>, vector<8x128xf32>,
    %c0_121 = arith.constant 0 : index
    %c0_122 = arith.constant 0 : index
    %256 = vector.load %arg8[%c0_121, %c0_122] : memref<8x128xf32, #tpu.memory_space<vmem>>, vector<8x128xf32>
    tpu.vector_store %arg8[%c0_121, %c0_122], %254 {strides = array<i32>} : memref<8x128xf32, #tpu.memory_space<vmem>>, vector<8x128xf32>,
    %c7_i32 = arith.constant 7 : i32
    %257 = arith.index_cast %c7_i32 : i32 to index
    %c0_123 = arith.constant 0 : index
    %c0_124 = arith.constant 0 : index
    %258 = vector.load %arg7[%257, %c0_123, %c0_124] : memref<8x8x512xf32, #tpu.memory_space<vmem>>, vector<1x8x512xf32>
    %259 = vector.shape_cast %258 : vector<1x8x512xf32> to vector<8x512xf32>
    %c0_125 = arith.constant 0 : index
    %c0_126 = arith.constant 0 : index
    %260 = vector.load %arg8[%c0_125, %c0_126] : memref<8x128xf32, #tpu.memory_space<vmem>>, vector<8x128xf32>
    %c0_127 = arith.constant 0 : index
    %c0_128 = arith.constant 0 : index
    %261 = vector.load %arg3[%c0_127, %c0_128] : memref<128x512xf32, #tpu.memory_space<vmem>>, vector<128x512xf32>
    %cst_129 = arith.constant dense<0.000000e+00> : vector<8x512xf32>
    %262 = tpu.matmul %260, %261, %cst_129 {dimension_numbers = #tpu.dot_dimension_numbers<[1], [0], [0], [1], [0, 0, 1, 1], [], []>} : vector<8x128xf32>, vector<128x512xf32>, vector<8x512xf32> -> vector<8x512xf32>
    %263 = arith.addf %259, %262 : vector<8x512xf32>
    %264 = vector.extract_strided_slice %263 {offsets = [0, 0], sizes = [8, 128], strides = [1, 1]} : vector<8x512xf32> to vector<8x128xf32>
    %265 = arith.negf %264 : vector<8x128xf32>
    %266 = math.exp %265 : vector<8x128xf32>
    %cst_130 = arith.constant 1.000000e+00 : f32
    %267 = vector.broadcast %cst_130 : f32 to vector<8x128xf32>
    %268 = arith.addf %267, %266 : vector<8x128xf32>
    %269 = arith.divf %267, %268 : vector<8x128xf32>
    %270 = vector.extract_strided_slice %263 {offsets = [0, 128], sizes = [8, 128], strides = [1, 1]} : vector<8x512xf32> to vector<8x128xf32>
    %271 = arith.negf %270 : vector<8x128xf32>
    %272 = math.exp %271 : vector<8x128xf32>
    %cst_131 = arith.constant 1.000000e+00 : f32
    %273 = vector.broadcast %cst_131 : f32 to vector<8x128xf32>
    %274 = arith.addf %273, %272 : vector<8x128xf32>
    %275 = arith.divf %273, %274 : vector<8x128xf32>
    %276 = vector.extract_strided_slice %263 {offsets = [0, 256], sizes = [8, 128], strides = [1, 1]} : vector<8x512xf32> to vector<8x128xf32>
    %277 = math.tanh %276 : vector<8x128xf32>
    %278 = vector.extract_strided_slice %263 {offsets = [0, 384], sizes = [8, 128], strides = [1, 1]} : vector<8x512xf32> to vector<8x128xf32>
    %279 = arith.negf %278 : vector<8x128xf32>
    %280 = math.exp %279 : vector<8x128xf32>
    %cst_132 = arith.constant 1.000000e+00 : f32
    %281 = vector.broadcast %cst_132 : f32 to vector<8x128xf32>
    %282 = arith.addf %281, %280 : vector<8x128xf32>
    %283 = arith.divf %281, %282 : vector<8x128xf32>
    %c0_133 = arith.constant 0 : index
    %c0_134 = arith.constant 0 : index
    %284 = vector.load %arg9[%c0_133, %c0_134] : memref<8x128xf32, #tpu.memory_space<vmem>>, vector<8x128xf32>
    %285 = arith.mulf %275, %284 : vector<8x128xf32>
    %286 = arith.mulf %269, %277 : vector<8x128xf32>
    %287 = arith.addf %285, %286 : vector<8x128xf32>
    %288 = math.tanh %287 : vector<8x128xf32>
    %289 = arith.mulf %283, %288 : vector<8x128xf32>
    %c0_135 = arith.constant 0 : index
    %c0_136 = arith.constant 0 : index
    %290 = vector.load %arg9[%c0_135, %c0_136] : memref<8x128xf32, #tpu.memory_space<vmem>>, vector<8x128xf32>
    tpu.vector_store %arg9[%c0_135, %c0_136], %287 {strides = array<i32>} : memref<8x128xf32, #tpu.memory_space<vmem>>, vector<8x128xf32>,
    %c0_137 = arith.constant 0 : index
    %c0_138 = arith.constant 0 : index
    %291 = vector.load %arg8[%c0_137, %c0_138] : memref<8x128xf32, #tpu.memory_space<vmem>>, vector<8x128xf32>
    tpu.vector_store %arg8[%c0_137, %c0_138], %289 {strides = array<i32>} : memref<8x128xf32, #tpu.memory_space<vmem>>, vector<8x128xf32>,
    %c8_i32 = arith.constant 8 : i32
    %c0_i32_139 = arith.constant 0 : i32
    %292 = arith.cmpi eq, %arg0, %c0_i32_139 : i32
    %293 = arith.extui %292 : i1 to i32
    %c0_i32_140 = arith.constant 0 : i32
    %294 = arith.cmpi ne, %293, %c0_i32_140 : i32
    scf.if %294 {
      %c0_141 = arith.constant 0 : index
      %c0_142 = arith.constant 0 : index
      %295 = vector.load %arg8[%c0_141, %c0_142] : memref<8x128xf32, #tpu.memory_space<vmem>>, vector<8x128xf32>
      %c0_143 = arith.constant 0 : index
      %c0_144 = arith.constant 0 : index
      %296 = vector.load %arg5[%c0_143, %c0_144] : memref<8x128xf32, #tpu.memory_space<vmem>>, vector<8x128xf32>
      tpu.vector_store %arg5[%c0_143, %c0_144], %295 {strides = array<i32>} : memref<8x128xf32, #tpu.memory_space<vmem>>, vector<8x128xf32>,
      %c0_145 = arith.constant 0 : index
      %c0_146 = arith.constant 0 : index
      %297 = vector.load %arg9[%c0_145, %c0_146] : memref<8x128xf32, #tpu.memory_space<vmem>>, vector<8x128xf32>
      %c0_147 = arith.constant 0 : index
      %c0_148 = arith.constant 0 : index
      %298 = vector.load %arg6[%c0_147, %c0_148] : memref<8x128xf32, #tpu.memory_space<vmem>>, vector<8x128xf32>
      tpu.vector_store %arg6[%c0_147, %c0_148], %297 {strides = array<i32>} : memref<8x128xf32, #tpu.memory_space<vmem>>, vector<8x128xf32>,
    } else {
    }
    return
  }
  func.func @transform_0(%arg0: i32) -> (i32, i32, i32) {
    %c0_i32 = arith.constant 0 : i32
    %c0_i32_0 = arith.constant 0 : i32
    %c0_i32_1 = arith.constant 0 : i32
    return %arg0, %c0_i32, %c0_i32_0 : i32, i32, i32
  }
  func.func @transform_1(%arg0: i32) -> (i32, i32) {
    %c0_i32 = arith.constant 0 : i32
    %c0_i32_0 = arith.constant 0 : i32
    %c0_i32_1 = arith.constant 0 : i32
    return %c0_i32, %c0_i32_0 : i32, i32
  }
  func.func @transform_2(%arg0: i32) -> (i32, i32) {
    %c0_i32 = arith.constant 0 : i32
    %c0_i32_0 = arith.constant 0 : i32
    %c0_i32_1 = arith.constant 0 : i32
    return %c0_i32, %c0_i32_0 : i32, i32
  }
  func.func @transform_3(%arg0: i32) -> (i32, i32) {
    %c0_i32 = arith.constant 0 : i32
    %c0_i32_0 = arith.constant 0 : i32
    %c0_i32_1 = arith.constant 0 : i32
    return %c0_i32, %c0_i32_0 : i32, i32
  }
  func.func @transform_4(%arg0: i32) -> (i32, i32) {
    %c0_i32 = arith.constant 0 : i32
    %c0_i32_0 = arith.constant 0 : i32
    %c0_i32_1 = arith.constant 0 : i32
    return %c0_i32, %c0_i32_0 : i32, i32
  }
  func.func @transform_5(%arg0: i32) -> (i32, i32) {
    %c0_i32 = arith.constant 0 : i32
    %c0_i32_0 = arith.constant 0 : i32
    %c0_i32_1 = arith.constant 0 : i32
    return %c0_i32, %c0_i32_0 : i32, i32
  }
}

</mosaic_0001>

<llo_original>
// kernel: tpu_custom_call.1
$region0: #{tpu_custom_call.1}
  #allocation0 [shape = 'u32[]', space=smem, size = 0x4, offset = 0x4, fixed_abs, tag = 'smem constant byte address 0x4 - core index']
  #allocation1 [shape = 'u32[144,128]{1,0:T(1,128)}', space=vmem, size = 0x12000, scoped, tag = 'internal scratch']
  #allocation2 [shape = 'f32[8,8,512]{2,1,0:T(8,128)}', space=vmem, size = 0x20000, scoped, tag = 'scratch operand']
  #allocation3 [shape = 'f32[8,128]{1,0:T(8,128)}', space=vmem, size = 0x1000, scoped, tag = 'scratch operand']
  #allocation4 [shape = 'f32[8,128]{1,0:T(8,128)}', space=vmem, size = 0x1000, scoped, tag = 'scratch operand']
  %s0 = inlined_call_operand.hbm [shape: f32[8,8,32], index: 0, kind: input, shape index: {}]
  %s1 = inlined_call_operand.hbm [shape: f32[32,512], index: 1, kind: input, shape index: {}]
  %s2 = inlined_call_operand.hbm [shape: f32[128,512], index: 2, kind: input, shape index: {}]
  %s3 = inlined_call_operand.vmem [shape: f32[1,512], index: 3, kind: input, shape index: {}]
  %s4 = inlined_call_operand.hbm [shape: f32[8,128], index: 4, kind: output, shape index: {0}]
  %s5 = inlined_call_operand.hbm [shape: f32[8,128], index: 5, kind: output, shape index: {1}]
  %6 = xla_tuple %s4, %s5
  %s7 = sld [smem:[#allocation0]]
  $region54: #{tpu_custom_call.1} parent=0
    _
  %s9 = ssub.s32 1, %s7
  %s10 = scalar_select 0, %s9, %s7
  $region1: #{tpu_custom_call.1} parent=0
    #allocation5 [shape = 'u8[32768]{0}', space=vmem, size = 0x8000, scoped, tag = 'input window, operand 0, single buffered']
    #allocation6 [shape = 's32[1]{0}', space=sflag, size = 0x4, scoped, tag = 'scoped memory for tpu_custom_call.1']
    #allocation7 [shape = 's32[1]{0}', space=sflag, size = 0x4, scoped, tag = 'scoped memory for tpu_custom_call.1']
    #allocation8 [shape = 'u8[65536]{0}', space=vmem, size = 0x10000, scoped, tag = 'input window, operand 1, single buffered']
    #allocation9 [shape = 's32[1]{0}', space=sflag, size = 0x4, scoped, tag = 'scoped memory for tpu_custom_call.1']
    #allocation10 [shape = 'u8[262144]{0}', space=vmem, size = 0x40000, scoped, tag = 'input window, operand 2, single buffered']
    #allocation11 [shape = 'u8[4096]{0}', space=vmem, size = 0x1000, scoped, tag = 'output window, operand 0, single buffered']
    #allocation12 [shape = 'u8[4096]{0}', space=vmem, size = 0x1000, scoped, tag = 'output window, operand 1, single buffered']
    #allocation13 [shape = 's32[1]{0}', space=sflag, size = 0x4, scoped, tag = 'scoped memory for tpu_custom_call.1']
    %11 = vsyncpa [#allocation6], 0
    %12 = vsyncpa [#allocation9], 0
    %13 = vsyncpa [#allocation7], 0
    %14 = vsyncpa [#allocation13], 0
    // Predicated region
    $region2: #{tpu_custom_call.1} parent=1 // pred_check
      _
    $region3: #{tpu_custom_call.1} parent=1 // pred_check_branch
      %16 = sbr.rel (0) target = $region5
    $region4: #{tpu_custom_call.1} parent=1 // pred_region
      %s18 = ssub.s32 1024, 1024
      %19 = vsyncadd [#allocation6], %s18
      %s20 = sshll.u32 [#allocation5], 4
      %s21 = int_to_ptr.vmem [resolvable:$true] %s20
      %26 = dma.hbm_to_vmem [thread:$0]  %s0, 1024, %s21, [#allocation6], 128, 128, 8
    $region5: #{tpu_custom_call.1} parent=1 // pred_fallthru
      _
    // Predicated region
    $region6: #{tpu_custom_call.1} parent=1 // pred_check
      _
    $region7: #{tpu_custom_call.1} parent=1 // pred_check_branch
      %28 = sbr.rel (0) target = $region9
    $region8: #{tpu_custom_call.1} parent=1 // pred_region
      %s30 = ssub.s32 2048, 2048
      %31 = vsyncadd [#allocation9], %s30
      %s32 = sshll.u32 [#allocation8], 4
      %s33 = int_to_ptr.vmem [resolvable:$true] %s32
      %38 = dma.hbm_to_vmem [thread:$0]  %s1, 2048, %s33, [#allocation9], 512, 512, 32
    $region9: #{tpu_custom_call.1} parent=1 // pred_fallthru
      _
    // Predicated region
    $region10: #{tpu_custom_call.1} parent=1 // pred_check
      _
    $region11: #{tpu_custom_call.1} parent=1 // pred_check_branch
      %40 = sbr.rel (0) target = $region13
    $region12: #{tpu_custom_call.1} parent=1 // pred_region
      %s42 = ssub.s32 8192, 8192
      %43 = vsyncadd [#allocation9], %s42
      %s44 = sshll.u32 [#allocation10], 4
      %s45 = int_to_ptr.vmem [resolvable:$true] %s44
      %50 = dma.hbm_to_vmem [thread:$0]  %s2, 8192, %s45, [#allocation9], 512, 512, 32
    $region13: #{tpu_custom_call.1} parent=1 // pred_fallthru
      _
    // Predicated region
    $region14: #{tpu_custom_call.1} parent=1 // pred_check
      _
    $region15: #{tpu_custom_call.1} parent=1 // pred_check_branch
      %52 = sbr.rel (0) target = $region17
    $region16: #{tpu_custom_call.1} parent=1 // pred_region
      _
    $region17: #{tpu_custom_call.1} parent=1 // pred_fallthru
      _
    // Predicated region
    $region18: #{tpu_custom_call.1} parent=1 // pred_check
      _
    $region19: #{tpu_custom_call.1} parent=1 // pred_check_branch
      %54 = sbr.rel (0) target = $region21
    $region20: #{tpu_custom_call.1} parent=1 // pred_region
      %55 = dma.done [#allocation6], 1024
    $region21: #{tpu_custom_call.1} parent=1 // pred_fallthru
      _
    // Predicated region
    $region22: #{tpu_custom_call.1} parent=1 // pred_check
      _
    $region23: #{tpu_custom_call.1} parent=1 // pred_check_branch
      %57 = sbr.rel (0) target = $region25
    $region24: #{tpu_custom_call.1} parent=1 // pred_region
      %58 = dma.done [#allocation9], 2048
    $region25: #{tpu_custom_call.1} parent=1 // pred_fallthru
      _
    // Predicated region
    $region26: #{tpu_custom_call.1} parent=1 // pred_check
      _
    $region27: #{tpu_custom_call.1} parent=1 // pred_check_branch
      %60 = sbr.rel (0) target = $region29
    $region28: #{tpu_custom_call.1} parent=1 // pred_region
      %61 = dma.done [#allocation9], 8192
    $region29: #{tpu_custom_call.1} parent=1 // pred_fallthru
      _
    %p62 = scmp.eq.s32.totalorder 0, 0
    // Predicated region
    $region30: #{tpu_custom_call.1} parent=1 // pred_check
      %p63 = pneg %p62
    $region31: #{tpu_custom_call.1} parent=1 // pred_check_branch
      %65 = sbr.rel (%p63) target = $region33
    $region32: #{tpu_custom_call.1} parent=1 // pred_region
      %66 = vst [vmem:[#allocation3] sm:$0xff] 0.0
      %67 = vst [vmem:[#allocation4] sm:$0xff] 0.0
    $region33: #{tpu_custom_call.1} parent=1 // pred_fallthru
      _
    %v68 = vld [vmem:[#allocation5] sm:$0xff]
    %v69 = vld [vmem:[#allocation5 + $0x8] sm:$0xff]
    %v70 = vld [vmem:[#allocation5 + $0x10] sm:$0xff]
    %v71 = vld [vmem:[#allocation5 + $0x18] sm:$0xff]
    %v72 = vld [vmem:[#allocation5 + $0x20] sm:$0xff]
    %v73 = vld [vmem:[#allocation5 + $0x28] sm:$0xff]
    %v74 = vld [vmem:[#allocation5 + $0x30] sm:$0xff]
    %v75 = vld [vmem:[#allocation5 + $0x38] sm:$0xff]
    %v76 = vld [vmem:[#allocation8] sm:$0xff]
    %v77 = vld [vmem:[#allocation8 + $0x8] sm:$0xff]
    %v78 = vld [vmem:[#allocation8 + $0x10] sm:$0xff]
    %v79 = vld [vmem:[#allocation8 + $0x18] sm:$0xff]
    %v80 = vld [vmem:[#allocation8 + $0x20] sm:$0xff]
    %v81 = vld [vmem:[#allocation8 + $0x28] sm:$0xff]
    %v82 = vld [vmem:[#allocation8 + $0x30] sm:$0xff]
    %v83 = vld [vmem:[#allocation8 + $0x38] sm:$0xff]
    %v84 = vld [vmem:[#allocation8 + $0x40] sm:$0xff]
    %v85 = vld [vmem:[#allocation8 + $0x48] sm:$0xff]
    %v86 = vld [vmem:[#allocation8 + $0x50] sm:$0xff]
    %v87 = vld [vmem:[#allocation8 + $0x58] sm:$0xff]
    %v88 = vld [vmem:[#allocation8 + $0x60] sm:$0xff]
    %v89 = vld [vmem:[#allocation8 + $0x68] sm:$0xff]
    %v90 = vld [vmem:[#allocation8 + $0x70] sm:$0xff]
    %v91 = vld [vmem:[#allocation8 + $0x78] sm:$0xff]
    %v92 = vld [vmem:[%s3] sm:$0xf]
    %v94 = vlaneseq
    %v95 = vshrl.u32 %v94, 7
    %v96 = vsub.s32 0, %v95
    %v97 = vrot.slane %v92, %v96
    %v98 = vlaneseq
    %v99 = vshrl.u32 %v98, 7
    %v100 = vsub.s32 1, %v99
    %v101 = vrot.slane %v92, %v100
    %v102 = vlaneseq
    %v103 = vshrl.u32 %v102, 7
    %v104 = vsub.s32 2, %v103
    %v105 = vrot.slane %v92, %v104
    %v106 = vlaneseq
    %v107 = vshrl.u32 %v106, 7
    %v108 = vsub.s32 3, %v107
    %v109 = vrot.slane %v92, %v108
    %vm114 = vcmask 261120
    %v116 = vsel %vm114, %v68, 0
    %v119 = vsel %vm114, %v69, 0
    %v122 = vsel %vm114, %v70, 0
    %v125 = vsel %vm114, %v71, 0
    %v128 = vsel %vm114, %v72, 0
    %v131 = vsel %vm114, %v73, 0
    %v134 = vsel %vm114, %v74, 0
    %v137 = vsel %vm114, %v75, 0
    %139 = vmatprep.subr.mxu0 %v77
    %140 = vmatpush1.msra.mxu0 %v76
    %141 = vmatprep.subr.mxu0 %v81
    %142 = vmatpush1.msra.mxu0 %v80
    %143 = vmatprep.subr.mxu0 %v85
    %144 = vmatpush1.msra.mxu0 %v84
    %145 = vmatprep.subr.mxu0 %v89
    %146 = vmatpush1.msra.mxu0 %v88
    %147 = vmatprep.subr.mxu0 0.0
    %148 = vmatpush1.msra.mxu0 0.0
    %149 = vmatprep.subr.mxu0 0.0
    %150 = vmatpush1.msra.mxu0 0.0
    %151 = vmatprep.subr.mxu0 0.0
    %152 = vmatpush1.msra.mxu0 0.0
    %153 = vmatprep.subr.mxu0 0.0
    %154 = vmatpush1.msra.mxu0 0.0
    %155 = vmatprep.subr.mxu0 0.0
    %156 = vmatpush1.msra.mxu0 0.0
    %157 = vmatprep.subr.mxu0 0.0
    %158 = vmatpush1.msra.mxu0 0.0
    %159 = vmatprep.subr.mxu0 0.0
    %160 = vmatpush1.msra.mxu0 0.0
    %161 = vmatprep.subr.mxu0 0.0
    %162 = vmatpush1.msra.mxu0 0.0
    %163 = vmatprep.subr.mxu0 0.0
    %164 = vmatpush1.msra.mxu0 0.0
    %165 = vmatprep.subr.mxu0 0.0
    %166 = vmatpush1.msra.mxu0 0.0
    %167 = vmatprep.subr.mxu0 0.0
    %168 = vmatpush1.msra.mxu0 0.0
    %169 = vmatprep.subr.mxu0 0.0
    %170 = vmatpush1.msra.mxu0 0.0
    %171 = vmatprep.subr.mxu0 0.0
    %172 = vmatpush1.msra.mxu0 0.0
    %173 = vmatprep.subr.mxu0 0.0
    %174 = vmatpush1.msra.mxu0 0.0
    %175 = vmatprep.subr.mxu0 0.0
    %176 = vmatpush1.msra.mxu0 0.0
    %177 = vmatprep.subr.mxu0 0.0
    %178 = vmatpush1.msra.mxu0 0.0
    %179 = vmatprep.subr.mxu0 0.0
    %180 = vmatpush1.msra.mxu0 0.0
    %181 = vmatprep.subr.mxu0 0.0
    %182 = vmatpush1.msra.mxu0 0.0
    %183 = vmatprep.subr.mxu0 0.0
    %184 = vmatpush1.msra.mxu0 0.0
    %185 = vmatprep.subr.mxu0 0.0
    %186 = vmatpush1.msra.mxu0 0.0
    %187 = vmatprep.subr.mxu0 0.0
    %188 = vmatpush1.msra.mxu0 0.0
    %189 = vmatprep.subr.mxu0 0.0
    %190 = vmatpush1.msra.mxu0 0.0
    %191 = vmatprep.subr.mxu0 0.0
    %192 = vmatpush1.msra.mxu0 0.0
    %193 = vmatprep.subr.mxu0 0.0
    %194 = vmatpush1.msra.mxu0 0.0
    %195 = vmatprep.subr.mxu0 0.0
    %196 = vmatpush1.msra.mxu0 0.0
    %197 = vmatprep.subr.mxu0 0.0
    %198 = vmatpush1.msra.mxu0 0.0
    %199 = vmatprep.subr.mxu0 0.0
    %200 = vmatpush1.msra.mxu0 0.0
    %201 = vmatprep.subr.mxu0 0.0
    %202 = vmatpush1.msra.mxu0 0.0
    %203 = vmatprep.mubr.f32.mxu0 0.0
    %204 = vmatmul.mubr.f32.gmra.mrb[0].mxu0 %v116
    %v205 = vpop.f32.mrb[0].mxu0
    %v206 = vadd.f32 %v97, %v205
    %v207 = vpop.f32.mrb[0].mxu0
    %v208 = vadd.f32 %v101, %v207
    %209 = vmatprep.mubr.f32.mxu0 0.0
    %210 = vmatmul.mubr.f32.gmra.mrb[0].mxu0 %v119
    %v211 = vpop.f32.mrb[0].mxu0
    %v212 = vadd.f32 %v97, %v211
    %v213 = vpop.f32.mrb[0].mxu0
    %v214 = vadd.f32 %v101, %v213
    %215 = vmatprep.mubr.f32.mxu0 0.0
    %216 = vmatmul.mubr.f32.gmra.mrb[0].mxu0 %v122
    %v217 = vpop.f32.mrb[0].mxu0
    %v218 = vadd.f32 %v97, %v217
    %v219 = vpop.f32.mrb[0].mxu0
    %v220 = vadd.f32 %v101, %v219
    %221 = vmatprep.mubr.f32.mxu0 0.0
    %222 = vmatmul.mubr.f32.gmra.mrb[0].mxu0 %v125
    %v223 = vpop.f32.mrb[0].mxu0
    %v224 = vadd.f32 %v97, %v223
    %v225 = vpop.f32.mrb[0].mxu0
    %v226 = vadd.f32 %v101, %v225
    %227 = vmatprep.mubr.f32.mxu0 0.0
    %228 = vmatmul.mubr.f32.gmra.mrb[0].mxu0 %v128
    %v229 = vpop.f32.mrb[0].mxu0
    %v230 = vadd.f32 %v97, %v229
    %v231 = vpop.f32.mrb[0].mxu0
    %v232 = vadd.f32 %v101, %v231
    %233 = vmatprep.mubr.f32.mxu0 0.0
    %234 = vmatmul.mubr.f32.gmra.mrb[0].mxu0 %v131
    %v235 = vpop.f32.mrb[0].mxu0
    %v236 = vadd.f32 %v97, %v235
    %v237 = vpop.f32.mrb[0].mxu0
    %v238 = vadd.f32 %v101, %v237
    %239 = vmatprep.mubr.f32.mxu0 0.0
    %240 = vmatmul.mubr.f32.gmra.mrb[0].mxu0 %v134
    %v241 = vpop.f32.mrb[0].mxu0
    %v242 = vadd.f32 %v97, %v241
    %v243 = vpop.f32.mrb[0].mxu0
    %v244 = vadd.f32 %v101, %v243
    %245 = vmatprep.mubr.f32.mxu0 0.0
    %246 = vmatmul.mubr.f32.gmra.mrb[0].mxu0 %v137
    %v247 = vpop.f32.mrb[0].mxu0
    %v248 = vadd.f32 %v97, %v247
    %v249 = vpop.f32.mrb[0].mxu0
    %v250 = vadd.f32 %v101, %v249
    %251 = vdwg.mxu0
    %252 = vmatprep.subr.mxu0 %v79
    %253 = vmatpush1.msra.mxu0 %v78
    %254 = vmatprep.subr.mxu0 %v83
    %255 = vmatpush1.msra.mxu0 %v82
    %256 = vmatprep.subr.mxu0 %v87
    %257 = vmatpush1.msra.mxu0 %v86
    %258 = vmatprep.subr.mxu0 %v91
    %259 = vmatpush1.msra.mxu0 %v90
    %260 = vmatprep.subr.mxu0 0.0
    %261 = vmatpush1.msra.mxu0 0.0
    %262 = vmatprep.subr.mxu0 0.0
    %263 = vmatpush1.msra.mxu0 0.0
    %264 = vmatprep.subr.mxu0 0.0
    %265 = vmatpush1.msra.mxu0 0.0
    %266 = vmatprep.subr.mxu0 0.0
    %267 = vmatpush1.msra.mxu0 0.0
    %268 = vmatprep.subr.mxu0 0.0
    %269 = vmatpush1.msra.mxu0 0.0
    %270 = vmatprep.subr.mxu0 0.0
    %271 = vmatpush1.msra.mxu0 0.0
    %272 = vmatprep.subr.mxu0 0.0
    %273 = vmatpush1.msra.mxu0 0.0
    %274 = vmatprep.subr.mxu0 0.0
    %275 = vmatpush1.msra.mxu0 0.0
    %276 = vmatprep.subr.mxu0 0.0
    %277 = vmatpush1.msra.mxu0 0.0
    %278 = vmatprep.subr.mxu0 0.0
    %279 = vmatpush1.msra.mxu0 0.0
    %280 = vmatprep.subr.mxu0 0.0
    %281 = vmatpush1.msra.mxu0 0.0
    %282 = vmatprep.subr.mxu0 0.0
    %283 = vmatpush1.msra.mxu0 0.0
    %284 = vmatprep.subr.mxu0 0.0
    %285 = vmatpush1.msra.mxu0 0.0
    %286 = vmatprep.subr.mxu0 0.0
    %287 = vmatpush1.msra.mxu0 0.0
    %288 = vmatprep.subr.mxu0 0.0
    %289 = vmatpush1.msra.mxu0 0.0
    %290 = vmatprep.subr.mxu0 0.0
    %291 = vmatpush1.msra.mxu0 0.0
    %292 = vmatprep.subr.mxu0 0.0
    %293 = vmatpush1.msra.mxu0 0.0
    %294 = vmatprep.subr.mxu0 0.0
    %295 = vmatpush1.msra.mxu0 0.0
    %296 = vmatprep.subr.mxu0 0.0
    %297 = vmatpush1.msra.mxu0 0.0
    %298 = vmatprep.subr.mxu0 0.0
    %299 = vmatpush1.msra.mxu0 0.0
    %300 = vmatprep.subr.mxu0 0.0
    %301 = vmatpush1.msra.mxu0 0.0
    %302 = vmatprep.subr.mxu0 0.0
    %303 = vmatpush1.msra.mxu0 0.0
    %304 = vmatprep.subr.mxu0 0.0
    %305 = vmatpush1.msra.mxu0 0.0
    %306 = vmatprep.subr.mxu0 0.0
    %307 = vmatpush1.msra.mxu0 0.0
    %308 = vmatprep.subr.mxu0 0.0
    %309 = vmatpush1.msra.mxu0 0.0
    %310 = vmatprep.subr.mxu0 0.0
    %311 = vmatpush1.msra.mxu0 0.0
    %312 = vmatprep.subr.mxu0 0.0
    %313 = vmatpush1.msra.mxu0 0.0
    %314 = vmatprep.subr.mxu0 0.0
    %315 = vmatpush1.msra.mxu0 0.0
    %316 = vmatprep.mubr.f32.mxu0 0.0
    %317 = vmatmul.mubr.f32.gmra.mrb[0].mxu0 %v116
    %v318 = vpop.f32.mrb[0].mxu0
    %v319 = vadd.f32 %v105, %v318
    %v320 = vpop.f32.mrb[0].mxu0
    %v321 = vadd.f32 %v109, %v320
    %322 = vmatprep.mubr.f32.mxu0 0.0
    %323 = vmatmul.mubr.f32.gmra.mrb[0].mxu0 %v119
    %v324 = vpop.f32.mrb[0].mxu0
    %v325 = vadd.f32 %v105, %v324
    %v326 = vpop.f32.mrb[0].mxu0
    %v327 = vadd.f32 %v109, %v326
    %328 = vmatprep.mubr.f32.mxu0 0.0
    %329 = vmatmul.mubr.f32.gmra.mrb[0].mxu0 %v122
    %v330 = vpop.f32.mrb[0].mxu0
    %v331 = vadd.f32 %v105, %v330
    %v332 = vpop.f32.mrb[0].mxu0
    %v333 = vadd.f32 %v109, %v332
    %334 = vmatprep.mubr.f32.mxu0 0.0
    %335 = vmatmul.mubr.f32.gmra.mrb[0].mxu0 %v125
    %v336 = vpop.f32.mrb[0].mxu0
    %v337 = vadd.f32 %v105, %v336
    %v338 = vpop.f32.mrb[0].mxu0
    %v339 = vadd.f32 %v109, %v338
    %340 = vmatprep.mubr.f32.mxu0 0.0
    %341 = vmatmul.mubr.f32.gmra.mrb[0].mxu0 %v128
    %v342 = vpop.f32.mrb[0].mxu0
    %v343 = vadd.f32 %v105, %v342
    %v344 = vpop.f32.mrb[0].mxu0
    %v345 = vadd.f32 %v109, %v344
    %346 = vmatprep.mubr.f32.mxu0 0.0
    %347 = vmatmul.mubr.f32.gmra.mrb[0].mxu0 %v131
    %v348 = vpop.f32.mrb[0].mxu0
    %v349 = vadd.f32 %v105, %v348
    %v350 = vpop.f32.mrb[0].mxu0
    %v351 = vadd.f32 %v109, %v350
    %352 = vmatprep.mubr.f32.mxu0 0.0
    %353 = vmatmul.mubr.f32.gmra.mrb[0].mxu0 %v134
    %v354 = vpop.f32.mrb[0].mxu0
    %v355 = vadd.f32 %v105, %v354
    %v356 = vpop.f32.mrb[0].mxu0
    %v357 = vadd.f32 %v109, %v356
    %358 = vmatprep.mubr.f32.mxu0 0.0
    %359 = vmatmul.mubr.f32.gmra.mrb[0].mxu0 %v137
    %v360 = vpop.f32.mrb[0].mxu0
    %v361 = vadd.f32 %v105, %v360
    %v362 = vpop.f32.mrb[0].mxu0
    %v363 = vadd.f32 %v109, %v362
    %364 = vdwg.mxu0
    %365 = vst [vmem:[#allocation2] sm:$0xff] %v206
    %366 = vst [vmem:[#allocation2 + $0x8] sm:$0xff] %v208
    %367 = vst [vmem:[#allocation2 + $0x10] sm:$0xff] %v319
    %368 = vst [vmem:[#allocation2 + $0x18] sm:$0xff] %v321
    %369 = vst [vmem:[#allocation2 + $0x20] sm:$0xff] %v212
    %370 = vst [vmem:[#allocation2 + $0x28] sm:$0xff] %v214
    %371 = vst [vmem:[#allocation2 + $0x30] sm:$0xff] %v325
    %372 = vst [vmem:[#allocation2 + $0x38] sm:$0xff] %v327
    %373 = vst [vmem:[#allocation2 + $0x40] sm:$0xff] %v218
    %374 = vst [vmem:[#allocation2 + $0x48] sm:$0xff] %v220
    %375 = vst [vmem:[#allocation2 + $0x50] sm:$0xff] %v331
    %376 = vst [vmem:[#allocation2 + $0x58] sm:$0xff] %v333
    %377 = vst [vmem:[#allocation2 + $0x60] sm:$0xff] %v224
    %378 = vst [vmem:[#allocation2 + $0x68] sm:$0xff] %v226
    %379 = vst [vmem:[#allocation2 + $0x70] sm:$0xff] %v337
    %380 = vst [vmem:[#allocation2 + $0x78] sm:$0xff] %v339
    %381 = vst [vmem:[#allocation2 + $0x80] sm:$0xff] %v230
    %382 = vst [vmem:[#allocation2 + $0x88] sm:$0xff] %v232
    %383 = vst [vmem:[#allocation2 + $0x90] sm:$0xff] %v343
    %384 = vst [vmem:[#allocation2 + $0x98] sm:$0xff] %v345
    %385 = vst [vmem:[#allocation2 + $0xa0] sm:$0xff] %v236
    %386 = vst [vmem:[#allocation2 + $0xa8] sm:$0xff] %v238
    %387 = vst [vmem:[#allocation2 + $0xb0] sm:$0xff] %v349
    %388 = vst [vmem:[#allocation2 + $0xb8] sm:$0xff] %v351
    %389 = vst [vmem:[#allocation2 + $0xc0] sm:$0xff] %v242
    %390 = vst [vmem:[#allocation2 + $0xc8] sm:$0xff] %v244
    %391 = vst [vmem:[#allocation2 + $0xd0] sm:$0xff] %v355
    %392 = vst [vmem:[#allocation2 + $0xd8] sm:$0xff] %v357
    %393 = vst [vmem:[#allocation2 + $0xe0] sm:$0xff] %v248
    %394 = vst [vmem:[#allocation2 + $0xe8] sm:$0xff] %v250
    %395 = vst [vmem:[#allocation2 + $0xf0] sm:$0xff] %v361
    %396 = vst [vmem:[#allocation2 + $0xf8] sm:$0xff] %v363
    %v397 = vld [vmem:[#allocation2] sm:$0xff]
    %v398 = vld [vmem:[#allocation2 + $0x8] sm:$0xff]
    %v399 = vld [vmem:[#allocation2 + $0x10] sm:$0xff]
    %v400 = vld [vmem:[#allocation2 + $0x18] sm:$0xff]
    %v401 = vld [vmem:[#allocation3] sm:$0xff]
    %v402 = vld [vmem:[#allocation10] sm:$0xff]
    %v403 = vld [vmem:[#allocation10 + $0x8] sm:$0xff]
    %v404 = vld [vmem:[#allocation10 + $0x10] sm:$0xff]
    %v405 = vld [vmem:[#allocation10 + $0x18] sm:$0xff]
    %v406 = vld [vmem:[#allocation10 + $0x20] sm:$0xff]
    %v407 = vld [vmem:[#allocation10 + $0x28] sm:$0xff]
    %v408 = vld [vmem:[#allocation10 + $0x30] sm:$0xff]
    %v409 = vld [vmem:[#allocation10 + $0x38] sm:$0xff]
    %v410 = vld [vmem:[#allocation10 + $0x40] sm:$0xff]
    %v411 = vld [vmem:[#allocation10 + $0x48] sm:$0xff]
    %v412 = vld [vmem:[#allocation10 + $0x50] sm:$0xff]
    %v413 = vld [vmem:[#allocation10 + $0x58] sm:$0xff]
    %v414 = vld [vmem:[#allocation10 + $0x60] sm:$0xff]
    %v415 = vld [vmem:[#allocation10 + $0x68] sm:$0xff]
    %v416 = vld [vmem:[#allocation10 + $0x70] sm:$0xff]
    %v417 = vld [vmem:[#allocation10 + $0x78] sm:$0xff]
    %v418 = vld [vmem:[#allocation10 + $0x80] sm:$0xff]
    %v419 = vld [vmem:[#allocation10 + $0x88] sm:$0xff]
    %v420 = vld [vmem:[#allocation10 + $0x90] sm:$0xff]
    %v421 = vld [vmem:[#allocation10 + $0x98] sm:$0xff]
    %v422 = vld [vmem:[#allocation10 + $0xa0] sm:$0xff]
    %v423 = vld [vmem:[#allocation10 + $0xa8] sm:$0xff]
    %v424 = vld [vmem:[#allocation10 + $0xb0] sm:$0xff]
    %v425 = vld [vmem:[#allocation10 + $0xb8] sm:$0xff]
    %v426 = vld [vmem:[#allocation10 + $0xc0] sm:$0xff]
    %v427 = vld [vmem:[#allocation10 + $0xc8] sm:$0xff]
    %v428 = vld [vmem:[#allocation10 + $0xd0] sm:$0xff]
    %v429 = vld [vmem:[#allocation10 + $0xd8] sm:$0xff]
    %v430 = vld [vmem:[#allocation10 + $0xe0] sm:$0xff]
    %v431 = vld [vmem:[#allocation10 + $0xe8] sm:$0xff]
    %v432 = vld [vmem:[#allocation10 + $0xf0] sm:$0xff]
    %v433 = vld [vmem:[#allocation10 + $0xf8] sm:$0xff]
    %v434 = vld [vmem:[#allocation10 + $0x100] sm:$0xff]
    %v435 = vld [vmem:[#allocation10 + $0x108] sm:$0xff]
    %v436 = vld [vmem:[#allocation10 + $0x110] sm:$0xff]
    %v437 = vld [vmem:[#allocation10 + $0x118] sm:$0xff]
    %v438 = vld [vmem:[#allocation10 + $0x120] sm:$0xff]
    %v439 = vld [vmem:[#allocation10 + $0x128] sm:$0xff]
    %v440 = vld [vmem:[#allocation10 + $0x130] sm:$0xff]
    %v441 = vld [vmem:[#allocation10 + $0x138] sm:$0xff]
    %v442 = vld [vmem:[#allocation10 + $0x140] sm:$0xff]
    %v443 = vld [vmem:[#allocation10 + $0x148] sm:$0xff]
    %v444 = vld [vmem:[#allocation10 + $0x150] sm:$0xff]
    %v445 = vld [vmem:[#allocation10 + $0x158] sm:$0xff]
    %v446 = vld [vmem:[#allocation10 + $0x160] sm:$0xff]
    %v447 = vld [vmem:[#allocation10 + $0x168] sm:$0xff]
    %v448 = vld [vmem:[#allocation10 + $0x170] sm:$0xff]
    %v449 = vld [vmem:[#allocation10 + $0x178] sm:$0xff]
    %v450 = vld [vmem:[#allocation10 + $0x180] sm:$0xff]
    %v451 = vld [vmem:[#allocation10 + $0x188] sm:$0xff]
    %v452 = vld [vmem:[#allocation10 + $0x190] sm:$0xff]
    %v453 = vld [vmem:[#allocation10 + $0x198] sm:$0xff]
    %v454 = vld [vmem:[#allocation10 + $0x1a0] sm:$0xff]
    %v455 = vld [vmem:[#allocation10 + $0x1a8] sm:$0xff]
    %v456 = vld [vmem:[#allocation10 + $0x1b0] sm:$0xff]
    %v457 = vld [vmem:[#allocation10 + $0x1b8] sm:$0xff]
    %v458 = vld [vmem:[#allocation10 + $0x1c0] sm:$0xff]
    %v459 = vld [vmem:[#allocation10 + $0x1c8] sm:$0xff]
    %v460 = vld [vmem:[#allocation10 + $0x1d0] sm:$0xff]
    %v461 = vld [vmem:[#allocation10 + $0x1d8] sm:$0xff]
    %v462 = vld [vmem:[#allocation10 + $0x1e0] sm:$0xff]
    %v463 = vld [vmem:[#allocation10 + $0x1e8] sm:$0xff]
    %v464 = vld [vmem:[#allocation10 + $0x1f0] sm:$0xff]
    %v465 = vld [vmem:[#allocation10 + $0x1f8] sm:$0xff]
    %466 = vmatprep.subr.mxu0 %v403
    %467 = vmatpush1.msra.mxu0 %v402
    %468 = vmatprep.subr.mxu0 %v407
    %469 = vmatpush1.msra.mxu0 %v406
    %470 = vmatprep.subr.mxu0 %v411
    %471 = vmatpush1.msra.mxu0 %v410
    %472 = vmatprep.subr.mxu0 %v415
    %473 = vmatpush1.msra.mxu0 %v414
    %474 = vmatprep.subr.mxu0 %v419
    %475 = vmatpush1.msra.mxu0 %v418
    %476 = vmatprep.subr.mxu0 %v423
    %477 = vmatpush1.msra.mxu0 %v422
    %478 = vmatprep.subr.mxu0 %v427
    %479 = vmatpush1.msra.mxu0 %v426
    %480 = vmatprep.subr.mxu0 %v431
    %481 = vmatpush1.msra.mxu0 %v430
    %482 = vmatprep.subr.mxu0 %v435
    %483 = vmatpush1.msra.mxu0 %v434
    %484 = vmatprep.subr.mxu0 %v439
    %485 = vmatpush1.msra.mxu0 %v438
    %486 = vmatprep.subr.mxu0 %v443
    %487 = vmatpush1.msra.mxu0 %v442
    %488 = vmatprep.subr.mxu0 %v447
    %489 = vmatpush1.msra.mxu0 %v446
    %490 = vmatprep.subr.mxu0 %v451
    %491 = vmatpush1.msra.mxu0 %v450
    %492 = vmatprep.subr.mxu0 %v455
    %493 = vmatpush1.msra.mxu0 %v454
    %494 = vmatprep.subr.mxu0 %v459
    %495 = vmatpush1.msra.mxu0 %v458
    %496 = vmatprep.subr.mxu0 %v463
    %497 = vmatpush1.msra.mxu0 %v462
    %498 = vmatprep.subr.mxu0 0.0
    %499 = vmatpush1.msra.mxu0 0.0
    %500 = vmatprep.subr.mxu0 0.0
    %501 = vmatpush1.msra.mxu0 0.0
    %502 = vmatprep.subr.mxu0 0.0
    %503 = vmatpush1.msra.mxu0 0.0
    %504 = vmatprep.subr.mxu0 0.0
    %505 = vmatpush1.msra.mxu0 0.0
    %506 = vmatprep.subr.mxu0 0.0
    %507 = vmatpush1.msra.mxu0 0.0
    %508 = vmatprep.subr.mxu0 0.0
    %509 = vmatpush1.msra.mxu0 0.0
    %510 = vmatprep.subr.mxu0 0.0
    %511 = vmatpush1.msra.mxu0 0.0
    %512 = vmatprep.subr.mxu0 0.0
    %513 = vmatpush1.msra.mxu0 0.0
    %514 = vmatprep.subr.mxu0 0.0
    %515 = vmatpush1.msra.mxu0 0.0
    %516 = vmatprep.subr.mxu0 0.0
    %517 = vmatpush1.msra.mxu0 0.0
    %518 = vmatprep.subr.mxu0 0.0
    %519 = vmatpush1.msra.mxu0 0.0
    %520 = vmatprep.subr.mxu0 0.0
    %521 = vmatpush1.msra.mxu0 0.0
    %522 = vmatprep.subr.mxu0 0.0
    %523 = vmatpush1.msra.mxu0 0.0
    %524 = vmatprep.subr.mxu0 0.0
    %525 = vmatpush1.msra.mxu0 0.0
    %526 = vmatprep.subr.mxu0 0.0
    %527 = vmatpush1.msra.mxu0 0.0
    %528 = vmatprep.subr.mxu0 0.0
    %529 = vmatpush1.msra.mxu0 0.0
    %530 = vmatprep.mubr.f32.mxu0 0.0
    %531 = vmatmul.mubr.f32.gmra.mrb[0].mxu0 %v401
    %v532 = vpop.f32.mrb[0].mxu0
    %v533 = vadd.f32 0.0, %v532
    %v534 = vpop.f32.mrb[0].mxu0
    %v535 = vadd.f32 0.0, %v534
    %536 = vdwg.mxu0
    %537 = vmatprep.subr.mxu0 %v405
    %538 = vmatpush1.msra.mxu0 %v404
    %539 = vmatprep.subr.mxu0 %v409
    %540 = vmatpush1.msra.mxu0 %v408
    %541 = vmatprep.subr.mxu0 %v413
    %542 = vmatpush1.msra.mxu0 %v412
    %543 = vmatprep.subr.mxu0 %v417
    %544 = vmatpush1.msra.mxu0 %v416
    %545 = vmatprep.subr.mxu0 %v421
    %546 = vmatpush1.msra.mxu0 %v420
    %547 = vmatprep.subr.mxu0 %v425
    %548 = vmatpush1.msra.mxu0 %v424
    %549 = vmatprep.subr.mxu0 %v429
    %550 = vmatpush1.msra.mxu0 %v428
    %551 = vmatprep.subr.mxu0 %v433
    %552 = vmatpush1.msra.mxu0 %v432
    %553 = vmatprep.subr.mxu0 %v437
    %554 = vmatpush1.msra.mxu0 %v436
    %555 = vmatprep.subr.mxu0 %v441
    %556 = vmatpush1.msra.mxu0 %v440
    %557 = vmatprep.subr.mxu0 %v445
    %558 = vmatpush1.msra.mxu0 %v444
    %559 = vmatprep.subr.mxu0 %v449
    %560 = vmatpush1.msra.mxu0 %v448
    %561 = vmatprep.subr.mxu0 %v453
    %562 = vmatpush1.msra.mxu0 %v452
    %563 = vmatprep.subr.mxu0 %v457
    %564 = vmatpush1.msra.mxu0 %v456
    %565 = vmatprep.subr.mxu0 %v461
    %566 = vmatpush1.msra.mxu0 %v460
    %567 = vmatprep.subr.mxu0 %v465
    %568 = vmatpush1.msra.mxu0 %v464
    %569 = vmatprep.subr.mxu0 0.0
    %570 = vmatpush1.msra.mxu0 0.0
    %571 = vmatprep.subr.mxu0 0.0
    %572 = vmatpush1.msra.mxu0 0.0
    %573 = vmatprep.subr.mxu0 0.0
    %574 = vmatpush1.msra.mxu0 0.0
    %575 = vmatprep.subr.mxu0 0.0
    %576 = vmatpush1.msra.mxu0 0.0
    %577 = vmatprep.subr.mxu0 0.0
    %578 = vmatpush1.msra.mxu0 0.0
    %579 = vmatprep.subr.mxu0 0.0
    %580 = vmatpush1.msra.mxu0 0.0
    %581 = vmatprep.subr.mxu0 0.0
    %582 = vmatpush1.msra.mxu0 0.0
    %583 = vmatprep.subr.mxu0 0.0
    %584 = vmatpush1.msra.mxu0 0.0
    %585 = vmatprep.subr.mxu0 0.0
    %586 = vmatpush1.msra.mxu0 0.0
    %587 = vmatprep.subr.mxu0 0.0
    %588 = vmatpush1.msra.mxu0 0.0
    %589 = vmatprep.subr.mxu0 0.0
    %590 = vmatpush1.msra.mxu0 0.0
    %591 = vmatprep.subr.mxu0 0.0
    %592 = vmatpush1.msra.mxu0 0.0
    %593 = vmatprep.subr.mxu0 0.0
    %594 = vmatpush1.msra.mxu0 0.0
    %595 = vmatprep.subr.mxu0 0.0
    %596 = vmatpush1.msra.mxu0 0.0
    %597 = vmatprep.subr.mxu0 0.0
    %598 = vmatpush1.msra.mxu0 0.0
    %599 = vmatprep.subr.mxu0 0.0
    %600 = vmatpush1.msra.mxu0 0.0
    %601 = vmatprep.mubr.f32.mxu0 0.0
    %602 = vmatmul.mubr.f32.gmra.mrb[0].mxu0 %v401
    %v603 = vpop.f32.mrb[0].mxu0
    %v604 = vadd.f32 0.0, %v603
    %v605 = vpop.f32.mrb[0].mxu0
    %v606 = vadd.f32 0.0, %v605
    %607 = vdwg.mxu0
    %v608 = vadd.f32 %v397, %v533
    %v609 = vadd.f32 %v398, %v535
    %v610 = vadd.f32 %v399, %v604
    %v611 = vadd.f32 %v400, %v606
    %v612 = vxor.u32 %v608, 2147483648
    %v613 = vmul.f32 %v612, 1.442695
    %v614 = vpow.pop %v613
    %v615 = vadd.f32 %v614, 1.0
    %v616 = vrcp.pop %v615
    %v617 = vmul.f32 1.0, %v616
    %v618 = vxor.u32 %v609, 2147483648
    %v619 = vmul.f32 %v618, 1.442695
    %v620 = vpow.pop %v619
    %v621 = vadd.f32 %v620, 1.0
    %v622 = vrcp.pop %v621
    %v623 = vmul.f32 1.0, %v622
    %v624 = vtanh.pop %v610
    %v625 = vxor.u32 %v611, 2147483648
    %v626 = vmul.f32 %v625, 1.442695
    %v627 = vpow.pop %v626
    %v628 = vadd.f32 %v627, 1.0
    %v629 = vrcp.pop %v628
    %v630 = vmul.f32 1.0, %v629
    %v631 = vld [vmem:[#allocation4] sm:$0xff]
    %v632 = vmul.f32 %v623, %v631
    %v633 = vmul.f32 %v617, %v624
    %v634 = vadd.f32 %v632, %v633
    %v635 = vtanh.pop %v634
    %v636 = vmul.f32 %v630, %v635
    %637 = vst [vmem:[#allocation4] sm:$0xff] %v634
    %638 = vst [vmem:[#allocation3] sm:$0xff] %v636
    %s639 = scalar_lea.vmem [#allocation2], 32
    %v640 = vld [vmem:[%s639] sm:$0xff]
    %v641 = vld [vmem:[%s639 + $0x8] sm:$0xff]
    %v642 = vld [vmem:[%s639 + $0x10] sm:$0xff]
    %v643 = vld [vmem:[%s639 + $0x18] sm:$0xff]
    %v644 = vld [vmem:[#allocation3] sm:$0xff]
    %v645 = vld [vmem:[#allocation10] sm:$0xff]
    %v646 = vld [vmem:[#allocation10 + $0x8] sm:$0xff]
    %v647 = vld [vmem:[#allocation10 + $0x10] sm:$0xff]
    %v648 = vld [vmem:[#allocation10 + $0x18] sm:$0xff]
    %v649 = vld [vmem:[#allocation10 + $0x20] sm:$0xff]
    %v650 = vld [vmem:[#allocation10 + $0x28] sm:$0xff]
    %v651 = vld [vmem:[#allocation10 + $0x30] sm:$0xff]
    %v652 = vld [vmem:[#allocation10 + $0x38] sm:$0xff]
    %v653 = vld [vmem:[#allocation10 + $0x40] sm:$0xff]
    %v654 = vld [vmem:[#allocation10 + $0x48] sm:$0xff]
    %v655 = vld [vmem:[#allocation10 + $0x50] sm:$0xff]
    %v656 = vld [vmem:[#allocation10 + $0x58] sm:$0xff]
    %v657 = vld [vmem:[#allocation10 + $0x60] sm:$0xff]
    %v658 = vld [vmem:[#allocation10 + $0x68] sm:$0xff]
    %v659 = vld [vmem:[#allocation10 + $0x70] sm:$0xff]
    %v660 = vld [vmem:[#allocation10 + $0x78] sm:$0xff]
    %v661 = vld [vmem:[#allocation10 + $0x80] sm:$0xff]
    %v662 = vld [vmem:[#allocation10 + $0x88] sm:$0xff]
    %v663 = vld [vmem:[#allocation10 + $0x90] sm:$0xff]
    %v664 = vld [vmem:[#allocation10 + $0x98] sm:$0xff]
    %v665 = vld [vmem:[#allocation10 + $0xa0] sm:$0xff]
    %v666 = vld [vmem:[#allocation10 + $0xa8] sm:$0xff]
    %v667 = vld [vmem:[#allocation10 + $0xb0] sm:$0xff]
    %v668 = vld [vmem:[#allocation10 + $0xb8] sm:$0xff]
    %v669 = vld [vmem:[#allocation10 + $0xc0] sm:$0xff]
    %v670 = vld [vmem:[#allocation10 + $0xc8] sm:$0xff]
    %v671 = vld [vmem:[#allocation10 + $0xd0] sm:$0xff]
    %v672 = vld [vmem:[#allocation10 + $0xd8] sm:$0xff]
    %v673 = vld [vmem:[#allocation10 + $0xe0] sm:$0xff]
    %v674 = vld [vmem:[#allocation10 + $0xe8] sm:$0xff]
    %v675 = vld [vmem:[#allocation10 + $0xf0] sm:$0xff]
    %v676 = vld [vmem:[#allocation10 + $0xf8] sm:$0xff]
    %v677 = vld [vmem:[#allocation10 + $0x100] sm:$0xff]
    %v678 = vld [vmem:[#allocation10 + $0x108] sm:$0xff]
    %v679 = vld [vmem:[#allocation10 + $0x110] sm:$0xff]
    %v680 = vld [vmem:[#allocation10 + $0x118] sm:$0xff]
    %v681 = vld [vmem:[#allocation10 + $0x120] sm:$0xff]
    %v682 = vld [vmem:[#allocation10 + $0x128] sm:$0xff]
    %v683 = vld [vmem:[#allocation10 + $0x130] sm:$0xff]
    %v684 = vld [vmem:[#allocation10 + $0x138] sm:$0xff]
    %v685 = vld [vmem:[#allocation10 + $0x140] sm:$0xff]
    %v686 = vld [vmem:[#allocation10 + $0x148] sm:$0xff]
    %v687 = vld [vmem:[#allocation10 + $0x150] sm:$0xff]
    %v688 = vld [vmem:[#allocation10 + $0x158] sm:$0xff]
    %v689 = vld [vmem:[#allocation10 + $0x160] sm:$0xff]
    %v690 = vld [vmem:[#allocation10 + $0x168] sm:$0xff]
    %v691 = vld [vmem:[#allocation10 + $0x170] sm:$0xff]
    %v692 = vld [vmem:[#allocation10 + $0x178] sm:$0xff]
    %v693 = vld [vmem:[#allocation10 + $0x180] sm:$0xff]
    %v694 = vld [vmem:[#allocation10 + $0x188] sm:$0xff]
    %v695 = vld [vmem:[#allocation10 + $0x190] sm:$0xff]
    %v696 = vld [vmem:[#allocation10 + $0x198] sm:$0xff]
    %v697 = vld [vmem:[#allocation10 + $0x1a0] sm:$0xff]
    %v698 = vld [vmem:[#allocation10 + $0x1a8] sm:$0xff]
    %v699 = vld [vmem:[#allocation10 + $0x1b0] sm:$0xff]
    %v700 = vld [vmem:[#allocation10 + $0x1b8] sm:$0xff]
    %v701 = vld [vmem:[#allocation10 + $0x1c0] sm:$0xff]
    %v702 = vld [vmem:[#allocation10 + $0x1c8] sm:$0xff]
    %v703 = vld [vmem:[#allocation10 + $0x1d0] sm:$0xff]
    %v704 = vld [vmem:[#allocation10 + $0x1d8] sm:$0xff]
    %v705 = vld [vmem:[#allocation10 + $0x1e0] sm:$0xff]
    %v706 = vld [vmem:[#allocation10 + $0x1e8] sm:$0xff]
    %v707 = vld [vmem:[#allocation10 + $0x1f0] sm:$0xff]
    %v708 = vld [vmem:[#allocation10 + $0x1f8] sm:$0xff]
    %709 = vmatprep.subr.mxu0 %v646
    %710 = vmatpush1.msra.mxu0 %v645
    %711 = vmatprep.subr.mxu0 %v650
    %712 = vmatpush1.msra.mxu0 %v649
    %713 = vmatprep.subr.mxu0 %v654
    %714 = vmatpush1.msra.mxu0 %v653
    %715 = vmatprep.subr.mxu0 %v658
    %716 = vmatpush1.msra.mxu0 %v657
    %717 = vmatprep.subr.mxu0 %v662
    %718 = vmatpush1.msra.mxu0 %v661
    %719 = vmatprep.subr.mxu0 %v666
    %720 = vmatpush1.msra.mxu0 %v665
    %721 = vmatprep.subr.mxu0 %v670
    %722 = vmatpush1.msra.mxu0 %v669
    %723 = vmatprep.subr.mxu0 %v674
    %724 = vmatpush1.msra.mxu0 %v673
    %725 = vmatprep.subr.mxu0 %v678
    %726 = vmatpush1.msra.mxu0 %v677
    %727 = vmatprep.subr.mxu0 %v682
    %728 = vmatpush1.msra.mxu0 %v681
    %729 = vmatprep.subr.mxu0 %v686
    %730 = vmatpush1.msra.mxu0 %v685
    %731 = vmatprep.subr.mxu0 %v690
    %732 = vmatpush1.msra.mxu0 %v689
    %733 = vmatprep.subr.mxu0 %v694
    %734 = vmatpush1.msra.mxu0 %v693
    %735 = vmatprep.subr.mxu0 %v698
    %736 = vmatpush1.msra.mxu0 %v697
    %737 = vmatprep.subr.mxu0 %v702
    %738 = vmatpush1.msra.mxu0 %v701
    %739 = vmatprep.subr.mxu0 %v706
    %740 = vmatpush1.msra.mxu0 %v705
    %741 = vmatprep.subr.mxu0 0.0
    %742 = vmatpush1.msra.mxu0 0.0
    %743 = vmatprep.subr.mxu0 0.0
    %744 = vmatpush1.msra.mxu0 0.0
    %745 = vmatprep.subr.mxu0 0.0
    %746 = vmatpush1.msra.mxu0 0.0
    %747 = vmatprep.subr.mxu0 0.0
    %748 = vmatpush1.msra.mxu0 0.0
    %749 = vmatprep.subr.mxu0 0.0
    %750 = vmatpush1.msra.mxu0 0.0
    %751 = vmatprep.subr.mxu0 0.0
    %752 = vmatpush1.msra.mxu0 0.0
    %753 = vmatprep.subr.mxu0 0.0
    %754 = vmatpush1.msra.mxu0 0.0
    %755 = vmatprep.subr.mxu0 0.0
    %756 = vmatpush1.msra.mxu0 0.0
    %757 = vmatprep.subr.mxu0 0.0
    %758 = vmatpush1.msra.mxu0 0.0
    %759 = vmatprep.subr.mxu0 0.0
    %760 = vmatpush1.msra.mxu0 0.0
    %761 = vmatprep.subr.mxu0 0.0
    %762 = vmatpush1.msra.mxu0 0.0
    %763 = vmatprep.subr.mxu0 0.0
    %764 = vmatpush1.msra.mxu0 0.0
    %765 = vmatprep.subr.mxu0 0.0
    %766 = vmatpush1.msra.mxu0 0.0
    %767 = vmatprep.subr.mxu0 0.0
    %768 = vmatpush1.msra.mxu0 0.0
    %769 = vmatprep.subr.mxu0 0.0
    %770 = vmatpush1.msra.mxu0 0.0
    %771 = vmatprep.subr.mxu0 0.0
    %772 = vmatpush1.msra.mxu0 0.0
    %773 = vmatprep.mubr.f32.mxu0 0.0
    %774 = vmatmul.mubr.f32.gmra.mrb[0].mxu0 %v644
    %v775 = vpop.f32.mrb[0].mxu0
    %v776 = vadd.f32 0.0, %v775
    %v777 = vpop.f32.mrb[0].mxu0
    %v778 = vadd.f32 0.0, %v777
    %779 = vdwg.mxu0
    %780 = vmatprep.subr.mxu0 %v648
    %781 = vmatpush1.msra.mxu0 %v647
    %782 = vmatprep.subr.mxu0 %v652
    %783 = vmatpush1.msra.mxu0 %v651
    %784 = vmatprep.subr.mxu0 %v656
    %785 = vmatpush1.msra.mxu0 %v655
    %786 = vmatprep.subr.mxu0 %v660
    %787 = vmatpush1.msra.mxu0 %v659
    %788 = vmatprep.subr.mxu0 %v664
    %789 = vmatpush1.msra.mxu0 %v663
    %790 = vmatprep.subr.mxu0 %v668
    %791 = vmatpush1.msra.mxu0 %v667
    %792 = vmatprep.subr.mxu0 %v672
    %793 = vmatpush1.msra.mxu0 %v671
    %794 = vmatprep.subr.mxu0 %v676
    %795 = vmatpush1.msra.mxu0 %v675
    %796 = vmatprep.subr.mxu0 %v680
    %797 = vmatpush1.msra.mxu0 %v679
    %798 = vmatprep.subr.mxu0 %v684
    %799 = vmatpush1.msra.mxu0 %v683
    %800 = vmatprep.subr.mxu0 %v688
    %801 = vmatpush1.msra.mxu0 %v687
    %802 = vmatprep.subr.mxu0 %v692
    %803 = vmatpush1.msra.mxu0 %v691
    %804 = vmatprep.subr.mxu0 %v696
    %805 = vmatpush1.msra.mxu0 %v695
    %806 = vmatprep.subr.mxu0 %v700
    %807 = vmatpush1.msra.mxu0 %v699
    %808 = vmatprep.subr.mxu0 %v704
    %809 = vmatpush1.msra.mxu0 %v703
    %810 = vmatprep.subr.mxu0 %v708
    %811 = vmatpush1.msra.mxu0 %v707
    %812 = vmatprep.subr.mxu0 0.0
    %813 = vmatpush1.msra.mxu0 0.0
    %814 = vmatprep.subr.mxu0 0.0
    %815 = vmatpush1.msra.mxu0 0.0
    %816 = vmatprep.subr.mxu0 0.0
    %817 = vmatpush1.msra.mxu0 0.0
    %818 = vmatprep.subr.mxu0 0.0
    %819 = vmatpush1.msra.mxu0 0.0
    %820 = vmatprep.subr.mxu0 0.0
    %821 = vmatpush1.msra.mxu0 0.0
    %822 = vmatprep.subr.mxu0 0.0
    %823 = vmatpush1.msra.mxu0 0.0
    %824 = vmatprep.subr.mxu0 0.0
    %825 = vmatpush1.msra.mxu0 0.0
    %826 = vmatprep.subr.mxu0 0.0
    %827 = vmatpush1.msra.mxu0 0.0
    %828 = vmatprep.subr.mxu0 0.0
    %829 = vmatpush1.msra.mxu0 0.0
    %830 = vmatprep.subr.mxu0 0.0
    %831 = vmatpush1.msra.mxu0 0.0
    %832 = vmatprep.subr.mxu0 0.0
    %833 = vmatpush1.msra.mxu0 0.0
    %834 = vmatprep.subr.mxu0 0.0
    %835 = vmatpush1.msra.mxu0 0.0
    %836 = vmatprep.subr.mxu0 0.0
    %837 = vmatpush1.msra.mxu0 0.0
    %838 = vmatprep.subr.mxu0 0.0
    %839 = vmatpush1.msra.mxu0 0.0
    %840 = vmatprep.subr.mxu0 0.0
    %841 = vmatpush1.msra.mxu0 0.0
    %842 = vmatprep.subr.mxu0 0.0
    %843 = vmatpush1.msra.mxu0 0.0
    %844 = vmatprep.mubr.f32.mxu0 0.0
    %845 = vmatmul.mubr.f32.gmra.mrb[0].mxu0 %v644
    %v846 = vpop.f32.mrb[0].mxu0
    %v847 = vadd.f32 0.0, %v846
    %v848 = vpop.f32.mrb[0].mxu0
    %v849 = vadd.f32 0.0, %v848
    %850 = vdwg.mxu0
    %v851 = vadd.f32 %v640, %v776
    %v852 = vadd.f32 %v641, %v778
    %v853 = vadd.f32 %v642, %v847
    %v854 = vadd.f32 %v643, %v849
    %v855 = vxor.u32 %v851, 2147483648
    %v856 = vmul.f32 %v855, 1.442695
    %v857 = vpow.pop %v856
    %v858 = vadd.f32 %v857, 1.0
    %v859 = vrcp.pop %v858
    %v860 = vmul.f32 1.0, %v859
    %v861 = vxor.u32 %v852, 2147483648
    %v862 = vmul.f32 %v861, 1.442695
    %v863 = vpow.pop %v862
    %v864 = vadd.f32 %v863, 1.0
    %v865 = vrcp.pop %v864
    %v866 = vmul.f32 1.0, %v865
    %v867 = vtanh.pop %v853
    %v868 = vxor.u32 %v854, 2147483648
    %v869 = vmul.f32 %v868, 1.442695
    %v870 = vpow.pop %v869
    %v871 = vadd.f32 %v870, 1.0
    %v872 = vrcp.pop %v871
    %v873 = vmul.f32 1.0, %v872
    %v874 = vld [vmem:[#allocation4] sm:$0xff]
    %v875 = vmul.f32 %v866, %v874
    %v876 = vmul.f32 %v860, %v867
    %v877 = vadd.f32 %v875, %v876
    %v878 = vtanh.pop %v877
    %v879 = vmul.f32 %v873, %v878
    %880 = vst [vmem:[#allocation4] sm:$0xff] %v877
    %881 = vst [vmem:[#allocation3] sm:$0xff] %v879
    %s882 = scalar_lea.vmem [#allocation2], 64
    %v883 = vld [vmem:[%s882] sm:$0xff]
    %v884 = vld [vmem:[%s882 + $0x8] sm:$0xff]
    %v885 = vld [vmem:[%s882 + $0x10] sm:$0xff]
    %v886 = vld [vmem:[%s882 + $0x18] sm:$0xff]
    %v887 = vld [vmem:[#allocation3] sm:$0xff]
    %v888 = vld [vmem:[#allocation10] sm:$0xff]
    %v889 = vld [vmem:[#allocation10 + $0x8] sm:$0xff]
    %v890 = vld [vmem:[#allocation10 + $0x10] sm:$0xff]
    %v891 = vld [vmem:[#allocation10 + $0x18] sm:$0xff]
    %v892 = vld [vmem:[#allocation10 + $0x20] sm:$0xff]
    %v893 = vld [vmem:[#allocation10 + $0x28] sm:$0xff]
    %v894 = vld [vmem:[#allocation10 + $0x30] sm:$0xff]
    %v895 = vld [vmem:[#allocation10 + $0x38] sm:$0xff]
    %v896 = vld [vmem:[#allocation10 + $0x40] sm:$0xff]
    %v897 = vld [vmem:[#allocation10 + $0x48] sm:$0xff]
    %v898 = vld [vmem:[#allocation10 + $0x50] sm:$0xff]
    %v899 = vld [vmem:[#allocation10 + $0x58] sm:$0xff]
    %v900 = vld [vmem:[#allocation10 + $0x60] sm:$0xff]
    %v901 = vld [vmem:[#allocation10 + $0x68] sm:$0xff]
    %v902 = vld [vmem:[#allocation10 + $0x70] sm:$0xff]
    %v903 = vld [vmem:[#allocation10 + $0x78] sm:$0xff]
    %v904 = vld [vmem:[#allocation10 + $0x80] sm:$0xff]
    %v905 = vld [vmem:[#allocation10 + $0x88] sm:$0xff]
    %v906 = vld [vmem:[#allocation10 + $0x90] sm:$0xff]
    %v907 = vld [vmem:[#allocation10 + $0x98] sm:$0xff]
    %v908 = vld [vmem:[#allocation10 + $0xa0] sm:$0xff]
    %v909 = vld [vmem:[#allocation10 + $0xa8] sm:$0xff]
    %v910 = vld [vmem:[#allocation10 + $0xb0] sm:$0xff]
    %v911 = vld [vmem:[#allocation10 + $0xb8] sm:$0xff]
    %v912 = vld [vmem:[#allocation10 + $0xc0] sm:$0xff]
    %v913 = vld [vmem:[#allocation10 + $0xc8] sm:$0xff]
    %v914 = vld [vmem:[#allocation10 + $0xd0] sm:$0xff]
    %v915 = vld [vmem:[#allocation10 + $0xd8] sm:$0xff]
    %v916 = vld [vmem:[#allocation10 + $0xe0] sm:$0xff]
    %v917 = vld [vmem:[#allocation10 + $0xe8] sm:$0xff]
    %v918 = vld [vmem:[#allocation10 + $0xf0] sm:$0xff]
    %v919 = vld [vmem:[#allocation10 + $0xf8] sm:$0xff]
    %v920 = vld [vmem:[#allocation10 + $0x100] sm:$0xff]
    %v921 = vld [vmem:[#allocation10 + $0x108] sm:$0xff]
    %v922 = vld [vmem:[#allocation10 + $0x110] sm:$0xff]
    %v923 = vld [vmem:[#allocation10 + $0x118] sm:$0xff]
    %v924 = vld [vmem:[#allocation10 + $0x120] sm:$0xff]
    %v925 = vld [vmem:[#allocation10 + $0x128] sm:$0xff]
    %v926 = vld [vmem:[#allocation10 + $0x130] sm:$0xff]
    %v927 = vld [vmem:[#allocation10 + $0x138] sm:$0xff]
    %v928 = vld [vmem:[#allocation10 + $0x140] sm:$0xff]
    %v929 = vld [vmem:[#allocation10 + $0x148] sm:$0xff]
    %v930 = vld [vmem:[#allocation10 + $0x150] sm:$0xff]
    %v931 = vld [vmem:[#allocation10 + $0x158] sm:$0xff]
    %v932 = vld [vmem:[#allocation10 + $0x160] sm:$0xff]
    %v933 = vld [vmem:[#allocation10 + $0x168] sm:$0xff]
    %v934 = vld [vmem:[#allocation10 + $0x170] sm:$0xff]
    %v935 = vld [vmem:[#allocation10 + $0x178] sm:$0xff]
    %v936 = vld [vmem:[#allocation10 + $0x180] sm:$0xff]
    %v937 = vld [vmem:[#allocation10 + $0x188] sm:$0xff]
    %v938 = vld [vmem:[#allocation10 + $0x190] sm:$0xff]
    %v939 = vld [vmem:[#allocation10 + $0x198] sm:$0xff]
    %v940 = vld [vmem:[#allocation10 + $0x1a0] sm:$0xff]
    %v941 = vld [vmem:[#allocation10 + $0x1a8] sm:$0xff]
    %v942 = vld [vmem:[#allocation10 + $0x1b0] sm:$0xff]
    %v943 = vld [vmem:[#allocation10 + $0x1b8] sm:$0xff]
    %v944 = vld [vmem:[#allocation10 + $0x1c0] sm:$0xff]
    %v945 = vld [vmem:[#allocation10 + $0x1c8] sm:$0xff]
    %v946 = vld [vmem:[#allocation10 + $0x1d0] sm:$0xff]
    %v947 = vld [vmem:[#allocation10 + $0x1d8] sm:$0xff]
    %v948 = vld [vmem:[#allocation10 + $0x1e0] sm:$0xff]
    %v949 = vld [vmem:[#allocation10 + $0x1e8] sm:$0xff]
    %v950 = vld [vmem:[#allocation10 + $0x1f0] sm:$0xff]
    %v951 = vld [vmem:[#allocation10 + $0x1f8] sm:$0xff]
    %952 = vmatprep.subr.mxu0 %v889
    %953 = vmatpush1.msra.mxu0 %v888
    %954 = vmatprep.subr.mxu0 %v893
    %955 = vmatpush1.msra.mxu0 %v892
    %956 = vmatprep.subr.mxu0 %v897
    %957 = vmatpush1.msra.mxu0 %v896
    %958 = vmatprep.subr.mxu0 %v901
    %959 = vmatpush1.msra.mxu0 %v900
    %960 = vmatprep.subr.mxu0 %v905
    %961 = vmatpush1.msra.mxu0 %v904
    %962 = vmatprep.subr.mxu0 %v909
    %963 = vmatpush1.msra.mxu0 %v908
    %964 = vmatprep.subr.mxu0 %v913
    %965 = vmatpush1.msra.mxu0 %v912
    %966 = vmatprep.subr.mxu0 %v917
    %967 = vmatpush1.msra.mxu0 %v916
    %968 = vmatprep.subr.mxu0 %v921
    %969 = vmatpush1.msra.mxu0 %v920
    %970 = vmatprep.subr.mxu0 %v925
    %971 = vmatpush1.msra.mxu0 %v924
    %972 = vmatprep.subr.mxu0 %v929
    %973 = vmatpush1.msra.mxu0 %v928
    %974 = vmatprep.subr.mxu0 %v933
    %975 = vmatpush1.msra.mxu0 %v932
    %976 = vmatprep.subr.mxu0 %v937
    %977 = vmatpush1.msra.mxu0 %v936
    %978 = vmatprep.subr.mxu0 %v941
    %979 = vmatpush1.msra.mxu0 %v940
    %980 = vmatprep.subr.mxu0 %v945
    %981 = vmatpush1.msra.mxu0 %v944
    %982 = vmatprep.subr.mxu0 %v949
    %983 = vmatpush1.msra.mxu0 %v948
    %984 = vmatprep.subr.mxu0 0.0
    %985 = vmatpush1.msra.mxu0 0.0
    %986 = vmatprep.subr.mxu0 0.0
    %987 = vmatpush1.msra.mxu0 0.0
    %988 = vmatprep.subr.mxu0 0.0
    %989 = vmatpush1.msra.mxu0 0.0
    %990 = vmatprep.subr.mxu0 0.0
    %991 = vmatpush1.msra.mxu0 0.0
    %992 = vmatprep.subr.mxu0 0.0
    %993 = vmatpush1.msra.mxu0 0.0
    %994 = vmatprep.subr.mxu0 0.0
    %995 = vmatpush1.msra.mxu0 0.0
    %996 = vmatprep.subr.mxu0 0.0
    %997 = vmatpush1.msra.mxu0 0.0
    %998 = vmatprep.subr.mxu0 0.0
    %999 = vmatpush1.msra.mxu0 0.0
    %1000 = vmatprep.subr.mxu0 0.0
    %1001 = vmatpush1.msra.mxu0 0.0
    %1002 = vmatprep.subr.mxu0 0.0
    %1003 = vmatpush1.msra.mxu0 0.0
    %1004 = vmatprep.subr.mxu0 0.0
    %1005 = vmatpush1.msra.mxu0 0.0
    %1006 = vmatprep.subr.mxu0 0.0
    %1007 = vmatpush1.msra.mxu0 0.0
    %1008 = vmatprep.subr.mxu0 0.0
    %1009 = vmatpush1.msra.mxu0 0.0
    %1010 = vmatprep.subr.mxu0 0.0
    %1011 = vmatpush1.msra.mxu0 0.0
    %1012 = vmatprep.subr.mxu0 0.0
    %1013 = vmatpush1.msra.mxu0 0.0
    %1014 = vmatprep.subr.mxu0 0.0
    %1015 = vmatpush1.msra.mxu0 0.0
    %1016 = vmatprep.mubr.f32.mxu0 0.0
    %1017 = vmatmul.mubr.f32.gmra.mrb[0].mxu0 %v887
    %v1018 = vpop.f32.mrb[0].mxu0
    %v1019 = vadd.f32 0.0, %v1018
    %v1020 = vpop.f32.mrb[0].mxu0
    %v1021 = vadd.f32 0.0, %v1020
    %1022 = vdwg.mxu0
    %1023 = vmatprep.subr.mxu0 %v891
    %1024 = vmatpush1.msra.mxu0 %v890
    %1025 = vmatprep.subr.mxu0 %v895
    %1026 = vmatpush1.msra.mxu0 %v894
    %1027 = vmatprep.subr.mxu0 %v899
    %1028 = vmatpush1.msra.mxu0 %v898
    %1029 = vmatprep.subr.mxu0 %v903
    %1030 = vmatpush1.msra.mxu0 %v902
    %1031 = vmatprep.subr.mxu0 %v907
    %1032 = vmatpush1.msra.mxu0 %v906
    %1033 = vmatprep.subr.mxu0 %v911
    %1034 = vmatpush1.msra.mxu0 %v910
    %1035 = vmatprep.subr.mxu0 %v915
    %1036 = vmatpush1.msra.mxu0 %v914
    %1037 = vmatprep.subr.mxu0 %v919
    %1038 = vmatpush1.msra.mxu0 %v918
    %1039 = vmatprep.subr.mxu0 %v923
    %1040 = vmatpush1.msra.mxu0 %v922
    %1041 = vmatprep.subr.mxu0 %v927
    %1042 = vmatpush1.msra.mxu0 %v926
    %1043 = vmatprep.subr.mxu0 %v931
    %1044 = vmatpush1.msra.mxu0 %v930
    %1045 = vmatprep.subr.mxu0 %v935
    %1046 = vmatpush1.msra.mxu0 %v934
    %1047 = vmatprep.subr.mxu0 %v939
    %1048 = vmatpush1.msra.mxu0 %v938
    %1049 = vmatprep.subr.mxu0 %v943
    %1050 = vmatpush1.msra.mxu0 %v942
    %1051 = vmatprep.subr.mxu0 %v947
    %1052 = vmatpush1.msra.mxu0 %v946
    %1053 = vmatprep.subr.mxu0 %v951
    %1054 = vmatpush1.msra.mxu0 %v950
    %1055 = vmatprep.subr.mxu0 0.0
    %1056 = vmatpush1.msra.mxu0 0.0
    %1057 = vmatprep.subr.mxu0 0.0
    %1058 = vmatpush1.msra.mxu0 0.0
    %1059 = vmatprep.subr.mxu0 0.0
    %1060 = vmatpush1.msra.mxu0 0.0
    %1061 = vmatprep.subr.mxu0 0.0
    %1062 = vmatpush1.msra.mxu0 0.0
    %1063 = vmatprep.subr.mxu0 0.0
    %1064 = vmatpush1.msra.mxu0 0.0
    %1065 = vmatprep.subr.mxu0 0.0
    %1066 = vmatpush1.msra.mxu0 0.0
    %1067 = vmatprep.subr.mxu0 0.0
    %1068 = vmatpush1.msra.mxu0 0.0
    %1069 = vmatprep.subr.mxu0 0.0
    %1070 = vmatpush1.msra.mxu0 0.0
    %1071 = vmatprep.subr.mxu0 0.0
    %1072 = vmatpush1.msra.mxu0 0.0
    %1073 = vmatprep.subr.mxu0 0.0
    %1074 = vmatpush1.msra.mxu0 0.0
    %1075 = vmatprep.subr.mxu0 0.0
    %1076 = vmatpush1.msra.mxu0 0.0
    %1077 = vmatprep.subr.mxu0 0.0
    %1078 = vmatpush1.msra.mxu0 0.0
    %1079 = vmatprep.subr.mxu0 0.0
    %1080 = vmatpush1.msra.mxu0 0.0
    %1081 = vmatprep.subr.mxu0 0.0
    %1082 = vmatpush1.msra.mxu0 0.0
    %1083 = vmatprep.subr.mxu0 0.0
    %1084 = vmatpush1.msra.mxu0 0.0
    %1085 = vmatprep.subr.mxu0 0.0
    %1086 = vmatpush1.msra.mxu0 0.0
    %1087 = vmatprep.mubr.f32.mxu0 0.0
    %1088 = vmatmul.mubr.f32.gmra.mrb[0].mxu0 %v887
    %v1089 = vpop.f32.mrb[0].mxu0
    %v1090 = vadd.f32 0.0, %v1089
    %v1091 = vpop.f32.mrb[0].mxu0
    %v1092 = vadd.f32 0.0, %v1091
    %1093 = vdwg.mxu0
    %v1094 = vadd.f32 %v883, %v1019
    %v1095 = vadd.f32 %v884, %v1021
    %v1096 = vadd.f32 %v885, %v1090
    %v1097 = vadd.f32 %v886, %v1092
    %v1098 = vxor.u32 %v1094, 2147483648
    %v1099 = vmul.f32 %v1098, 1.442695
    %v1100 = vpow.pop %v1099
    %v1101 = vadd.f32 %v1100, 1.0
    %v1102 = vrcp.pop %v1101
    %v1103 = vmul.f32 1.0, %v1102
    %v1104 = vxor.u32 %v1095, 2147483648
    %v1105 = vmul.f32 %v1104, 1.442695
    %v1106 = vpow.pop %v1105
    %v1107 = vadd.f32 %v1106, 1.0
    %v1108 = vrcp.pop %v1107
    %v1109 = vmul.f32 1.0, %v1108
    %v1110 = vtanh.pop %v1096
    %v1111 = vxor.u32 %v1097, 2147483648
    %v1112 = vmul.f32 %v1111, 1.442695
    %v1113 = vpow.pop %v1112
    %v1114 = vadd.f32 %v1113, 1.0
    %v1115 = vrcp.pop %v1114
    %v1116 = vmul.f32 1.0, %v1115
    %v1117 = vld [vmem:[#allocation4] sm:$0xff]
    %v1118 = vmul.f32 %v1109, %v1117
    %v1119 = vmul.f32 %v1103, %v1110
    %v1120 = vadd.f32 %v1118, %v1119
    %v1121 = vtanh.pop %v1120
    %v1122 = vmul.f32 %v1116, %v1121
    %1123 = vst [vmem:[#allocation4] sm:$0xff] %v1120
    %1124 = vst [vmem:[#allocation3] sm:$0xff] %v1122
    %s1125 = scalar_lea.vmem [#allocation2], 96
    %v1126 = vld [vmem:[%s1125] sm:$0xff]
    %v1127 = vld [vmem:[%s1125 + $0x8] sm:$0xff]
    %v1128 = vld [vmem:[%s1125 + $0x10] sm:$0xff]
    %v1129 = vld [vmem:[%s1125 + $0x18] sm:$0xff]
    %v1130 = vld [vmem:[#allocation3] sm:$0xff]
    %v1131 = vld [vmem:[#allocation10] sm:$0xff]
    %v1132 = vld [vmem:[#allocation10 + $0x8] sm:$0xff]
    %v1133 = vld [vmem:[#allocation10 + $0x10] sm:$0xff]
    %v1134 = vld [vmem:[#allocation10 + $0x18] sm:$0xff]
    %v1135 = vld [vmem:[#allocation10 + $0x20] sm:$0xff]
    %v1136 = vld [vmem:[#allocation10 + $0x28] sm:$0xff]
    %v1137 = vld [vmem:[#allocation10 + $0x30] sm:$0xff]
    %v1138 = vld [vmem:[#allocation10 + $0x38] sm:$0xff]
    %v1139 = vld [vmem:[#allocation10 + $0x40] sm:$0xff]
    %v1140 = vld [vmem:[#allocation10 + $0x48] sm:$0xff]
    %v1141 = vld [vmem:[#allocation10 + $0x50] sm:$0xff]
    %v1142 = vld [vmem:[#allocation10 + $0x58] sm:$0xff]
    %v1143 = vld [vmem:[#allocation10 + $0x60] sm:$0xff]
    %v1144 = vld [vmem:[#allocation10 + $0x68] sm:$0xff]
    %v1145 = vld [vmem:[#allocation10 + $0x70] sm:$0xff]
    %v1146 = vld [vmem:[#allocation10 + $0x78] sm:$0xff]
    %v1147 = vld [vmem:[#allocation10 + $0x80] sm:$0xff]
    %v1148 = vld [vmem:[#allocation10 + $0x88] sm:$0xff]
    %v1149 = vld [vmem:[#allocation10 + $0x90] sm:$0xff]
    %v1150 = vld [vmem:[#allocation10 + $0x98] sm:$0xff]
    %v1151 = vld [vmem:[#allocation10 + $0xa0] sm:$0xff]
    %v1152 = vld [vmem:[#allocation10 + $0xa8] sm:$0xff]
    %v1153 = vld [vmem:[#allocation10 + $0xb0] sm:$0xff]
    %v1154 = vld [vmem:[#allocation10 + $0xb8] sm:$0xff]
    %v1155 = vld [vmem:[#allocation10 + $0xc0] sm:$0xff]
    %v1156 = vld [vmem:[#allocation10 + $0xc8] sm:$0xff]
    %v1157 = vld [vmem:[#allocation10 + $0xd0] sm:$0xff]
    %v1158 = vld [vmem:[#allocation10 + $0xd8] sm:$0xff]
    %v1159 = vld [vmem:[#allocation10 + $0xe0] sm:$0xff]
    %v1160 = vld [vmem:[#allocation10 + $0xe8] sm:$0xff]
    %v1161 = vld [vmem:[#allocation10 + $0xf0] sm:$0xff]
    %v1162 = vld [vmem:[#allocation10 + $0xf8] sm:$0xff]
    %v1163 = vld [vmem:[#allocation10 + $0x100] sm:$0xff]
    %v1164 = vld [vmem:[#allocation10 + $0x108] sm:$0xff]
    %v1165 = vld [vmem:[#allocation10 + $0x110] sm:$0xff]
    %v1166 = vld [vmem:[#allocation10 + $0x118] sm:$0xff]
    %v1167 = vld [vmem:[#allocation10 + $0x120] sm:$0xff]
    %v1168 = vld [vmem:[#allocation10 + $0x128] sm:$0xff]
    %v1169 = vld [vmem:[#allocation10 + $0x130] sm:$0xff]
    %v1170 = vld [vmem:[#allocation10 + $0x138] sm:$0xff]
    %v1171 = vld [vmem:[#allocation10 + $0x140] sm:$0xff]
    %v1172 = vld [vmem:[#allocation10 + $0x148] sm:$0xff]
    %v1173 = vld [vmem:[#allocation10 + $0x150] sm:$0xff]
    %v1174 = vld [vmem:[#allocation10 + $0x158] sm:$0xff]
    %v1175 = vld [vmem:[#allocation10 + $0x160] sm:$0xff]
    %v1176 = vld [vmem:[#allocation10 + $0x168] sm:$0xff]
    %v1177 = vld [vmem:[#allocation10 + $0x170] sm:$0xff]
    %v1178 = vld [vmem:[#allocation10 + $0x178] sm:$0xff]
    %v1179 = vld [vmem:[#allocation10 + $0x180] sm:$0xff]
    %v1180 = vld [vmem:[#allocation10 + $0x188] sm:$0xff]
    %v1181 = vld [vmem:[#allocation10 + $0x190] sm:$0xff]
    %v1182 = vld [vmem:[#allocation10 + $0x198] sm:$0xff]
    %v1183 = vld [vmem:[#allocation10 + $0x1a0] sm:$0xff]
    %v1184 = vld [vmem:[#allocation10 + $0x1a8] sm:$0xff]
    %v1185 = vld [vmem:[#allocation10 + $0x1b0] sm:$0xff]
    %v1186 = vld [vmem:[#allocation10 + $0x1b8] sm:$0xff]
    %v1187 = vld [vmem:[#allocation10 + $0x1c0] sm:$0xff]
    %v1188 = vld [vmem:[#allocation10 + $0x1c8] sm:$0xff]
    %v1189 = vld [vmem:[#allocation10 + $0x1d0] sm:$0xff]
    %v1190 = vld [vmem:[#allocation10 + $0x1d8] sm:$0xff]
    %v1191 = vld [vmem:[#allocation10 + $0x1e0] sm:$0xff]
    %v1192 = vld [vmem:[#allocation10 + $0x1e8] sm:$0xff]
    %v1193 = vld [vmem:[#allocation10 + $0x1f0] sm:$0xff]
    %v1194 = vld [vmem:[#allocation10 + $0x1f8] sm:$0xff]
    %1195 = vmatprep.subr.mxu0 %v1132
    %1196 = vmatpush1.msra.mxu0 %v1131
    %1197 = vmatprep.subr.mxu0 %v1136
    %1198 = vmatpush1.msra.mxu0 %v1135
    %1199 = vmatprep.subr.mxu0 %v1140
    %1200 = vmatpush1.msra.mxu0 %v1139
    %1201 = vmatprep.subr.mxu0 %v1144
    %1202 = vmatpush1.msra.mxu0 %v1143
    %1203 = vmatprep.subr.mxu0 %v1148
    %1204 = vmatpush1.msra.mxu0 %v1147
    %1205 = vmatprep.subr.mxu0 %v1152
    %1206 = vmatpush1.msra.mxu0 %v1151
    %1207 = vmatprep.subr.mxu0 %v1156
    %1208 = vmatpush1.msra.mxu0 %v1155
    %1209 = vmatprep.subr.mxu0 %v1160
    %1210 = vmatpush1.msra.mxu0 %v1159
    %1211 = vmatprep.subr.mxu0 %v1164
    %1212 = vmatpush1.msra.mxu0 %v1163
    %1213 = vmatprep.subr.mxu0 %v1168
    %1214 = vmatpush1.msra.mxu0 %v1167
    %1215 = vmatprep.subr.mxu0 %v1172
    %1216 = vmatpush1.msra.mxu0 %v1171
    %1217 = vmatprep.subr.mxu0 %v1176
    %1218 = vmatpush1.msra.mxu0 %v1175
    %1219 = vmatprep.subr.mxu0 %v1180
    %1220 = vmatpush1.msra.mxu0 %v1179
    %1221 = vmatprep.subr.mxu0 %v1184
    %1222 = vmatpush1.msra.mxu0 %v1183
    %1223 = vmatprep.subr.mxu0 %v1188
    %1224 = vmatpush1.msra.mxu0 %v1187
    %1225 = vmatprep.subr.mxu0 %v1192
    %1226 = vmatpush1.msra.mxu0 %v1191
    %1227 = vmatprep.subr.mxu0 0.0
    %1228 = vmatpush1.msra.mxu0 0.0
    %1229 = vmatprep.subr.mxu0 0.0
    %1230 = vmatpush1.msra.mxu0 0.0
    %1231 = vmatprep.subr.mxu0 0.0
    %1232 = vmatpush1.msra.mxu0 0.0
    %1233 = vmatprep.subr.mxu0 0.0
    %1234 = vmatpush1.msra.mxu0 0.0
    %1235 = vmatprep.subr.mxu0 0.0
    %1236 = vmatpush1.msra.mxu0 0.0
    %1237 = vmatprep.subr.mxu0 0.0
    %1238 = vmatpush1.msra.mxu0 0.0
    %1239 = vmatprep.subr.mxu0 0.0
    %1240 = vmatpush1.msra.mxu0 0.0
    %1241 = vmatprep.subr.mxu0 0.0
    %1242 = vmatpush1.msra.mxu0 0.0
    %1243 = vmatprep.subr.mxu0 0.0
    %1244 = vmatpush1.msra.mxu0 0.0
    %1245 = vmatprep.subr.mxu0 0.0
    %1246 = vmatpush1.msra.mxu0 0.0
    %1247 = vmatprep.subr.mxu0 0.0
    %1248 = vmatpush1.msra.mxu0 0.0
    %1249 = vmatprep.subr.mxu0 0.0
    %1250 = vmatpush1.msra.mxu0 0.0
    %1251 = vmatprep.subr.mxu0 0.0
    %1252 = vmatpush1.msra.mxu0 0.0
    %1253 = vmatprep.subr.mxu0 0.0
    %1254 = vmatpush1.msra.mxu0 0.0
    %1255 = vmatprep.subr.mxu0 0.0
    %1256 = vmatpush1.msra.mxu0 0.0
    %1257 = vmatprep.subr.mxu0 0.0
    %1258 = vmatpush1.msra.mxu0 0.0
    %1259 = vmatprep.mubr.f32.mxu0 0.0
    %1260 = vmatmul.mubr.f32.gmra.mrb[0].mxu0 %v1130
    %v1261 = vpop.f32.mrb[0].mxu0
    %v1262 = vadd.f32 0.0, %v1261
    %v1263 = vpop.f32.mrb[0].mxu0
    %v1264 = vadd.f32 0.0, %v1263
    %1265 = vdwg.mxu0
    %1266 = vmatprep.subr.mxu0 %v1134
    %1267 = vmatpush1.msra.mxu0 %v1133
    %1268 = vmatprep.subr.mxu0 %v1138
    %1269 = vmatpush1.msra.mxu0 %v1137
    %1270 = vmatprep.subr.mxu0 %v1142
    %1271 = vmatpush1.msra.mxu0 %v1141
    %1272 = vmatprep.subr.mxu0 %v1146
    %1273 = vmatpush1.msra.mxu0 %v1145
    %1274 = vmatprep.subr.mxu0 %v1150
    %1275 = vmatpush1.msra.mxu0 %v1149
    %1276 = vmatprep.subr.mxu0 %v1154
    %1277 = vmatpush1.msra.mxu0 %v1153
    %1278 = vmatprep.subr.mxu0 %v1158
    %1279 = vmatpush1.msra.mxu0 %v1157
    %1280 = vmatprep.subr.mxu0 %v1162
    %1281 = vmatpush1.msra.mxu0 %v1161
    %1282 = vmatprep.subr.mxu0 %v1166
    %1283 = vmatpush1.msra.mxu0 %v1165
    %1284 = vmatprep.subr.mxu0 %v1170
    %1285 = vmatpush1.msra.mxu0 %v1169
    %1286 = vmatprep.subr.mxu0 %v1174
    %1287 = vmatpush1.msra.mxu0 %v1173
    %1288 = vmatprep.subr.mxu0 %v1178
    %1289 = vmatpush1.msra.mxu0 %v1177
    %1290 = vmatprep.subr.mxu0 %v1182
    %1291 = vmatpush1.msra.mxu0 %v1181
    %1292 = vmatprep.subr.mxu0 %v1186
    %1293 = vmatpush1.msra.mxu0 %v1185
    %1294 = vmatprep.subr.mxu0 %v1190
    %1295 = vmatpush1.msra.mxu0 %v1189
    %1296 = vmatprep.subr.mxu0 %v1194
    %1297 = vmatpush1.msra.mxu0 %v1193
    %1298 = vmatprep.subr.mxu0 0.0
    %1299 = vmatpush1.msra.mxu0 0.0
    %1300 = vmatprep.subr.mxu0 0.0
    %1301 = vmatpush1.msra.mxu0 0.0
    %1302 = vmatprep.subr.mxu0 0.0
    %1303 = vmatpush1.msra.mxu0 0.0
    %1304 = vmatprep.subr.mxu0 0.0
    %1305 = vmatpush1.msra.mxu0 0.0
    %1306 = vmatprep.subr.mxu0 0.0
    %1307 = vmatpush1.msra.mxu0 0.0
    %1308 = vmatprep.subr.mxu0 0.0
    %1309 = vmatpush1.msra.mxu0 0.0
    %1310 = vmatprep.subr.mxu0 0.0
    %1311 = vmatpush1.msra.mxu0 0.0
    %1312 = vmatprep.subr.mxu0 0.0
    %1313 = vmatpush1.msra.mxu0 0.0
    %1314 = vmatprep.subr.mxu0 0.0
    %1315 = vmatpush1.msra.mxu0 0.0
    %1316 = vmatprep.subr.mxu0 0.0
    %1317 = vmatpush1.msra.mxu0 0.0
    %1318 = vmatprep.subr.mxu0 0.0
    %1319 = vmatpush1.msra.mxu0 0.0
    %1320 = vmatprep.subr.mxu0 0.0
    %1321 = vmatpush1.msra.mxu0 0.0
    %1322 = vmatprep.subr.mxu0 0.0
    %1323 = vmatpush1.msra.mxu0 0.0
    %1324 = vmatprep.subr.mxu0 0.0
    %1325 = vmatpush1.msra.mxu0 0.0
    %1326 = vmatprep.subr.mxu0 0.0
    %1327 = vmatpush1.msra.mxu0 0.0
    %1328 = vmatprep.subr.mxu0 0.0
    %1329 = vmatpush1.msra.mxu0 0.0
    %1330 = vmatprep.mubr.f32.mxu0 0.0
    %1331 = vmatmul.mubr.f32.gmra.mrb[0].mxu0 %v1130
    %v1332 = vpop.f32.mrb[0].mxu0
    %v1333 = vadd.f32 0.0, %v1332
    %v1334 = vpop.f32.mrb[0].mxu0
    %v1335 = vadd.f32 0.0, %v1334
    %1336 = vdwg.mxu0
    %v1337 = vadd.f32 %v1126, %v1262
    %v1338 = vadd.f32 %v1127, %v1264
    %v1339 = vadd.f32 %v1128, %v1333
    %v1340 = vadd.f32 %v1129, %v1335
    %v1341 = vxor.u32 %v1337, 2147483648
    %v1342 = vmul.f32 %v1341, 1.442695
    %v1343 = vpow.pop %v1342
    %v1344 = vadd.f32 %v1343, 1.0
    %v1345 = vrcp.pop %v1344
    %v1346 = vmul.f32 1.0, %v1345
    %v1347 = vxor.u32 %v1338, 2147483648
    %v1348 = vmul.f32 %v1347, 1.442695
    %v1349 = vpow.pop %v1348
    %v1350 = vadd.f32 %v1349, 1.0
    %v1351 = vrcp.pop %v1350
    %v1352 = vmul.f32 1.0, %v1351
    %v1353 = vtanh.pop %v1339
    %v1354 = vxor.u32 %v1340, 2147483648
    %v1355 = vmul.f32 %v1354, 1.442695
    %v1356 = vpow.pop %v1355
    %v1357 = vadd.f32 %v1356, 1.0
    %v1358 = vrcp.pop %v1357
    %v1359 = vmul.f32 1.0, %v1358
    %v1360 = vld [vmem:[#allocation4] sm:$0xff]
    %v1361 = vmul.f32 %v1352, %v1360
    %v1362 = vmul.f32 %v1346, %v1353
    %v1363 = vadd.f32 %v1361, %v1362
    %v1364 = vtanh.pop %v1363
    %v1365 = vmul.f32 %v1359, %v1364
    %1366 = vst [vmem:[#allocation4] sm:$0xff] %v1363
    %1367 = vst [vmem:[#allocation3] sm:$0xff] %v1365
    %s1368 = scalar_lea.vmem [#allocation2], 128
    %v1369 = vld [vmem:[%s1368] sm:$0xff]
    %v1370 = vld [vmem:[%s1368 + $0x8] sm:$0xff]
    %v1371 = vld [vmem:[%s1368 + $0x10] sm:$0xff]
    %v1372 = vld [vmem:[%s1368 + $0x18] sm:$0xff]
    %v1373 = vld [vmem:[#allocation3] sm:$0xff]
    %v1374 = vld [vmem:[#allocation10] sm:$0xff]
    %v1375 = vld [vmem:[#allocation10 + $0x8] sm:$0xff]
    %v1376 = vld [vmem:[#allocation10 + $0x10] sm:$0xff]
    %v1377 = vld [vmem:[#allocation10 + $0x18] sm:$0xff]
    %v1378 = vld [vmem:[#allocation10 + $0x20] sm:$0xff]
    %v1379 = vld [vmem:[#allocation10 + $0x28] sm:$0xff]
    %v1380 = vld [vmem:[#allocation10 + $0x30] sm:$0xff]
    %v1381 = vld [vmem:[#allocation10 + $0x38] sm:$0xff]
    %v1382 = vld [vmem:[#allocation10 + $0x40] sm:$0xff]
    %v1383 = vld [vmem:[#allocation10 + $0x48] sm:$0xff]
    %v1384 = vld [vmem:[#allocation10 + $0x50] sm:$0xff]
    %v1385 = vld [vmem:[#allocation10 + $0x58] sm:$0xff]
    %v1386 = vld [vmem:[#allocation10 + $0x60] sm:$0xff]
    %v1387 = vld [vmem:[#allocation10 + $0x68] sm:$0xff]
    %v1388 = vld [vmem:[#allocation10 + $0x70] sm:$0xff]
    %v1389 = vld [vmem:[#allocation10 + $0x78] sm:$0xff]
    %v1390 = vld [vmem:[#allocation10 + $0x80] sm:$0xff]
    %v1391 = vld [vmem:[#allocation10 + $0x88] sm:$0xff]
    %v1392 = vld [vmem:[#allocation10 + $0x90] sm:$0xff]
    %v1393 = vld [vmem:[#allocation10 + $0x98] sm:$0xff]
    %v1394 = vld [vmem:[#allocation10 + $0xa0] sm:$0xff]
    %v1395 = vld [vmem:[#allocation10 + $0xa8] sm:$0xff]
    %v1396 = vld [vmem:[#allocation10 + $0xb0] sm:$0xff]
    %v1397 = vld [vmem:[#allocation10 + $0xb8] sm:$0xff]
    %v1398 = vld [vmem:[#allocation10 + $0xc0] sm:$0xff]
    %v1399 = vld [vmem:[#allocation10 + $0xc8] sm:$0xff]
    %v1400 = vld [vmem:[#allocation10 + $0xd0] sm:$0xff]
    %v1401 = vld [vmem:[#allocation10 + $0xd8] sm:$0xff]
    %v1402 = vld [vmem:[#allocation10 + $0xe0] sm:$0xff]
    %v1403 = vld [vmem:[#allocation10 + $0xe8] sm:$0xff]
    %v1404 = vld [vmem:[#allocation10 + $0xf0] sm:$0xff]
    %v1405 = vld [vmem:[#allocation10 + $0xf8] sm:$0xff]
    %v1406 = vld [vmem:[#allocation10 + $0x100] sm:$0xff]
    %v1407 = vld [vmem:[#allocation10 + $0x108] sm:$0xff]
    %v1408 = vld [vmem:[#allocation10 + $0x110] sm:$0xff]
    %v1409 = vld [vmem:[#allocation10 + $0x118] sm:$0xff]
    %v1410 = vld [vmem:[#allocation10 + $0x120] sm:$0xff]
    %v1411 = vld [vmem:[#allocation10 + $0x128] sm:$0xff]
    %v1412 = vld [vmem:[#allocation10 + $0x130] sm:$0xff]
    %v1413 = vld [vmem:[#allocation10 + $0x138] sm:$0xff]
    %v1414 = vld [vmem:[#allocation10 + $0x140] sm:$0xff]
    %v1415 = vld [vmem:[#allocation10 + $0x148] sm:$0xff]
    %v1416 = vld [vmem:[#allocation10 + $0x150] sm:$0xff]
    %v1417 = vld [vmem:[#allocation10 + $0x158] sm:$0xff]
    %v1418 = vld [vmem:[#allocation10 + $0x160] sm:$0xff]
    %v1419 = vld [vmem:[#allocation10 + $0x168] sm:$0xff]
    %v1420 = vld [vmem:[#allocation10 + $0x170] sm:$0xff]
    %v1421 = vld [vmem:[#allocation10 + $0x178] sm:$0xff]
    %v1422 = vld [vmem:[#allocation10 + $0x180] sm:$0xff]
    %v1423 = vld [vmem:[#allocation10 + $0x188] sm:$0xff]
    %v1424 = vld [vmem:[#allocation10 + $0x190] sm:$0xff]
    %v1425 = vld [vmem:[#allocation10 + $0x198] sm:$0xff]
    %v1426 = vld [vmem:[#allocation10 + $0x1a0] sm:$0xff]
    %v1427 = vld [vmem:[#allocation10 + $0x1a8] sm:$0xff]
    %v1428 = vld [vmem:[#allocation10 + $0x1b0] sm:$0xff]
    %v1429 = vld [vmem:[#allocation10 + $0x1b8] sm:$0xff]
    %v1430 = vld [vmem:[#allocation10 + $0x1c0] sm:$0xff]
    %v1431 = vld [vmem:[#allocation10 + $0x1c8] sm:$0xff]
    %v1432 = vld [vmem:[#allocation10 + $0x1d0] sm:$0xff]
    %v1433 = vld [vmem:[#allocation10 + $0x1d8] sm:$0xff]
    %v1434 = vld [vmem:[#allocation10 + $0x1e0] sm:$0xff]
    %v1435 = vld [vmem:[#allocation10 + $0x1e8] sm:$0xff]
    %v1436 = vld [vmem:[#allocation10 + $0x1f0] sm:$0xff]
    %v1437 = vld [vmem:[#allocation10 + $0x1f8] sm:$0xff]
    %1438 = vmatprep.subr.mxu0 %v1375
    %1439 = vmatpush1.msra.mxu0 %v1374
    %1440 = vmatprep.subr.mxu0 %v1379
    %1441 = vmatpush1.msra.mxu0 %v1378
    %1442 = vmatprep.subr.mxu0 %v1383
    %1443 = vmatpush1.msra.mxu0 %v1382
    %1444 = vmatprep.subr.mxu0 %v1387
    %1445 = vmatpush1.msra.mxu0 %v1386
    %1446 = vmatprep.subr.mxu0 %v1391
    %1447 = vmatpush1.msra.mxu0 %v1390
    %1448 = vmatprep.subr.mxu0 %v1395
    %1449 = vmatpush1.msra.mxu0 %v1394
    %1450 = vmatprep.subr.mxu0 %v1399
    %1451 = vmatpush1.msra.mxu0 %v1398
    %1452 = vmatprep.subr.mxu0 %v1403
    %1453 = vmatpush1.msra.mxu0 %v1402
    %1454 = vmatprep.subr.mxu0 %v1407
    %1455 = vmatpush1.msra.mxu0 %v1406
    %1456 = vmatprep.subr.mxu0 %v1411
    %1457 = vmatpush1.msra.mxu0 %v1410
    %1458 = vmatprep.subr.mxu0 %v1415
    %1459 = vmatpush1.msra.mxu0 %v1414
    %1460 = vmatprep.subr.mxu0 %v1419
    %1461 = vmatpush1.msra.mxu0 %v1418
    %1462 = vmatprep.subr.mxu0 %v1423
    %1463 = vmatpush1.msra.mxu0 %v1422
    %1464 = vmatprep.subr.mxu0 %v1427
    %1465 = vmatpush1.msra.mxu0 %v1426
    %1466 = vmatprep.subr.mxu0 %v1431
    %1467 = vmatpush1.msra.mxu0 %v1430
    %1468 = vmatprep.subr.mxu0 %v1435
    %1469 = vmatpush1.msra.mxu0 %v1434
    %1470 = vmatprep.subr.mxu0 0.0
    %1471 = vmatpush1.msra.mxu0 0.0
    %1472 = vmatprep.subr.mxu0 0.0
    %1473 = vmatpush1.msra.mxu0 0.0
    %1474 = vmatprep.subr.mxu0 0.0
    %1475 = vmatpush1.msra.mxu0 0.0
    %1476 = vmatprep.subr.mxu0 0.0
    %1477 = vmatpush1.msra.mxu0 0.0
    %1478 = vmatprep.subr.mxu0 0.0
    %1479 = vmatpush1.msra.mxu0 0.0
    %1480 = vmatprep.subr.mxu0 0.0
    %1481 = vmatpush1.msra.mxu0 0.0
    %1482 = vmatprep.subr.mxu0 0.0
    %1483 = vmatpush1.msra.mxu0 0.0
    %1484 = vmatprep.subr.mxu0 0.0
    %1485 = vmatpush1.msra.mxu0 0.0
    %1486 = vmatprep.subr.mxu0 0.0
    %1487 = vmatpush1.msra.mxu0 0.0
    %1488 = vmatprep.subr.mxu0 0.0
    %1489 = vmatpush1.msra.mxu0 0.0
    %1490 = vmatprep.subr.mxu0 0.0
    %1491 = vmatpush1.msra.mxu0 0.0
    %1492 = vmatprep.subr.mxu0 0.0
    %1493 = vmatpush1.msra.mxu0 0.0
    %1494 = vmatprep.subr.mxu0 0.0
    %1495 = vmatpush1.msra.mxu0 0.0
    %1496 = vmatprep.subr.mxu0 0.0
    %1497 = vmatpush1.msra.mxu0 0.0
    %1498 = vmatprep.subr.mxu0 0.0
    %1499 = vmatpush1.msra.mxu0 0.0
    %1500 = vmatprep.subr.mxu0 0.0
    %1501 = vmatpush1.msra.mxu0 0.0
    %1502 = vmatprep.mubr.f32.mxu0 0.0
    %1503 = vmatmul.mubr.f32.gmra.mrb[0].mxu0 %v1373
    %v1504 = vpop.f32.mrb[0].mxu0
    %v1505 = vadd.f32 0.0, %v1504
    %v1506 = vpop.f32.mrb[0].mxu0
    %v1507 = vadd.f32 0.0, %v1506
    %1508 = vdwg.mxu0
    %1509 = vmatprep.subr.mxu0 %v1377
    %1510 = vmatpush1.msra.mxu0 %v1376
    %1511 = vmatprep.subr.mxu0 %v1381
    %1512 = vmatpush1.msra.mxu0 %v1380
    %1513 = vmatprep.subr.mxu0 %v1385
    %1514 = vmatpush1.msra.mxu0 %v1384
    %1515 = vmatprep.subr.mxu0 %v1389
    %1516 = vmatpush1.msra.mxu0 %v1388
    %1517 = vmatprep.subr.mxu0 %v1393
    %1518 = vmatpush1.msra.mxu0 %v1392
    %1519 = vmatprep.subr.mxu0 %v1397
    %1520 = vmatpush1.msra.mxu0 %v1396
    %1521 = vmatprep.subr.mxu0 %v1401
    %1522 = vmatpush1.msra.mxu0 %v1400
    %1523 = vmatprep.subr.mxu0 %v1405
    %1524 = vmatpush1.msra.mxu0 %v1404
    %1525 = vmatprep.subr.mxu0 %v1409
    %1526 = vmatpush1.msra.mxu0 %v1408
    %1527 = vmatprep.subr.mxu0 %v1413
    %1528 = vmatpush1.msra.mxu0 %v1412
    %1529 = vmatprep.subr.mxu0 %v1417
    %1530 = vmatpush1.msra.mxu0 %v1416
    %1531 = vmatprep.subr.mxu0 %v1421
    %1532 = vmatpush1.msra.mxu0 %v1420
    %1533 = vmatprep.subr.mxu0 %v1425
    %1534 = vmatpush1.msra.mxu0 %v1424
    %1535 = vmatprep.subr.mxu0 %v1429
    %1536 = vmatpush1.msra.mxu0 %v1428
    %1537 = vmatprep.subr.mxu0 %v1433
    %1538 = vmatpush1.msra.mxu0 %v1432
    %1539 = vmatprep.subr.mxu0 %v1437
    %1540 = vmatpush1.msra.mxu0 %v1436
    %1541 = vmatprep.subr.mxu0 0.0
    %1542 = vmatpush1.msra.mxu0 0.0
    %1543 = vmatprep.subr.mxu0 0.0
    %1544 = vmatpush1.msra.mxu0 0.0
    %1545 = vmatprep.subr.mxu0 0.0
    %1546 = vmatpush1.msra.mxu0 0.0
    %1547 = vmatprep.subr.mxu0 0.0
    %1548 = vmatpush1.msra.mxu0 0.0
    %1549 = vmatprep.subr.mxu0 0.0
    %1550 = vmatpush1.msra.mxu0 0.0
    %1551 = vmatprep.subr.mxu0 0.0
    %1552 = vmatpush1.msra.mxu0 0.0
    %1553 = vmatprep.subr.mxu0 0.0
    %1554 = vmatpush1.msra.mxu0 0.0
    %1555 = vmatprep.subr.mxu0 0.0
    %1556 = vmatpush1.msra.mxu0 0.0
    %1557 = vmatprep.subr.mxu0 0.0
    %1558 = vmatpush1.msra.mxu0 0.0
    %1559 = vmatprep.subr.mxu0 0.0
    %1560 = vmatpush1.msra.mxu0 0.0
    %1561 = vmatprep.subr.mxu0 0.0
    %1562 = vmatpush1.msra.mxu0 0.0
    %1563 = vmatprep.subr.mxu0 0.0
    %1564 = vmatpush1.msra.mxu0 0.0
    %1565 = vmatprep.subr.mxu0 0.0
    %1566 = vmatpush1.msra.mxu0 0.0
    %1567 = vmatprep.subr.mxu0 0.0
    %1568 = vmatpush1.msra.mxu0 0.0
    %1569 = vmatprep.subr.mxu0 0.0
    %1570 = vmatpush1.msra.mxu0 0.0
    %1571 = vmatprep.subr.mxu0 0.0
    %1572 = vmatpush1.msra.mxu0 0.0
    %1573 = vmatprep.mubr.f32.mxu0 0.0
    %1574 = vmatmul.mubr.f32.gmra.mrb[0].mxu0 %v1373
    %v1575 = vpop.f32.mrb[0].mxu0
    %v1576 = vadd.f32 0.0, %v1575
    %v1577 = vpop.f32.mrb[0].mxu0
    %v1578 = vadd.f32 0.0, %v1577
    %1579 = vdwg.mxu0
    %v1580 = vadd.f32 %v1369, %v1505
    %v1581 = vadd.f32 %v1370, %v1507
    %v1582 = vadd.f32 %v1371, %v1576
    %v1583 = vadd.f32 %v1372, %v1578
    %v1584 = vxor.u32 %v1580, 2147483648
    %v1585 = vmul.f32 %v1584, 1.442695
    %v1586 = vpow.pop %v1585
    %v1587 = vadd.f32 %v1586, 1.0
    %v1588 = vrcp.pop %v1587
    %v1589 = vmul.f32 1.0, %v1588
    %v1590 = vxor.u32 %v1581, 2147483648
    %v1591 = vmul.f32 %v1590, 1.442695
    %v1592 = vpow.pop %v1591
    %v1593 = vadd.f32 %v1592, 1.0
    %v1594 = vrcp.pop %v1593
    %v1595 = vmul.f32 1.0, %v1594
    %v1596 = vtanh.pop %v1582
    %v1597 = vxor.u32 %v1583, 2147483648
    %v1598 = vmul.f32 %v1597, 1.442695
    %v1599 = vpow.pop %v1598
    %v1600 = vadd.f32 %v1599, 1.0
    %v1601 = vrcp.pop %v1600
    %v1602 = vmul.f32 1.0, %v1601
    %v1603 = vld [vmem:[#allocation4] sm:$0xff]
    %v1604 = vmul.f32 %v1595, %v1603
    %v1605 = vmul.f32 %v1589, %v1596
    %v1606 = vadd.f32 %v1604, %v1605
    %v1607 = vtanh.pop %v1606
    %v1608 = vmul.f32 %v1602, %v1607
    %1609 = vst [vmem:[#allocation4] sm:$0xff] %v1606
    %1610 = vst [vmem:[#allocation3] sm:$0xff] %v1608
    %s1611 = scalar_lea.vmem [#allocation2], 160
    %v1612 = vld [vmem:[%s1611] sm:$0xff]
    %v1613 = vld [vmem:[%s1611 + $0x8] sm:$0xff]
    %v1614 = vld [vmem:[%s1611 + $0x10] sm:$0xff]
    %v1615 = vld [vmem:[%s1611 + $0x18] sm:$0xff]
    %v1616 = vld [vmem:[#allocation3] sm:$0xff]
    %v1617 = vld [vmem:[#allocation10] sm:$0xff]
    %v1618 = vld [vmem:[#allocation10 + $0x8] sm:$0xff]
    %v1619 = vld [vmem:[#allocation10 + $0x10] sm:$0xff]
    %v1620 = vld [vmem:[#allocation10 + $0x18] sm:$0xff]
    %v1621 = vld [vmem:[#allocation10 + $0x20] sm:$0xff]
    %v1622 = vld [vmem:[#allocation10 + $0x28] sm:$0xff]
    %v1623 = vld [vmem:[#allocation10 + $0x30] sm:$0xff]
    %v1624 = vld [vmem:[#allocation10 + $0x38] sm:$0xff]
    %v1625 = vld [vmem:[#allocation10 + $0x40] sm:$0xff]
    %v1626 = vld [vmem:[#allocation10 + $0x48] sm:$0xff]
    %v1627 = vld [vmem:[#allocation10 + $0x50] sm:$0xff]
    %v1628 = vld [vmem:[#allocation10 + $0x58] sm:$0xff]
    %v1629 = vld [vmem:[#allocation10 + $0x60] sm:$0xff]
    %v1630 = vld [vmem:[#allocation10 + $0x68] sm:$0xff]
    %v1631 = vld [vmem:[#allocation10 + $0x70] sm:$0xff]
    %v1632 = vld [vmem:[#allocation10 + $0x78] sm:$0xff]
    %v1633 = vld [vmem:[#allocation10 + $0x80] sm:$0xff]
    %v1634 = vld [vmem:[#allocation10 + $0x88] sm:$0xff]
    %v1635 = vld [vmem:[#allocation10 + $0x90] sm:$0xff]
    %v1636 = vld [vmem:[#allocation10 + $0x98] sm:$0xff]
    %v1637 = vld [vmem:[#allocation10 + $0xa0] sm:$0xff]
    %v1638 = vld [vmem:[#allocation10 + $0xa8] sm:$0xff]
    %v1639 = vld [vmem:[#allocation10 + $0xb0] sm:$0xff]
    %v1640 = vld [vmem:[#allocation10 + $0xb8] sm:$0xff]
    %v1641 = vld [vmem:[#allocation10 + $0xc0] sm:$0xff]
    %v1642 = vld [vmem:[#allocation10 + $0xc8] sm:$0xff]
    %v1643 = vld [vmem:[#allocation10 + $0xd0] sm:$0xff]
    %v1644 = vld [vmem:[#allocation10 + $0xd8] sm:$0xff]
    %v1645 = vld [vmem:[#allocation10 + $0xe0] sm:$0xff]
    %v1646 = vld [vmem:[#allocation10 + $0xe8] sm:$0xff]
    %v1647 = vld [vmem:[#allocation10 + $0xf0] sm:$0xff]
    %v1648 = vld [vmem:[#allocation10 + $0xf8] sm:$0xff]
    %v1649 = vld [vmem:[#allocation10 + $0x100] sm:$0xff]
    %v1650 = vld [vmem:[#allocation10 + $0x108] sm:$0xff]
    %v1651 = vld [vmem:[#allocation10 + $0x110] sm:$0xff]
    %v1652 = vld [vmem:[#allocation10 + $0x118] sm:$0xff]
    %v1653 = vld [vmem:[#allocation10 + $0x120] sm:$0xff]
    %v1654 = vld [vmem:[#allocation10 + $0x128] sm:$0xff]
    %v1655 = vld [vmem:[#allocation10 + $0x130] sm:$0xff]
    %v1656 = vld [vmem:[#allocation10 + $0x138] sm:$0xff]
    %v1657 = vld [vmem:[#allocation10 + $0x140] sm:$0xff]
    %v1658 = vld [vmem:[#allocation10 + $0x148] sm:$0xff]
    %v1659 = vld [vmem:[#allocation10 + $0x150] sm:$0xff]
    %v1660 = vld [vmem:[#allocation10 + $0x158] sm:$0xff]
    %v1661 = vld [vmem:[#allocation10 + $0x160] sm:$0xff]
    %v1662 = vld [vmem:[#allocation10 + $0x168] sm:$0xff]
    %v1663 = vld [vmem:[#allocation10 + $0x170] sm:$0xff]
    %v1664 = vld [vmem:[#allocation10 + $0x178] sm:$0xff]
    %v1665 = vld [vmem:[#allocation10 + $0x180] sm:$0xff]
    %v1666 = vld [vmem:[#allocation10 + $0x188] sm:$0xff]
    %v1667 = vld [vmem:[#allocation10 + $0x190] sm:$0xff]
    %v1668 = vld [vmem:[#allocation10 + $0x198] sm:$0xff]
    %v1669 = vld [vmem:[#allocation10 + $0x1a0] sm:$0xff]
    %v1670 = vld [vmem:[#allocation10 + $0x1a8] sm:$0xff]
    %v1671 = vld [vmem:[#allocation10 + $0x1b0] sm:$0xff]
    %v1672 = vld [vmem:[#allocation10 + $0x1b8] sm:$0xff]
    %v1673 = vld [vmem:[#allocation10 + $0x1c0] sm:$0xff]
    %v1674 = vld [vmem:[#allocation10 + $0x1c8] sm:$0xff]
    %v1675 = vld [vmem:[#allocation10 + $0x1d0] sm:$0xff]
    %v1676 = vld [vmem:[#allocation10 + $0x1d8] sm:$0xff]
    %v1677 = vld [vmem:[#allocation10 + $0x1e0] sm:$0xff]
    %v1678 = vld [vmem:[#allocation10 + $0x1e8] sm:$0xff]
    %v1679 = vld [vmem:[#allocation10 + $0x1f0] sm:$0xff]
    %v1680 = vld [vmem:[#allocation10 + $0x1f8] sm:$0xff]
    %1681 = vmatprep.subr.mxu0 %v1618
    %1682 = vmatpush1.msra.mxu0 %v1617
    %1683 = vmatprep.subr.mxu0 %v1622
    %1684 = vmatpush1.msra.mxu0 %v1621
    %1685 = vmatprep.subr.mxu0 %v1626
    %1686 = vmatpush1.msra.mxu0 %v1625
    %1687 = vmatprep.subr.mxu0 %v1630
    %1688 = vmatpush1.msra.mxu0 %v1629
    %1689 = vmatprep.subr.mxu0 %v1634
    %1690 = vmatpush1.msra.mxu0 %v1633
    %1691 = vmatprep.subr.mxu0 %v1638
    %1692 = vmatpush1.msra.mxu0 %v1637
    %1693 = vmatprep.subr.mxu0 %v1642
    %1694 = vmatpush1.msra.mxu0 %v1641
    %1695 = vmatprep.subr.mxu0 %v1646
    %1696 = vmatpush1.msra.mxu0 %v1645
    %1697 = vmatprep.subr.mxu0 %v1650
    %1698 = vmatpush1.msra.mxu0 %v1649
    %1699 = vmatprep.subr.mxu0 %v1654
    %1700 = vmatpush1.msra.mxu0 %v1653
    %1701 = vmatprep.subr.mxu0 %v1658
    %1702 = vmatpush1.msra.mxu0 %v1657
    %1703 = vmatprep.subr.mxu0 %v1662
    %1704 = vmatpush1.msra.mxu0 %v1661
    %1705 = vmatprep.subr.mxu0 %v1666
    %1706 = vmatpush1.msra.mxu0 %v1665
    %1707 = vmatprep.subr.mxu0 %v1670
    %1708 = vmatpush1.msra.mxu0 %v1669
    %1709 = vmatprep.subr.mxu0 %v1674
    %1710 = vmatpush1.msra.mxu0 %v1673
    %1711 = vmatprep.subr.mxu0 %v1678
    %1712 = vmatpush1.msra.mxu0 %v1677
    %1713 = vmatprep.subr.mxu0 0.0
    %1714 = vmatpush1.msra.mxu0 0.0
    %1715 = vmatprep.subr.mxu0 0.0
    %1716 = vmatpush1.msra.mxu0 0.0
    %1717 = vmatprep.subr.mxu0 0.0
    %1718 = vmatpush1.msra.mxu0 0.0
    %1719 = vmatprep.subr.mxu0 0.0
    %1720 = vmatpush1.msra.mxu0 0.0
    %1721 = vmatprep.subr.mxu0 0.0
    %1722 = vmatpush1.msra.mxu0 0.0
    %1723 = vmatprep.subr.mxu0 0.0
    %1724 = vmatpush1.msra.mxu0 0.0
    %1725 = vmatprep.subr.mxu0 0.0
    %1726 = vmatpush1.msra.mxu0 0.0
    %1727 = vmatprep.subr.mxu0 0.0
    %1728 = vmatpush1.msra.mxu0 0.0
    %1729 = vmatprep.subr.mxu0 0.0
    %1730 = vmatpush1.msra.mxu0 0.0
    %1731 = vmatprep.subr.mxu0 0.0
    %1732 = vmatpush1.msra.mxu0 0.0
    %1733 = vmatprep.subr.mxu0 0.0
    %1734 = vmatpush1.msra.mxu0 0.0
    %1735 = vmatprep.subr.mxu0 0.0
    %1736 = vmatpush1.msra.mxu0 0.0
    %1737 = vmatprep.subr.mxu0 0.0
    %1738 = vmatpush1.msra.mxu0 0.0
    %1739 = vmatprep.subr.mxu0 0.0
    %1740 = vmatpush1.msra.mxu0 0.0
    %1741 = vmatprep.subr.mxu0 0.0
    %1742 = vmatpush1.msra.mxu0 0.0
    %1743 = vmatprep.subr.mxu0 0.0
    %1744 = vmatpush1.msra.mxu0 0.0
    %1745 = vmatprep.mubr.f32.mxu0 0.0
    %1746 = vmatmul.mubr.f32.gmra.mrb[0].mxu0 %v1616
    %v1747 = vpop.f32.mrb[0].mxu0
    %v1748 = vadd.f32 0.0, %v1747
    %v1749 = vpop.f32.mrb[0].mxu0
    %v1750 = vadd.f32 0.0, %v1749
    %1751 = vdwg.mxu0
    %1752 = vmatprep.subr.mxu0 %v1620
    %1753 = vmatpush1.msra.mxu0 %v1619
    %1754 = vmatprep.subr.mxu0 %v1624
    %1755 = vmatpush1.msra.mxu0 %v1623
    %1756 = vmatprep.subr.mxu0 %v1628
    %1757 = vmatpush1.msra.mxu0 %v1627
    %1758 = vmatprep.subr.mxu0 %v1632
    %1759 = vmatpush1.msra.mxu0 %v1631
    %1760 = vmatprep.subr.mxu0 %v1636
    %1761 = vmatpush1.msra.mxu0 %v1635
    %1762 = vmatprep.subr.mxu0 %v1640
    %1763 = vmatpush1.msra.mxu0 %v1639
    %1764 = vmatprep.subr.mxu0 %v1644
    %1765 = vmatpush1.msra.mxu0 %v1643
    %1766 = vmatprep.subr.mxu0 %v1648
    %1767 = vmatpush1.msra.mxu0 %v1647
    %1768 = vmatprep.subr.mxu0 %v1652
    %1769 = vmatpush1.msra.mxu0 %v1651
    %1770 = vmatprep.subr.mxu0 %v1656
    %1771 = vmatpush1.msra.mxu0 %v1655
    %1772 = vmatprep.subr.mxu0 %v1660
    %1773 = vmatpush1.msra.mxu0 %v1659
    %1774 = vmatprep.subr.mxu0 %v1664
    %1775 = vmatpush1.msra.mxu0 %v1663
    %1776 = vmatprep.subr.mxu0 %v1668
    %1777 = vmatpush1.msra.mxu0 %v1667
    %1778 = vmatprep.subr.mxu0 %v1672
    %1779 = vmatpush1.msra.mxu0 %v1671
    %1780 = vmatprep.subr.mxu0 %v1676
    %1781 = vmatpush1.msra.mxu0 %v1675
    %1782 = vmatprep.subr.mxu0 %v1680
    %1783 = vmatpush1.msra.mxu0 %v1679
    %1784 = vmatprep.subr.mxu0 0.0
    %1785 = vmatpush1.msra.mxu0 0.0
    %1786 = vmatprep.subr.mxu0 0.0
    %1787 = vmatpush1.msra.mxu0 0.0
    %1788 = vmatprep.subr.mxu0 0.0
    %1789 = vmatpush1.msra.mxu0 0.0
    %1790 = vmatprep.subr.mxu0 0.0
    %1791 = vmatpush1.msra.mxu0 0.0
    %1792 = vmatprep.subr.mxu0 0.0
    %1793 = vmatpush1.msra.mxu0 0.0
    %1794 = vmatprep.subr.mxu0 0.0
    %1795 = vmatpush1.msra.mxu0 0.0
    %1796 = vmatprep.subr.mxu0 0.0
    %1797 = vmatpush1.msra.mxu0 0.0
    %1798 = vmatprep.subr.mxu0 0.0
    %1799 = vmatpush1.msra.mxu0 0.0
    %1800 = vmatprep.subr.mxu0 0.0
    %1801 = vmatpush1.msra.mxu0 0.0
    %1802 = vmatprep.subr.mxu0 0.0
    %1803 = vmatpush1.msra.mxu0 0.0
    %1804 = vmatprep.subr.mxu0 0.0
    %1805 = vmatpush1.msra.mxu0 0.0
    %1806 = vmatprep.subr.mxu0 0.0
    %1807 = vmatpush1.msra.mxu0 0.0
    %1808 = vmatprep.subr.mxu0 0.0
    %1809 = vmatpush1.msra.mxu0 0.0
    %1810 = vmatprep.subr.mxu0 0.0
    %1811 = vmatpush1.msra.mxu0 0.0
    %1812 = vmatprep.subr.mxu0 0.0
    %1813 = vmatpush1.msra.mxu0 0.0
    %1814 = vmatprep.subr.mxu0 0.0
    %1815 = vmatpush1.msra.mxu0 0.0
    %1816 = vmatprep.mubr.f32.mxu0 0.0
    %1817 = vmatmul.mubr.f32.gmra.mrb[0].mxu0 %v1616
    %v1818 = vpop.f32.mrb[0].mxu0
    %v1819 = vadd.f32 0.0, %v1818
    %v1820 = vpop.f32.mrb[0].mxu0
    %v1821 = vadd.f32 0.0, %v1820
    %1822 = vdwg.mxu0
    %v1823 = vadd.f32 %v1612, %v1748
    %v1824 = vadd.f32 %v1613, %v1750
    %v1825 = vadd.f32 %v1614, %v1819
    %v1826 = vadd.f32 %v1615, %v1821
    %v1827 = vxor.u32 %v1823, 2147483648
    %v1828 = vmul.f32 %v1827, 1.442695
    %v1829 = vpow.pop %v1828
    %v1830 = vadd.f32 %v1829, 1.0
    %v1831 = vrcp.pop %v1830
    %v1832 = vmul.f32 1.0, %v1831
    %v1833 = vxor.u32 %v1824, 2147483648
    %v1834 = vmul.f32 %v1833, 1.442695
    %v1835 = vpow.pop %v1834
    %v1836 = vadd.f32 %v1835, 1.0
    %v1837 = vrcp.pop %v1836
    %v1838 = vmul.f32 1.0, %v1837
    %v1839 = vtanh.pop %v1825
    %v1840 = vxor.u32 %v1826, 2147483648
    %v1841 = vmul.f32 %v1840, 1.442695
    %v1842 = vpow.pop %v1841
    %v1843 = vadd.f32 %v1842, 1.0
    %v1844 = vrcp.pop %v1843
    %v1845 = vmul.f32 1.0, %v1844
    %v1846 = vld [vmem:[#allocation4] sm:$0xff]
    %v1847 = vmul.f32 %v1838, %v1846
    %v1848 = vmul.f32 %v1832, %v1839
    %v1849 = vadd.f32 %v1847, %v1848
    %v1850 = vtanh.pop %v1849
    %v1851 = vmul.f32 %v1845, %v1850
    %1852 = vst [vmem:[#allocation4] sm:$0xff] %v1849
    %1853 = vst [vmem:[#allocation3] sm:$0xff] %v1851
    %s1854 = scalar_lea.vmem [#allocation2], 192
    %v1855 = vld [vmem:[%s1854] sm:$0xff]
    %v1856 = vld [vmem:[%s1854 + $0x8] sm:$0xff]
    %v1857 = vld [vmem:[%s1854 + $0x10] sm:$0xff]
    %v1858 = vld [vmem:[%s1854 + $0x18] sm:$0xff]
    %v1859 = vld [vmem:[#allocation3] sm:$0xff]
    %v1860 = vld [vmem:[#allocation10] sm:$0xff]
    %v1861 = vld [vmem:[#allocation10 + $0x8] sm:$0xff]
    %v1862 = vld [vmem:[#allocation10 + $0x10] sm:$0xff]
    %v1863 = vld [vmem:[#allocation10 + $0x18] sm:$0xff]
    %v1864 = vld [vmem:[#allocation10 + $0x20] sm:$0xff]
    %v1865 = vld [vmem:[#allocation10 + $0x28] sm:$0xff]
    %v1866 = vld [vmem:[#allocation10 + $0x30] sm:$0xff]
    %v1867 = vld [vmem:[#allocation10 + $0x38] sm:$0xff]
    %v1868 = vld [vmem:[#allocation10 + $0x40] sm:$0xff]
    %v1869 = vld [vmem:[#allocation10 + $0x48] sm:$0xff]
    %v1870 = vld [vmem:[#allocation10 + $0x50] sm:$0xff]
    %v1871 = vld [vmem:[#allocation10 + $0x58] sm:$0xff]
    %v1872 = vld [vmem:[#allocation10 + $0x60] sm:$0xff]
    %v1873 = vld [vmem:[#allocation10 + $0x68] sm:$0xff]
    %v1874 = vld [vmem:[#allocation10 + $0x70] sm:$0xff]
    %v1875 = vld [vmem:[#allocation10 + $0x78] sm:$0xff]
    %v1876 = vld [vmem:[#allocation10 + $0x80] sm:$0xff]
    %v1877 = vld [vmem:[#allocation10 + $0x88] sm:$0xff]
    %v1878 = vld [vmem:[#allocation10 + $0x90] sm:$0xff]
    %v1879 = vld [vmem:[#allocation10 + $0x98] sm:$0xff]
    %v1880 = vld [vmem:[#allocation10 + $0xa0] sm:$0xff]
    %v1881 = vld [vmem:[#allocation10 + $0xa8] sm:$0xff]
    %v1882 = vld [vmem:[#allocation10 + $0xb0] sm:$0xff]
    %v1883 = vld [vmem:[#allocation10 + $0xb8] sm:$0xff]
    %v1884 = vld [vmem:[#allocation10 + $0xc0] sm:$0xff]
    %v1885 = vld [vmem:[#allocation10 + $0xc8] sm:$0xff]
    %v1886 = vld [vmem:[#allocation10 + $0xd0] sm:$0xff]
    %v1887 = vld [vmem:[#allocation10 + $0xd8] sm:$0xff]
    %v1888 = vld [vmem:[#allocation10 + $0xe0] sm:$0xff]
    %v1889 = vld [vmem:[#allocation10 + $0xe8] sm:$0xff]
    %v1890 = vld [vmem:[#allocation10 + $0xf0] sm:$0xff]
    %v1891 = vld [vmem:[#allocation10 + $0xf8] sm:$0xff]
    %v1892 = vld [vmem:[#allocation10 + $0x100] sm:$0xff]
    %v1893 = vld [vmem:[#allocation10 + $0x108] sm:$0xff]
    %v1894 = vld [vmem:[#allocation10 + $0x110] sm:$0xff]
    %v1895 = vld [vmem:[#allocation10 + $0x118] sm:$0xff]
    %v1896 = vld [vmem:[#allocation10 + $0x120] sm:$0xff]
    %v1897 = vld [vmem:[#allocation10 + $0x128] sm:$0xff]
    %v1898 = vld [vmem:[#allocation10 + $0x130] sm:$0xff]
    %v1899 = vld [vmem:[#allocation10 + $0x138] sm:$0xff]
    %v1900 = vld [vmem:[#allocation10 + $0x140] sm:$0xff]
    %v1901 = vld [vmem:[#allocation10 + $0x148] sm:$0xff]
    %v1902 = vld [vmem:[#allocation10 + $0x150] sm:$0xff]
    %v1903 = vld [vmem:[#allocation10 + $0x158] sm:$0xff]
    %v1904 = vld [vmem:[#allocation10 + $0x160] sm:$0xff]
    %v1905 = vld [vmem:[#allocation10 + $0x168] sm:$0xff]
    %v1906 = vld [vmem:[#allocation10 + $0x170] sm:$0xff]
    %v1907 = vld [vmem:[#allocation10 + $0x178] sm:$0xff]
    %v1908 = vld [vmem:[#allocation10 + $0x180] sm:$0xff]
    %v1909 = vld [vmem:[#allocation10 + $0x188] sm:$0xff]
    %v1910 = vld [vmem:[#allocation10 + $0x190] sm:$0xff]
    %v1911 = vld [vmem:[#allocation10 + $0x198] sm:$0xff]
    %v1912 = vld [vmem:[#allocation10 + $0x1a0] sm:$0xff]
    %v1913 = vld [vmem:[#allocation10 + $0x1a8] sm:$0xff]
    %v1914 = vld [vmem:[#allocation10 + $0x1b0] sm:$0xff]
    %v1915 = vld [vmem:[#allocation10 + $0x1b8] sm:$0xff]
    %v1916 = vld [vmem:[#allocation10 + $0x1c0] sm:$0xff]
    %v1917 = vld [vmem:[#allocation10 + $0x1c8] sm:$0xff]
    %v1918 = vld [vmem:[#allocation10 + $0x1d0] sm:$0xff]
    %v1919 = vld [vmem:[#allocation10 + $0x1d8] sm:$0xff]
    %v1920 = vld [vmem:[#allocation10 + $0x1e0] sm:$0xff]
    %v1921 = vld [vmem:[#allocation10 + $0x1e8] sm:$0xff]
    %v1922 = vld [vmem:[#allocation10 + $0x1f0] sm:$0xff]
    %v1923 = vld [vmem:[#allocation10 + $0x1f8] sm:$0xff]
    %1924 = vmatprep.subr.mxu0 %v1861
    %1925 = vmatpush1.msra.mxu0 %v1860
    %1926 = vmatprep.subr.mxu0 %v1865
    %1927 = vmatpush1.msra.mxu0 %v1864
    %1928 = vmatprep.subr.mxu0 %v1869
    %1929 = vmatpush1.msra.mxu0 %v1868
    %1930 = vmatprep.subr.mxu0 %v1873
    %1931 = vmatpush1.msra.mxu0 %v1872
    %1932 = vmatprep.subr.mxu0 %v1877
    %1933 = vmatpush1.msra.mxu0 %v1876
    %1934 = vmatprep.subr.mxu0 %v1881
    %1935 = vmatpush1.msra.mxu0 %v1880
    %1936 = vmatprep.subr.mxu0 %v1885
    %1937 = vmatpush1.msra.mxu0 %v1884
    %1938 = vmatprep.subr.mxu0 %v1889
    %1939 = vmatpush1.msra.mxu0 %v1888
    %1940 = vmatprep.subr.mxu0 %v1893
    %1941 = vmatpush1.msra.mxu0 %v1892
    %1942 = vmatprep.subr.mxu0 %v1897
    %1943 = vmatpush1.msra.mxu0 %v1896
    %1944 = vmatprep.subr.mxu0 %v1901
    %1945 = vmatpush1.msra.mxu0 %v1900
    %1946 = vmatprep.subr.mxu0 %v1905
    %1947 = vmatpush1.msra.mxu0 %v1904
    %1948 = vmatprep.subr.mxu0 %v1909
    %1949 = vmatpush1.msra.mxu0 %v1908
    %1950 = vmatprep.subr.mxu0 %v1913
    %1951 = vmatpush1.msra.mxu0 %v1912
    %1952 = vmatprep.subr.mxu0 %v1917
    %1953 = vmatpush1.msra.mxu0 %v1916
    %1954 = vmatprep.subr.mxu0 %v1921
    %1955 = vmatpush1.msra.mxu0 %v1920
    %1956 = vmatprep.subr.mxu0 0.0
    %1957 = vmatpush1.msra.mxu0 0.0
    %1958 = vmatprep.subr.mxu0 0.0
    %1959 = vmatpush1.msra.mxu0 0.0
    %1960 = vmatprep.subr.mxu0 0.0
    %1961 = vmatpush1.msra.mxu0 0.0
    %1962 = vmatprep.subr.mxu0 0.0
    %1963 = vmatpush1.msra.mxu0 0.0
    %1964 = vmatprep.subr.mxu0 0.0
    %1965 = vmatpush1.msra.mxu0 0.0
    %1966 = vmatprep.subr.mxu0 0.0
    %1967 = vmatpush1.msra.mxu0 0.0
    %1968 = vmatprep.subr.mxu0 0.0
    %1969 = vmatpush1.msra.mxu0 0.0
    %1970 = vmatprep.subr.mxu0 0.0
    %1971 = vmatpush1.msra.mxu0 0.0
    %1972 = vmatprep.subr.mxu0 0.0
    %1973 = vmatpush1.msra.mxu0 0.0
    %1974 = vmatprep.subr.mxu0 0.0
    %1975 = vmatpush1.msra.mxu0 0.0
    %1976 = vmatprep.subr.mxu0 0.0
    %1977 = vmatpush1.msra.mxu0 0.0
    %1978 = vmatprep.subr.mxu0 0.0
    %1979 = vmatpush1.msra.mxu0 0.0
    %1980 = vmatprep.subr.mxu0 0.0
    %1981 = vmatpush1.msra.mxu0 0.0
    %1982 = vmatprep.subr.mxu0 0.0
    %1983 = vmatpush1.msra.mxu0 0.0
    %1984 = vmatprep.subr.mxu0 0.0
    %1985 = vmatpush1.msra.mxu0 0.0
    %1986 = vmatprep.subr.mxu0 0.0
    %1987 = vmatpush1.msra.mxu0 0.0
    %1988 = vmatprep.mubr.f32.mxu0 0.0
    %1989 = vmatmul.mubr.f32.gmra.mrb[0].mxu0 %v1859
    %v1990 = vpop.f32.mrb[0].mxu0
    %v1991 = vadd.f32 0.0, %v1990
    %v1992 = vpop.f32.mrb[0].mxu0
    %v1993 = vadd.f32 0.0, %v1992
    %1994 = vdwg.mxu0
    %1995 = vmatprep.subr.mxu0 %v1863
    %1996 = vmatpush1.msra.mxu0 %v1862
    %1997 = vmatprep.subr.mxu0 %v1867
    %1998 = vmatpush1.msra.mxu0 %v1866
    %1999 = vmatprep.subr.mxu0 %v1871
    %2000 = vmatpush1.msra.mxu0 %v1870
    %2001 = vmatprep.subr.mxu0 %v1875
    %2002 = vmatpush1.msra.mxu0 %v1874
    %2003 = vmatprep.subr.mxu0 %v1879
    %2004 = vmatpush1.msra.mxu0 %v1878
    %2005 = vmatprep.subr.mxu0 %v1883
    %2006 = vmatpush1.msra.mxu0 %v1882
    %2007 = vmatprep.subr.mxu0 %v1887
    %2008 = vmatpush1.msra.mxu0 %v1886
    %2009 = vmatprep.subr.mxu0 %v1891
    %2010 = vmatpush1.msra.mxu0 %v1890
    %2011 = vmatprep.subr.mxu0 %v1895
    %2012 = vmatpush1.msra.mxu0 %v1894
    %2013 = vmatprep.subr.mxu0 %v1899
    %2014 = vmatpush1.msra.mxu0 %v1898
    %2015 = vmatprep.subr.mxu0 %v1903
    %2016 = vmatpush1.msra.mxu0 %v1902
    %2017 = vmatprep.subr.mxu0 %v1907
    %2018 = vmatpush1.msra.mxu0 %v1906
    %2019 = vmatprep.subr.mxu0 %v1911
    %2020 = vmatpush1.msra.mxu0 %v1910
    %2021 = vmatprep.subr.mxu0 %v1915
    %2022 = vmatpush1.msra.mxu0 %v1914
    %2023 = vmatprep.subr.mxu0 %v1919
    %2024 = vmatpush1.msra.mxu0 %v1918
    %2025 = vmatprep.subr.mxu0 %v1923
    %2026 = vmatpush1.msra.mxu0 %v1922
    %2027 = vmatprep.subr.mxu0 0.0
    %2028 = vmatpush1.msra.mxu0 0.0
    %2029 = vmatprep.subr.mxu0 0.0
    %2030 = vmatpush1.msra.mxu0 0.0
    %2031 = vmatprep.subr.mxu0 0.0
    %2032 = vmatpush1.msra.mxu0 0.0
    %2033 = vmatprep.subr.mxu0 0.0
    %2034 = vmatpush1.msra.mxu0 0.0
    %2035 = vmatprep.subr.mxu0 0.0
    %2036 = vmatpush1.msra.mxu0 0.0
    %2037 = vmatprep.subr.mxu0 0.0
    %2038 = vmatpush1.msra.mxu0 0.0
    %2039 = vmatprep.subr.mxu0 0.0
    %2040 = vmatpush1.msra.mxu0 0.0
    %2041 = vmatprep.subr.mxu0 0.0
    %2042 = vmatpush1.msra.mxu0 0.0
    %2043 = vmatprep.subr.mxu0 0.0
    %2044 = vmatpush1.msra.mxu0 0.0
    %2045 = vmatprep.subr.mxu0 0.0
    %2046 = vmatpush1.msra.mxu0 0.0
    %2047 = vmatprep.subr.mxu0 0.0
    %2048 = vmatpush1.msra.mxu0 0.0
    %2049 = vmatprep.subr.mxu0 0.0
    %2050 = vmatpush1.msra.mxu0 0.0
    %2051 = vmatprep.subr.mxu0 0.0
    %2052 = vmatpush1.msra.mxu0 0.0
    %2053 = vmatprep.subr.mxu0 0.0
    %2054 = vmatpush1.msra.mxu0 0.0
    %2055 = vmatprep.subr.mxu0 0.0
    %2056 = vmatpush1.msra.mxu0 0.0
    %2057 = vmatprep.subr.mxu0 0.0
    %2058 = vmatpush1.msra.mxu0 0.0
    %2059 = vmatprep.mubr.f32.mxu0 0.0
    %2060 = vmatmul.mubr.f32.gmra.mrb[0].mxu0 %v1859
    %v2061 = vpop.f32.mrb[0].mxu0
    %v2062 = vadd.f32 0.0, %v2061
    %v2063 = vpop.f32.mrb[0].mxu0
    %v2064 = vadd.f32 0.0, %v2063
    %2065 = vdwg.mxu0
    %v2066 = vadd.f32 %v1855, %v1991
    %v2067 = vadd.f32 %v1856, %v1993
    %v2068 = vadd.f32 %v1857, %v2062
    %v2069 = vadd.f32 %v1858, %v2064
    %v2070 = vxor.u32 %v2066, 2147483648
    %v2071 = vmul.f32 %v2070, 1.442695
    %v2072 = vpow.pop %v2071
    %v2073 = vadd.f32 %v2072, 1.0
    %v2074 = vrcp.pop %v2073
    %v2075 = vmul.f32 1.0, %v2074
    %v2076 = vxor.u32 %v2067, 2147483648
    %v2077 = vmul.f32 %v2076, 1.442695
    %v2078 = vpow.pop %v2077
    %v2079 = vadd.f32 %v2078, 1.0
    %v2080 = vrcp.pop %v2079
    %v2081 = vmul.f32 1.0, %v2080
    %v2082 = vtanh.pop %v2068
    %v2083 = vxor.u32 %v2069, 2147483648
    %v2084 = vmul.f32 %v2083, 1.442695
    %v2085 = vpow.pop %v2084
    %v2086 = vadd.f32 %v2085, 1.0
    %v2087 = vrcp.pop %v2086
    %v2088 = vmul.f32 1.0, %v2087
    %v2089 = vld [vmem:[#allocation4] sm:$0xff]
    %v2090 = vmul.f32 %v2081, %v2089
    %v2091 = vmul.f32 %v2075, %v2082
    %v2092 = vadd.f32 %v2090, %v2091
    %v2093 = vtanh.pop %v2092
    %v2094 = vmul.f32 %v2088, %v2093
    %2095 = vst [vmem:[#allocation4] sm:$0xff] %v2092
    %2096 = vst [vmem:[#allocation3] sm:$0xff] %v2094
    %s2097 = scalar_lea.vmem [#allocation2], 224
    %v2098 = vld [vmem:[%s2097] sm:$0xff]
    %v2099 = vld [vmem:[%s2097 + $0x8] sm:$0xff]
    %v2100 = vld [vmem:[%s2097 + $0x10] sm:$0xff]
    %v2101 = vld [vmem:[%s2097 + $0x18] sm:$0xff]
    %v2102 = vld [vmem:[#allocation3] sm:$0xff]
    %v2103 = vld [vmem:[#allocation10] sm:$0xff]
    %v2104 = vld [vmem:[#allocation10 + $0x8] sm:$0xff]
    %v2105 = vld [vmem:[#allocation10 + $0x10] sm:$0xff]
    %v2106 = vld [vmem:[#allocation10 + $0x18] sm:$0xff]
    %v2107 = vld [vmem:[#allocation10 + $0x20] sm:$0xff]
    %v2108 = vld [vmem:[#allocation10 + $0x28] sm:$0xff]
    %v2109 = vld [vmem:[#allocation10 + $0x30] sm:$0xff]
    %v2110 = vld [vmem:[#allocation10 + $0x38] sm:$0xff]
    %v2111 = vld [vmem:[#allocation10 + $0x40] sm:$0xff]
    %v2112 = vld [vmem:[#allocation10 + $0x48] sm:$0xff]
    %v2113 = vld [vmem:[#allocation10 + $0x50] sm:$0xff]
    %v2114 = vld [vmem:[#allocation10 + $0x58] sm:$0xff]
    %v2115 = vld [vmem:[#allocation10 + $0x60] sm:$0xff]
    %v2116 = vld [vmem:[#allocation10 + $0x68] sm:$0xff]
    %v2117 = vld [vmem:[#allocation10 + $0x70] sm:$0xff]
    %v2118 = vld [vmem:[#allocation10 + $0x78] sm:$0xff]
    %v2119 = vld [vmem:[#allocation10 + $0x80] sm:$0xff]
    %v2120 = vld [vmem:[#allocation10 + $0x88] sm:$0xff]
    %v2121 = vld [vmem:[#allocation10 + $0x90] sm:$0xff]
    %v2122 = vld [vmem:[#allocation10 + $0x98] sm:$0xff]
    %v2123 = vld [vmem:[#allocation10 + $0xa0] sm:$0xff]
    %v2124 = vld [vmem:[#allocation10 + $0xa8] sm:$0xff]
    %v2125 = vld [vmem:[#allocation10 + $0xb0] sm:$0xff]
    %v2126 = vld [vmem:[#allocation10 + $0xb8] sm:$0xff]
    %v2127 = vld [vmem:[#allocation10 + $0xc0] sm:$0xff]
    %v2128 = vld [vmem:[#allocation10 + $0xc8] sm:$0xff]
    %v2129 = vld [vmem:[#allocation10 + $0xd0] sm:$0xff]
    %v2130 = vld [vmem:[#allocation10 + $0xd8] sm:$0xff]
    %v2131 = vld [vmem:[#allocation10 + $0xe0] sm:$0xff]
    %v2132 = vld [vmem:[#allocation10 + $0xe8] sm:$0xff]
    %v2133 = vld [vmem:[#allocation10 + $0xf0] sm:$0xff]
    %v2134 = vld [vmem:[#allocation10 + $0xf8] sm:$0xff]
    %v2135 = vld [vmem:[#allocation10 + $0x100] sm:$0xff]
    %v2136 = vld [vmem:[#allocation10 + $0x108] sm:$0xff]
    %v2137 = vld [vmem:[#allocation10 + $0x110] sm:$0xff]
    %v2138 = vld [vmem:[#allocation10 + $0x118] sm:$0xff]
    %v2139 = vld [vmem:[#allocation10 + $0x120] sm:$0xff]
    %v2140 = vld [vmem:[#allocation10 + $0x128] sm:$0xff]
    %v2141 = vld [vmem:[#allocation10 + $0x130] sm:$0xff]
    %v2142 = vld [vmem:[#allocation10 + $0x138] sm:$0xff]
    %v2143 = vld [vmem:[#allocation10 + $0x140] sm:$0xff]
    %v2144 = vld [vmem:[#allocation10 + $0x148] sm:$0xff]
    %v2145 = vld [vmem:[#allocation10 + $0x150] sm:$0xff]
    %v2146 = vld [vmem:[#allocation10 + $0x158] sm:$0xff]
    %v2147 = vld [vmem:[#allocation10 + $0x160] sm:$0xff]
    %v2148 = vld [vmem:[#allocation10 + $0x168] sm:$0xff]
    %v2149 = vld [vmem:[#allocation10 + $0x170] sm:$0xff]
    %v2150 = vld [vmem:[#allocation10 + $0x178] sm:$0xff]
    %v2151 = vld [vmem:[#allocation10 + $0x180] sm:$0xff]
    %v2152 = vld [vmem:[#allocation10 + $0x188] sm:$0xff]
    %v2153 = vld [vmem:[#allocation10 + $0x190] sm:$0xff]
    %v2154 = vld [vmem:[#allocation10 + $0x198] sm:$0xff]
    %v2155 = vld [vmem:[#allocation10 + $0x1a0] sm:$0xff]
    %v2156 = vld [vmem:[#allocation10 + $0x1a8] sm:$0xff]
    %v2157 = vld [vmem:[#allocation10 + $0x1b0] sm:$0xff]
    %v2158 = vld [vmem:[#allocation10 + $0x1b8] sm:$0xff]
    %v2159 = vld [vmem:[#allocation10 + $0x1c0] sm:$0xff]
    %v2160 = vld [vmem:[#allocation10 + $0x1c8] sm:$0xff]
    %v2161 = vld [vmem:[#allocation10 + $0x1d0] sm:$0xff]
    %v2162 = vld [vmem:[#allocation10 + $0x1d8] sm:$0xff]
    %v2163 = vld [vmem:[#allocation10 + $0x1e0] sm:$0xff]
    %v2164 = vld [vmem:[#allocation10 + $0x1e8] sm:$0xff]
    %v2165 = vld [vmem:[#allocation10 + $0x1f0] sm:$0xff]
    %v2166 = vld [vmem:[#allocation10 + $0x1f8] sm:$0xff]
    %2167 = vmatprep.subr.mxu0 %v2104
    %2168 = vmatpush1.msra.mxu0 %v2103
    %2169 = vmatprep.subr.mxu0 %v2108
    %2170 = vmatpush1.msra.mxu0 %v2107
    %2171 = vmatprep.subr.mxu0 %v2112
    %2172 = vmatpush1.msra.mxu0 %v2111
    %2173 = vmatprep.subr.mxu0 %v2116
    %2174 = vmatpush1.msra.mxu0 %v2115
    %2175 = vmatprep.subr.mxu0 %v2120
    %2176 = vmatpush1.msra.mxu0 %v2119
    %2177 = vmatprep.subr.mxu0 %v2124
    %2178 = vmatpush1.msra.mxu0 %v2123
    %2179 = vmatprep.subr.mxu0 %v2128
    %2180 = vmatpush1.msra.mxu0 %v2127
    %2181 = vmatprep.subr.mxu0 %v2132
    %2182 = vmatpush1.msra.mxu0 %v2131
    %2183 = vmatprep.subr.mxu0 %v2136
    %2184 = vmatpush1.msra.mxu0 %v2135
    %2185 = vmatprep.subr.mxu0 %v2140
    %2186 = vmatpush1.msra.mxu0 %v2139
    %2187 = vmatprep.subr.mxu0 %v2144
    %2188 = vmatpush1.msra.mxu0 %v2143
    %2189 = vmatprep.subr.mxu0 %v2148
    %2190 = vmatpush1.msra.mxu0 %v2147
    %2191 = vmatprep.subr.mxu0 %v2152
    %2192 = vmatpush1.msra.mxu0 %v2151
    %2193 = vmatprep.subr.mxu0 %v2156
    %2194 = vmatpush1.msra.mxu0 %v2155
    %2195 = vmatprep.subr.mxu0 %v2160
    %2196 = vmatpush1.msra.mxu0 %v2159
    %2197 = vmatprep.subr.mxu0 %v2164
    %2198 = vmatpush1.msra.mxu0 %v2163
    %2199 = vmatprep.subr.mxu0 0.0
    %2200 = vmatpush1.msra.mxu0 0.0
    %2201 = vmatprep.subr.mxu0 0.0
    %2202 = vmatpush1.msra.mxu0 0.0
    %2203 = vmatprep.subr.mxu0 0.0
    %2204 = vmatpush1.msra.mxu0 0.0
    %2205 = vmatprep.subr.mxu0 0.0
    %2206 = vmatpush1.msra.mxu0 0.0
    %2207 = vmatprep.subr.mxu0 0.0
    %2208 = vmatpush1.msra.mxu0 0.0
    %2209 = vmatprep.subr.mxu0 0.0
    %2210 = vmatpush1.msra.mxu0 0.0
    %2211 = vmatprep.subr.mxu0 0.0
    %2212 = vmatpush1.msra.mxu0 0.0
    %2213 = vmatprep.subr.mxu0 0.0
    %2214 = vmatpush1.msra.mxu0 0.0
    %2215 = vmatprep.subr.mxu0 0.0
    %2216 = vmatpush1.msra.mxu0 0.0
    %2217 = vmatprep.subr.mxu0 0.0
    %2218 = vmatpush1.msra.mxu0 0.0
    %2219 = vmatprep.subr.mxu0 0.0
    %2220 = vmatpush1.msra.mxu0 0.0
    %2221 = vmatprep.subr.mxu0 0.0
    %2222 = vmatpush1.msra.mxu0 0.0
    %2223 = vmatprep.subr.mxu0 0.0
    %2224 = vmatpush1.msra.mxu0 0.0
    %2225 = vmatprep.subr.mxu0 0.0
    %2226 = vmatpush1.msra.mxu0 0.0
    %2227 = vmatprep.subr.mxu0 0.0
    %2228 = vmatpush1.msra.mxu0 0.0
    %2229 = vmatprep.subr.mxu0 0.0
    %2230 = vmatpush1.msra.mxu0 0.0
    %2231 = vmatprep.mubr.f32.mxu0 0.0
    %2232 = vmatmul.mubr.f32.gmra.mrb[0].mxu0 %v2102
    %v2233 = vpop.f32.mrb[0].mxu0
    %v2234 = vadd.f32 0.0, %v2233
    %v2235 = vpop.f32.mrb[0].mxu0
    %v2236 = vadd.f32 0.0, %v2235
    %2237 = vdwg.mxu0
    %2238 = vmatprep.subr.mxu0 %v2106
    %2239 = vmatpush1.msra.mxu0 %v2105
    %2240 = vmatprep.subr.mxu0 %v2110
    %2241 = vmatpush1.msra.mxu0 %v2109
    %2242 = vmatprep.subr.mxu0 %v2114
    %2243 = vmatpush1.msra.mxu0 %v2113
    %2244 = vmatprep.subr.mxu0 %v2118
    %2245 = vmatpush1.msra.mxu0 %v2117
    %2246 = vmatprep.subr.mxu0 %v2122
    %2247 = vmatpush1.msra.mxu0 %v2121
    %2248 = vmatprep.subr.mxu0 %v2126
    %2249 = vmatpush1.msra.mxu0 %v2125
    %2250 = vmatprep.subr.mxu0 %v2130
    %2251 = vmatpush1.msra.mxu0 %v2129
    %2252 = vmatprep.subr.mxu0 %v2134
    %2253 = vmatpush1.msra.mxu0 %v2133
    %2254 = vmatprep.subr.mxu0 %v2138
    %2255 = vmatpush1.msra.mxu0 %v2137
    %2256 = vmatprep.subr.mxu0 %v2142
    %2257 = vmatpush1.msra.mxu0 %v2141
    %2258 = vmatprep.subr.mxu0 %v2146
    %2259 = vmatpush1.msra.mxu0 %v2145
    %2260 = vmatprep.subr.mxu0 %v2150
    %2261 = vmatpush1.msra.mxu0 %v2149
    %2262 = vmatprep.subr.mxu0 %v2154
    %2263 = vmatpush1.msra.mxu0 %v2153
    %2264 = vmatprep.subr.mxu0 %v2158
    %2265 = vmatpush1.msra.mxu0 %v2157
    %2266 = vmatprep.subr.mxu0 %v2162
    %2267 = vmatpush1.msra.mxu0 %v2161
    %2268 = vmatprep.subr.mxu0 %v2166
    %2269 = vmatpush1.msra.mxu0 %v2165
    %2270 = vmatprep.subr.mxu0 0.0
    %2271 = vmatpush1.msra.mxu0 0.0
    %2272 = vmatprep.subr.mxu0 0.0
    %2273 = vmatpush1.msra.mxu0 0.0
    %2274 = vmatprep.subr.mxu0 0.0
    %2275 = vmatpush1.msra.mxu0 0.0
    %2276 = vmatprep.subr.mxu0 0.0
    %2277 = vmatpush1.msra.mxu0 0.0
    %2278 = vmatprep.subr.mxu0 0.0
    %2279 = vmatpush1.msra.mxu0 0.0
    %2280 = vmatprep.subr.mxu0 0.0
    %2281 = vmatpush1.msra.mxu0 0.0
    %2282 = vmatprep.subr.mxu0 0.0
    %2283 = vmatpush1.msra.mxu0 0.0
    %2284 = vmatprep.subr.mxu0 0.0
    %2285 = vmatpush1.msra.mxu0 0.0
    %2286 = vmatprep.subr.mxu0 0.0
    %2287 = vmatpush1.msra.mxu0 0.0
    %2288 = vmatprep.subr.mxu0 0.0
    %2289 = vmatpush1.msra.mxu0 0.0
    %2290 = vmatprep.subr.mxu0 0.0
    %2291 = vmatpush1.msra.mxu0 0.0
    %2292 = vmatprep.subr.mxu0 0.0
    %2293 = vmatpush1.msra.mxu0 0.0
    %2294 = vmatprep.subr.mxu0 0.0
    %2295 = vmatpush1.msra.mxu0 0.0
    %2296 = vmatprep.subr.mxu0 0.0
    %2297 = vmatpush1.msra.mxu0 0.0
    %2298 = vmatprep.subr.mxu0 0.0
    %2299 = vmatpush1.msra.mxu0 0.0
    %2300 = vmatprep.subr.mxu0 0.0
    %2301 = vmatpush1.msra.mxu0 0.0
    %2302 = vmatprep.mubr.f32.mxu0 0.0
    %2303 = vmatmul.mubr.f32.gmra.mrb[0].mxu0 %v2102
    %v2304 = vpop.f32.mrb[0].mxu0
    %v2305 = vadd.f32 0.0, %v2304
    %v2306 = vpop.f32.mrb[0].mxu0
    %v2307 = vadd.f32 0.0, %v2306
    %2308 = vdwg.mxu0
    %v2309 = vadd.f32 %v2098, %v2234
    %v2310 = vadd.f32 %v2099, %v2236
    %v2311 = vadd.f32 %v2100, %v2305
    %v2312 = vadd.f32 %v2101, %v2307
    %v2313 = vxor.u32 %v2309, 2147483648
    %v2314 = vmul.f32 %v2313, 1.442695
    %v2315 = vpow.pop %v2314
    %v2316 = vadd.f32 %v2315, 1.0
    %v2317 = vrcp.pop %v2316
    %v2318 = vmul.f32 1.0, %v2317
    %v2319 = vxor.u32 %v2310, 2147483648
    %v2320 = vmul.f32 %v2319, 1.442695
    %v2321 = vpow.pop %v2320
    %v2322 = vadd.f32 %v2321, 1.0
    %v2323 = vrcp.pop %v2322
    %v2324 = vmul.f32 1.0, %v2323
    %v2325 = vtanh.pop %v2311
    %v2326 = vxor.u32 %v2312, 2147483648
    %v2327 = vmul.f32 %v2326, 1.442695
    %v2328 = vpow.pop %v2327
    %v2329 = vadd.f32 %v2328, 1.0
    %v2330 = vrcp.pop %v2329
    %v2331 = vmul.f32 1.0, %v2330
    %v2332 = vld [vmem:[#allocation4] sm:$0xff]
    %v2333 = vmul.f32 %v2324, %v2332
    %v2334 = vmul.f32 %v2318, %v2325
    %v2335 = vadd.f32 %v2333, %v2334
    %v2336 = vtanh.pop %v2335
    %v2337 = vmul.f32 %v2331, %v2336
    %2338 = vst [vmem:[#allocation4] sm:$0xff] %v2335
    %2339 = vst [vmem:[#allocation3] sm:$0xff] %v2337
    // Predicated region
    $region34: #{tpu_custom_call.1} parent=1 // pred_check
      %p2340 = pneg %p62
    $region35: #{tpu_custom_call.1} parent=1 // pred_check_branch
      %2342 = sbr.rel (%p2340) target = $region37
    $region36: #{tpu_custom_call.1} parent=1 // pred_region
      %v2343 = vld [vmem:[#allocation3] sm:$0xff]
      %2344 = vst [vmem:[#allocation11] sm:$0xff] %v2343
      %v2345 = vld [vmem:[#allocation4] sm:$0xff]
      %2346 = vst [vmem:[#allocation12] sm:$0xff] %v2345
    $region37: #{tpu_custom_call.1} parent=1 // pred_fallthru
      _
    // Predicated region
    $region38: #{tpu_custom_call.1} parent=1 // pred_check
      _
    $region39: #{tpu_custom_call.1} parent=1 // pred_check_branch
      %2348 = sbr.rel (0) target = $region41
    $region40: #{tpu_custom_call.1} parent=1 // pred_region
      %s2350 = ssub.s32 128, 128
      %2351 = vsyncadd [#allocation7], %s2350
      %s2353 = sshll.u32 [#allocation11], 4
      %s2354 = int_to_ptr.vmem [resolvable:$true] %s2353
      %2356 = dma.vmem_to_hbm [thread:$0]  %s2354, 128, %s4, [#allocation7]
    $region41: #{tpu_custom_call.1} parent=1 // pred_fallthru
      _
    // Predicated region
    $region42: #{tpu_custom_call.1} parent=1 // pred_check
      _
    $region43: #{tpu_custom_call.1} parent=1 // pred_check_branch
      %2358 = sbr.rel (0) target = $region45
    $region44: #{tpu_custom_call.1} parent=1 // pred_region
      %s2360 = ssub.s32 128, 128
      %2361 = vsyncadd [#allocation13], %s2360
      %s2363 = sshll.u32 [#allocation12], 4
      %s2364 = int_to_ptr.vmem [resolvable:$true] %s2363
      %2366 = dma.vmem_to_hbm [thread:$0]  %s2364, 128, %s5, [#allocation13]
    $region45: #{tpu_custom_call.1} parent=1 // pred_fallthru
      _
    // Predicated region
    $region46: #{tpu_custom_call.1} parent=1 // pred_check
      _
    $region47: #{tpu_custom_call.1} parent=1 // pred_check_branch
      %2368 = sbr.rel (0) target = $region49
    $region48: #{tpu_custom_call.1} parent=1 // pred_region
      %2369 = dma.done [#allocation7], 128
    $region49: #{tpu_custom_call.1} parent=1 // pred_fallthru
      _
    // Predicated region
    $region50: #{tpu_custom_call.1} parent=1 // pred_check
      _
    $region51: #{tpu_custom_call.1} parent=1 // pred_check_branch
      %2371 = sbr.rel (0) target = $region53
    $region52: #{tpu_custom_call.1} parent=1 // pred_region
      %2372 = dma.done [#allocation13], 128
    $region53: #{tpu_custom_call.1} parent=1 // pred_fallthru
      _
    %2373 = vsyncpa [#allocation6], 1
    %2374 = vsyncpa [#allocation9], 1
    %2375 = vsyncpa [#allocation7], 1
    %2376 = vsyncpa [#allocation13], 1

</llo_original>
